<compile_context>
chip_gen: v7x
topology: tpu7x:2x2x1
jax: 0.10.0
libtpu: 0.0.40
codegen_flags: <defaults>
</compile_context>

<pallas_src>
import jax
import jax.numpy as jnp
from jax.experimental import pallas as pl
from jax.experimental.pallas import tpu as pltpu

H_ALPHA = 32   # hidden_size_alpha
H_2     = 16   # hidden_size_2
H_4     = 16   # hidden_size_4


# ----------------------------------------------------------------------------
# Pure-JAX reference math (batch-major; used only for the correctness check)
# ----------------------------------------------------------------------------
def _dense_bcast(x, w, b):
    out = x[:, 0:1] * w[0:1, :]
    for k in range(1, w.shape[0]):
        out = out + x[:, k:k + 1] * w[k:k + 1, :]
    return out + b


def _dense_rowsum(x, w_t, b):
    cols = [jnp.sum(x * w_t[j:j + 1, :], axis=-1, keepdims=True)
            for j in range(w_t.shape[0])]
    return jnp.concatenate(cols, axis=-1) + b


def _st_net(xc, w1, b1, w2_t, b2):
    h = jnp.tanh(_dense_bcast(xc, w1, b1))
    return _dense_rowsum(h, w2_t, b2)


def _coupling_flow(x, d1, n_layers, base, W1, B1, W2T, B2):
    x1, x2 = x[:, :d1], x[:, d1:]
    for i in range(n_layers):
        li = base + i
        cond = x1 if i % 2 == 0 else x2
        s = jnp.tanh(_st_net(cond, W1[0, li], B1[0, li], W2T[0, li], B2[0, li]))
        t = _st_net(cond, W1[1, li], B1[1, li], W2T[1, li], B2[1, li])
        if i % 2 == 0:
            x2 = x2 * jnp.exp(s) + t
        else:
            x1 = x1 * jnp.exp(s) + t
    return jnp.concatenate([x1, x2], axis=-1)


def _forward_math(X, Z, alpha1, abias, params):
    (aw1, ab1, aw2, ab2,
     bw1, bb1, bw2, bb2,
     cw1, cb1, cw2, cb2) = params

    X12, X34, X56, X710 = X[:, 0:2], X[:, 2:4], X[:, 4:6], X[:, 6:10]

    bias = _dense_bcast(Z, alpha1, abias)
    bias = _coupling_flow(bias, 5, 8, 0, aw1, ab1, aw2, ab2)
    b1, b2, b3, b4, b5 = (bias[:, 2 * i:2 * i + 2] for i in range(5))

    def small(x, flow_idx):
        return _coupling_flow(x, 1, 2, flow_idx * 2, bw1, bb1, bw2, bb2)

    a = X12 + b1
    b = a + b2
    c = X34 + small(a, 0)
    d = b + b3
    e = c + small(b, 1)
    f = X56 + small(c, 2)
    ef = jnp.concatenate([e, f], axis=-1)
    g = d + b4
    h = e + small(d, 3)
    Y12 = g + b5
    Y34 = h + small(g, 5)
    Y56 = f + small(h, 4)
    Y710 = X710 + _coupling_flow(ef, 2, 2, 0, cw1, cb1, cw2, cb2)
    return jnp.concatenate([Y12, Y34, Y56, Y710], axis=-1)


# ----------------------------------------------------------------------------
# In-kernel math: feature-major (feature rows on sublanes, batch on lanes)
# ----------------------------------------------------------------------------
def _net_pair(slab_ref, layer, cond, d_in, d_out, H):
    """Fused scale/translation coupling nets for one layer (MXU contractions).

    cond : (d_in, TB) conditioning features (batch on lanes).
    Slab layout per layer (width padded to 128):
      rows [0:2H)        cols [0:d_in) = fused W1^T (s rows then t rows),
                         col  d_in     = fused first-layer bias
      rows [2H:2H+r2)    cols [0:2H)   = block-diag [[W2s, 0], [0, W2t]]
                         col  2H       = fused second-layer bias
      (r2 = 2*d_out rounded up to 8 so the second dot has an aligned M dim.)
    Returns (s, t): s already tanh-squashed, each (d_out, TB).
    """
    two_h = 2 * H
    r2 = ((2 * d_out + 7) // 8) * 8

    w1 = slab_ref[layer, 0:two_h, 0:d_in]                  # (2H, d_in)
    b1 = slab_ref[layer, 0:two_h, d_in:d_in + 1]           # (2H, 1)
    if d_in == 1:
        pre = w1 * cond                                    # broadcast, no K=1 dot
    else:
        pre = jnp.dot(w1, cond, preferred_element_type=jnp.float32)
    h = jnp.tanh(pre + b1)                                 # one EUP pass, both nets

    w2 = slab_ref[layer, two_h:two_h + r2, 0:two_h]        # (r2, 2H) block-diag
    b2 = slab_ref[layer, two_h:two_h + r2, two_h:two_h + 1]
    st = jnp.dot(w2, h, preferred_element_type=jnp.float32) + b2   # (r2, TB)
    return jnp.tanh(st[0:d_out, :]), st[d_out:2 * d_out, :]


def _flow_t(x1, x2, n_layers, slab_ref, base, H):
    """RealNVP affine-coupling stack (invert=False), feature-major layout."""
    for i in range(n_layers):
        li = base + i
        if i % 2 == 0:
            s, t = _net_pair(slab_ref, li, x1, x1.shape[0], x2.shape[0], H)
            x2 = x2 * jnp.exp(s) + t
        else:
            s, t = _net_pair(slab_ref, li, x2, x2.shape[0], x1.shape[0], H)
            x1 = x1 * jnp.exp(s) + t
    return x1, x2


def _insulin_cho_kernel(xt_ref, zt_ref, alpha_ref, aw_ref, bw_ref, cw_ref,
                        yt_ref):
    X = xt_ref[...]            # (10, TB)
    Z = zt_ref[...]            # (2,  TB)
    A = alpha_ref[...]         # (10, 128): cols 0..1 = alpha1^T, col 2 = bias

    # bias = Z @ alpha1 + alpha1_bias   (feature-major, no concats)
    bias = A[:, 2:3] + A[:, 0:1] * Z[0:1, :] + A[:, 1:2] * Z[1:2, :]   # (10, TB)

    # alpha_inverse_transform = RealNVP(5, 5, H_ALPHA, layers=8)
    b_lo, b_hi = _flow_t(bias[0:5, :], bias[5:10, :], 8, aw_ref, 0, H_ALPHA)

    def small_pair(u0, u1, flow_idx):
        # RealNVP(1, 1, H_2, layers=2): rows in, rows out (no concat needed)
        return _flow_t(u0, u1, 2, bw_ref, flow_idx * 2, H_2)

    # bias1..bias5 sliced straight from the halves; bias3 straddles them.
    a0 = X[0:1, :] + b_lo[0:1, :]
    a1 = X[1:2, :] + b_lo[1:2, :]
    b0 = a0 + b_lo[2:3, :]
    b1 = a1 + b_lo[3:4, :]
    ac0, ac1 = small_pair(a0, a1, 0)           # a_c
    c0 = X[2:3, :] + ac0
    c1 = X[3:4, :] + ac1
    d0 = b0 + b_lo[4:5, :]                     # bias3 row 0
    d1 = b1 + b_hi[0:1, :]                     # bias3 row 1
    be0, be1 = small_pair(b0, b1, 1)           # b_e
    e0 = c0 + be0
    e1 = c1 + be1
    cf0, cf1 = small_pair(c0, c1, 2)           # c_f
    f0 = X[4:5, :] + cf0
    f1 = X[5:6, :] + cf1
    g0 = d0 + b_hi[1:2, :]                     # bias4
    g1 = d1 + b_hi[2:3, :]
    dh0, dh1 = small_pair(d0, d1, 3)           # d_h
    h0 = e0 + dh0
    h1 = e1 + dh1
    gx0, gx1 = small_pair(g0, g1, 5)           # g_x34
    hx0, hx1 = small_pair(h0, h1, 4)           # h_x56

    # ef_710 = RealNVP(2, 2, H_4, layers=2); only 2-row concats on the hot path
    e_cat = jnp.concatenate([e0, e1], axis=0)
    f_cat = jnp.concatenate([f0, f1], axis=0)
    ef1, ef2 = _flow_t(e_cat, f_cat, 2, cw_ref, 0, H_4)

    # Row-slice stores: lane axis stays dense, no 10-row sublane concat.
    yt_ref[0:1, :] = g0 + b_hi[3:4, :]         # Y12 (bias5)
    yt_ref[1:2, :] = g1 + b_hi[4:5, :]
    yt_ref[2:3, :] = h0 + gx0                  # Y34
    yt_ref[3:4, :] = h1 + gx1
    yt_ref[4:5, :] = f0 + hx0                  # Y56
    yt_ref[5:6, :] = f1 + hx1
    yt_ref[6:8, :] = X[6:8, :] + ef1           # Y710
    yt_ref[8:10, :] = X[8:10, :] + ef2


# ----------------------------------------------------------------------------
# Wrapper: OWN norm, trace-time weight packing, lane-dense tiling
# ----------------------------------------------------------------------------
def _own_norm(W, eps=1e-5):
    """OWNNorm (norm_groups=1): W' = (Wc Wc^T + eps I)^{-1/2} Wc."""
    Wc = W - jnp.mean(W, axis=1, keepdims=True)
    S = Wc @ Wc.T + eps * jnp.eye(W.shape[0], dtype=W.dtype)
    evals, evecs = jnp.linalg.eigh(S)
    whiten = (evecs * (evals ** -0.5)) @ evecs.T
    return whiten @ Wc


def _pack_group(w1, b1, w2t, b2, H):
    """Pack one RealNVP group into a (L, 2H + r2, 128) slab (see _net_pair)."""
    two_h = 2 * H
    L, d_in = w1.shape[1], w1.shape[2]
    d_out = w2t.shape[2]
    # layout assumptions (review correctness concern): second-layer rows must
    # fit their padded section and the first-layer bias column must exist.
    assert d_out <= 8 and d_in + 1 <= 128 and two_h + 1 <= 128
    r2 = ((2 * d_out + 7) // 8) * 8
    rows = two_h + r2
    slab = jnp.zeros((L, rows, 128), jnp.float32)

    # fused first layer: W1^T (s rows then t rows) + fused bias column
    w1t = jnp.concatenate([jnp.transpose(w1[0], (0, 2, 1)),
                           jnp.transpose(w1[1], (0, 2, 1))], axis=1)   # (L,2H,d_in)
    b1t = jnp.concatenate([jnp.transpose(b1[0], (0, 2, 1)),
                           jnp.transpose(b1[1], (0, 2, 1))], axis=1)   # (L,2H,1)
    slab = slab.at[:, 0:two_h, 0:d_in].set(w1t)
    slab = slab.at[:, 0:two_h, d_in:d_in + 1].set(b1t)

    # block-diagonal second layer: one dot yields s rows then t rows
    slab = slab.at[:, two_h:two_h + d_out, 0:H].set(w2t[0])
    slab = slab.at[:, two_h + d_out:two_h + 2 * d_out, H:two_h].set(w2t[1])
    slab = slab.at[:, two_h:two_h + d_out, two_h:two_h + 1].set(
        jnp.transpose(b2[0], (0, 2, 1)))
    slab = slab.at[:, two_h + d_out:two_h + 2 * d_out, two_h:two_h + 1].set(
        jnp.transpose(b2[1], (0, 2, 1)))
    return slab


def _pick_tb(B, max_tb=256):
    """Largest lane-aligned tile (<= 256) dividing B, keeping >= 2 grid steps.

    Capped at 256 lanes to bound the vreg footprint of the (2H, tb) coupling
    hiddens (perf review); >= 2 'parallel' steps keep both v7x TCs busy."""
    if B % 256 == 0:
        tb = min(B // 2, max_tb)
        tb -= tb % 128
        tb = max(tb, 128)
        while B % tb:
            tb -= 128
        return tb
    if B % 128 == 0:
        return 128
    return B          # full batch as one block (block dim == array dim)


def insulin_cho_forward(X, Z, alpha1, alpha1_bias, params, *, tb=None, own=True):
    B = X.shape[0]
    if own:
        alpha1 = _own_norm(alpha1)   # batch-independent re-parameterisation
    (aw1, ab1, aw2, ab2, bw1, bb1, bw2, bb2, cw1, cb1, cw2, cb2) = params

    # trace-time packing into (8,128)-aligned lane-resident slabs
    aw = _pack_group(aw1, ab1, aw2, ab2, H_ALPHA)   # (8, 80, 128)
    bw = _pack_group(bw1, bb1, bw2, bb2, H_2)       # (12, 40, 128)
    cw = _pack_group(cw1, cb1, cw2, cb2, H_4)       # (2, 40, 128)
    alpha_blk = jnp.zeros((10, 128), jnp.float32)
    alpha_blk = alpha_blk.at[:, 0:2].set(alpha1.T.astype(jnp.float32))
    alpha_blk = alpha_blk.at[:, 2].set(alpha1_bias.astype(jnp.float32))

    if tb is None:
        tb = _pick_tb(B)
    assert B % tb == 0

    XT = X.T.astype(jnp.float32)    # (10, B): batch on the lane axis
    ZT = Z.T.astype(jnp.float32)    # (2, B)

    def col_spec(nrows):
        return pl.BlockSpec((nrows, tb), lambda i: (0, i))

    def full_spec(arr):
        return pl.BlockSpec(arr.shape, lambda i, _n=arr.ndim: (0,) * _n)

    yt = pl.pallas_call(
        _insulin_cho_kernel,
        out_shape=jax.ShapeDtypeStruct((10, B), jnp.float32),
        grid_spec=pltpu.PrefetchScalarGridSpec(
            num_scalar_prefetch=0,
            grid=(B // tb,),
            in_specs=[col_spec(10), col_spec(2),
                      full_spec(alpha_blk), full_spec(aw),
                      full_spec(bw), full_spec(cw)],
            out_specs=col_spec(10)),
        compiler_params=pltpu.CompilerParams(
            dimension_semantics=("parallel",),
            vmem_limit_bytes=32 * 1024 * 1024),
    )(XT, ZT, alpha_blk, aw, bw, cw)
    return yt.T


# ----------------------------------------------------------------------------
# Deterministic parameter initialisation (synthetic; no checkpoint loading)
# ----------------------------------------------------------------------------
def init_params(key):
    ks = jax.random.split(key, 16)

    def n(k, shape, scale=0.1):
        return scale * jax.random.normal(k, shape, dtype=jnp.float32)

    alpha1 = jax.random.normal(ks[0], (2, 10), dtype=jnp.float32)
    alpha1_bias = jax.random.normal(ks[1], (10,), dtype=jnp.float32)

    # group A: alpha_inverse_transform = RealNVP(5, 5, H_ALPHA, layers=8)
    aw1 = n(ks[2], (2, 8, 5, H_ALPHA))       # [s|t] first-layer weights (in, H)
    ab1 = n(ks[3], (2, 8, 1, H_ALPHA))
    aw2 = n(ks[4], (2, 8, 5, H_ALPHA))       # second-layer weights, stored (out, H)
    ab2 = n(ks[5], (2, 8, 1, 5))

    # group B: six RealNVP(1, 1, H_2, layers=2) flows: a_c,b_e,c_f,d_h,h_x56,g_x34
    bw1 = n(ks[6], (2, 12, 1, H_2))
    bb1 = n(ks[7], (2, 12, 1, H_2))
    bw2 = n(ks[8], (2, 12, 1, H_2))
    bb2 = n(ks[9], (2, 12, 1, 1))

    # group C: ef_710 = RealNVP(2, 2, H_4, layers=2)
    cw1 = n(ks[10], (2, 2, 2, H_4))
    cb1 = n(ks[11], (2, 2, 1, H_4))
    cw2 = n(ks[12], (2, 2, 2, H_4))
    cb2 = n(ks[13], (2, 2, 1, 2))

    params = (aw1, ab1, aw2, ab2, bw1, bb1, bw2, bb2, cw1, cb1, cw2, cb2)
    return alpha1, alpha1_bias, params


if __name__ == "__main__":
    key = jax.random.PRNGKey(0)
    kx, kz, kp = jax.random.split(key, 3)

    B = 256                                                  # 2 lane-dense tiles
    X = jax.random.normal(kx, (B, 10), dtype=jnp.float32)    # 10 state vars
    Z = jax.random.normal(kz, (B, 2), dtype=jnp.float32)     # latent control
    alpha1, alpha1_bias, params = init_params(kp)

    fwd = jax.jit(insulin_cho_forward)
    Y = jax.block_until_ready(fwd(X, Z, alpha1, alpha1_bias, params))

    # pure-JAX sanity reference (same math, batch-major, no Pallas)
    Y_ref = _forward_math(X, Z, _own_norm(alpha1),
                          alpha1_bias.reshape(1, 10), params)

    assert Y.shape == (B, 10)
    assert bool(jnp.all(jnp.isfinite(Y)))
    assert bool(jnp.allclose(Y, Y_ref, rtol=2e-3, atol=2e-3))
    print("KERNEL_OK")
</pallas_src>

<mosaic_0001>
module attributes {stable_mosaic.version = 11 : i64} {
  func.func @_insulin_cho_kernel(%arg0: i32, %arg1: memref<10x128xf32, #tpu.memory_space<vmem>>, %arg2: memref<2x128xf32, #tpu.memory_space<vmem>>, %arg3: memref<10x128xf32, #tpu.memory_space<vmem>>, %arg4: memref<8x80x128xf32, #tpu.memory_space<vmem>>, %arg5: memref<12x40x128xf32, #tpu.memory_space<vmem>>, %arg6: memref<2x40x128xf32, #tpu.memory_space<vmem>>, %arg7: memref<10x128xf32, #tpu.memory_space<vmem>>) attributes {dimension_semantics = [#tpu.dimension_semantics<parallel>], iteration_bounds = array<i64: 2>, scalar_prefetch = 0 : i64, scratch_operands = 0 : i64, tpu.core_type = #tpu.core_type<tc>, window_params = [{transform_indices = @transform_0, window_bounds = array<i64: 10, 128>}, {transform_indices = @transform_1, window_bounds = array<i64: 2, 128>}, {pipeline_mode = #tpu.pipeline_mode<synchronous>, transform_indices = @transform_2, window_bounds = array<i64: 10, 128>}, {pipeline_mode = #tpu.pipeline_mode<synchronous>, transform_indices = @transform_3, window_bounds = array<i64: 8, 80, 128>}, {pipeline_mode = #tpu.pipeline_mode<synchronous>, transform_indices = @transform_4, window_bounds = array<i64: 12, 40, 128>}, {pipeline_mode = #tpu.pipeline_mode<synchronous>, transform_indices = @transform_5, window_bounds = array<i64: 2, 40, 128>}, {transform_indices = @transform_6, window_bounds = array<i64: 10, 128>}]} {
    %c0 = arith.constant 0 : index
    %c0_0 = arith.constant 0 : index
    %0 = vector.load %arg1[%c0, %c0_0] : memref<10x128xf32, #tpu.memory_space<vmem>>, vector<10x128xf32>
    %c0_1 = arith.constant 0 : index
    %c0_2 = arith.constant 0 : index
    %1 = vector.load %arg2[%c0_1, %c0_2] : memref<2x128xf32, #tpu.memory_space<vmem>>, vector<2x128xf32>
    %c0_3 = arith.constant 0 : index
    %c0_4 = arith.constant 0 : index
    %2 = vector.load %arg3[%c0_3, %c0_4] : memref<10x128xf32, #tpu.memory_space<vmem>>, vector<10x128xf32>
    %3 = vector.extract_strided_slice %2 {offsets = [0, 2], sizes = [10, 1], strides = [1, 1]} : vector<10x128xf32> to vector<10x1xf32>
    %4 = vector.extract_strided_slice %2 {offsets = [0, 0], sizes = [10, 1], strides = [1, 1]} : vector<10x128xf32> to vector<10x1xf32>
    %5 = vector.extract_strided_slice %1 {offsets = [0, 0], sizes = [1, 128], strides = [1, 1]} : vector<2x128xf32> to vector<1x128xf32>
    %6 = vector.broadcast %4 : vector<10x1xf32> to vector<10x128xf32>
    %7 = vector.broadcast %5 : vector<1x128xf32> to vector<10x128xf32>
    %8 = arith.mulf %6, %7 : vector<10x128xf32>
    %9 = vector.broadcast %3 : vector<10x1xf32> to vector<10x128xf32>
    %10 = arith.addf %9, %8 : vector<10x128xf32>
    %11 = vector.extract_strided_slice %2 {offsets = [0, 1], sizes = [10, 1], strides = [1, 1]} : vector<10x128xf32> to vector<10x1xf32>
    %12 = vector.extract_strided_slice %1 {offsets = [1, 0], sizes = [1, 128], strides = [1, 1]} : vector<2x128xf32> to vector<1x128xf32>
    %13 = vector.broadcast %11 : vector<10x1xf32> to vector<10x128xf32>
    %14 = vector.broadcast %12 : vector<1x128xf32> to vector<10x128xf32>
    %15 = arith.mulf %13, %14 : vector<10x128xf32>
    %16 = arith.addf %10, %15 : vector<10x128xf32>
    %17 = vector.extract_strided_slice %16 {offsets = [0, 0], sizes = [5, 128], strides = [1, 1]} : vector<10x128xf32> to vector<5x128xf32>
    %18 = vector.extract_strided_slice %16 {offsets = [5, 0], sizes = [5, 128], strides = [1, 1]} : vector<10x128xf32> to vector<5x128xf32>
    %c0_5 = arith.constant 0 : index
    %c0_6 = arith.constant 0 : index
    %c0_7 = arith.constant 0 : index
    %19 = vector.load %arg4[%c0_5, %c0_6, %c0_7] : memref<8x80x128xf32, #tpu.memory_space<vmem>>, vector<1x64x5xf32>
    %20 = vector.shape_cast %19 : vector<1x64x5xf32> to vector<64x5xf32>
    %c0_8 = arith.constant 0 : index
    %c0_9 = arith.constant 0 : index
    %c5 = arith.constant 5 : index
    %21 = vector.load %arg4[%c0_8, %c0_9, %c5] : memref<8x80x128xf32, #tpu.memory_space<vmem>>, vector<1x64x1xf32>
    %22 = vector.shape_cast %21 : vector<1x64x1xf32> to vector<64x1xf32>
    %cst = arith.constant dense<0.000000e+00> : vector<64x128xf32>
    %23 = tpu.matmul %20, %17, %cst {dimension_numbers = #tpu.dot_dimension_numbers<[1], [0], [0], [1], [0, 0, 1, 1], [], []>} : vector<64x5xf32>, vector<5x128xf32>, vector<64x128xf32> -> vector<64x128xf32>
    %24 = vector.broadcast %22 : vector<64x1xf32> to vector<64x128xf32>
    %25 = arith.addf %23, %24 : vector<64x128xf32>
    %26 = math.tanh %25 : vector<64x128xf32>
    %c0_10 = arith.constant 0 : index
    %c64 = arith.constant 64 : index
    %c0_11 = arith.constant 0 : index
    %27 = vector.load %arg4[%c0_10, %c64, %c0_11] : memref<8x80x128xf32, #tpu.memory_space<vmem>>, vector<1x16x64xf32>
    %28 = vector.shape_cast %27 : vector<1x16x64xf32> to vector<16x64xf32>
    %c0_12 = arith.constant 0 : index
    %c64_13 = arith.constant 64 : index
    %c64_14 = arith.constant 64 : index
    %29 = vector.load %arg4[%c0_12, %c64_13, %c64_14] : memref<8x80x128xf32, #tpu.memory_space<vmem>>, vector<1x16x1xf32>
    %30 = vector.shape_cast %29 : vector<1x16x1xf32> to vector<16x1xf32>
    %cst_15 = arith.constant dense<0.000000e+00> : vector<16x128xf32>
    %31 = tpu.matmul %28, %26, %cst_15 {dimension_numbers = #tpu.dot_dimension_numbers<[1], [0], [0], [1], [0, 0, 1, 1], [], []>} : vector<16x64xf32>, vector<64x128xf32>, vector<16x128xf32> -> vector<16x128xf32>
    %32 = vector.broadcast %30 : vector<16x1xf32> to vector<16x128xf32>
    %33 = arith.addf %31, %32 : vector<16x128xf32>
    %34 = vector.extract_strided_slice %33 {offsets = [0, 0], sizes = [5, 128], strides = [1, 1]} : vector<16x128xf32> to vector<5x128xf32>
    %35 = math.tanh %34 : vector<5x128xf32>
    %36 = vector.extract_strided_slice %33 {offsets = [5, 0], sizes = [5, 128], strides = [1, 1]} : vector<16x128xf32> to vector<5x128xf32>
    %37 = math.exp %35 : vector<5x128xf32>
    %38 = arith.mulf %18, %37 : vector<5x128xf32>
    %39 = arith.addf %38, %36 : vector<5x128xf32>
    %c1 = arith.constant 1 : index
    %c0_16 = arith.constant 0 : index
    %c0_17 = arith.constant 0 : index
    %40 = vector.load %arg4[%c1, %c0_16, %c0_17] : memref<8x80x128xf32, #tpu.memory_space<vmem>>, vector<1x64x5xf32>
    %41 = vector.shape_cast %40 : vector<1x64x5xf32> to vector<64x5xf32>
    %c1_18 = arith.constant 1 : index
    %c0_19 = arith.constant 0 : index
    %c5_20 = arith.constant 5 : index
    %42 = vector.load %arg4[%c1_18, %c0_19, %c5_20] : memref<8x80x128xf32, #tpu.memory_space<vmem>>, vector<1x64x1xf32>
    %43 = vector.shape_cast %42 : vector<1x64x1xf32> to vector<64x1xf32>
    %cst_21 = arith.constant dense<0.000000e+00> : vector<64x128xf32>
    %44 = tpu.matmul %41, %39, %cst_21 {dimension_numbers = #tpu.dot_dimension_numbers<[1], [0], [0], [1], [0, 0, 1, 1], [], []>} : vector<64x5xf32>, vector<5x128xf32>, vector<64x128xf32> -> vector<64x128xf32>
    %45 = vector.broadcast %43 : vector<64x1xf32> to vector<64x128xf32>
    %46 = arith.addf %44, %45 : vector<64x128xf32>
    %47 = math.tanh %46 : vector<64x128xf32>
    %c1_22 = arith.constant 1 : index
    %c64_23 = arith.constant 64 : index
    %c0_24 = arith.constant 0 : index
    %48 = vector.load %arg4[%c1_22, %c64_23, %c0_24] : memref<8x80x128xf32, #tpu.memory_space<vmem>>, vector<1x16x64xf32>
    %49 = vector.shape_cast %48 : vector<1x16x64xf32> to vector<16x64xf32>
    %c1_25 = arith.constant 1 : index
    %c64_26 = arith.constant 64 : index
    %c64_27 = arith.constant 64 : index
    %50 = vector.load %arg4[%c1_25, %c64_26, %c64_27] : memref<8x80x128xf32, #tpu.memory_space<vmem>>, vector<1x16x1xf32>
    %51 = vector.shape_cast %50 : vector<1x16x1xf32> to vector<16x1xf32>
    %cst_28 = arith.constant dense<0.000000e+00> : vector<16x128xf32>
    %52 = tpu.matmul %49, %47, %cst_28 {dimension_numbers = #tpu.dot_dimension_numbers<[1], [0], [0], [1], [0, 0, 1, 1], [], []>} : vector<16x64xf32>, vector<64x128xf32>, vector<16x128xf32> -> vector<16x128xf32>
    %53 = vector.broadcast %51 : vector<16x1xf32> to vector<16x128xf32>
    %54 = arith.addf %52, %53 : vector<16x128xf32>
    %55 = vector.extract_strided_slice %54 {offsets = [0, 0], sizes = [5, 128], strides = [1, 1]} : vector<16x128xf32> to vector<5x128xf32>
    %56 = math.tanh %55 : vector<5x128xf32>
    %57 = vector.extract_strided_slice %54 {offsets = [5, 0], sizes = [5, 128], strides = [1, 1]} : vector<16x128xf32> to vector<5x128xf32>
    %58 = math.exp %56 : vector<5x128xf32>
    %59 = arith.mulf %17, %58 : vector<5x128xf32>
    %60 = arith.addf %59, %57 : vector<5x128xf32>
    %c2 = arith.constant 2 : index
    %c0_29 = arith.constant 0 : index
    %c0_30 = arith.constant 0 : index
    %61 = vector.load %arg4[%c2, %c0_29, %c0_30] : memref<8x80x128xf32, #tpu.memory_space<vmem>>, vector<1x64x5xf32>
    %62 = vector.shape_cast %61 : vector<1x64x5xf32> to vector<64x5xf32>
    %c2_31 = arith.constant 2 : index
    %c0_32 = arith.constant 0 : index
    %c5_33 = arith.constant 5 : index
    %63 = vector.load %arg4[%c2_31, %c0_32, %c5_33] : memref<8x80x128xf32, #tpu.memory_space<vmem>>, vector<1x64x1xf32>
    %64 = vector.shape_cast %63 : vector<1x64x1xf32> to vector<64x1xf32>
    %cst_34 = arith.constant dense<0.000000e+00> : vector<64x128xf32>
    %65 = tpu.matmul %62, %60, %cst_34 {dimension_numbers = #tpu.dot_dimension_numbers<[1], [0], [0], [1], [0, 0, 1, 1], [], []>} : vector<64x5xf32>, vector<5x128xf32>, vector<64x128xf32> -> vector<64x128xf32>
    %66 = vector.broadcast %64 : vector<64x1xf32> to vector<64x128xf32>
    %67 = arith.addf %65, %66 : vector<64x128xf32>
    %68 = math.tanh %67 : vector<64x128xf32>
    %c2_35 = arith.constant 2 : index
    %c64_36 = arith.constant 64 : index
    %c0_37 = arith.constant 0 : index
    %69 = vector.load %arg4[%c2_35, %c64_36, %c0_37] : memref<8x80x128xf32, #tpu.memory_space<vmem>>, vector<1x16x64xf32>
    %70 = vector.shape_cast %69 : vector<1x16x64xf32> to vector<16x64xf32>
    %c2_38 = arith.constant 2 : index
    %c64_39 = arith.constant 64 : index
    %c64_40 = arith.constant 64 : index
    %71 = vector.load %arg4[%c2_38, %c64_39, %c64_40] : memref<8x80x128xf32, #tpu.memory_space<vmem>>, vector<1x16x1xf32>
    %72 = vector.shape_cast %71 : vector<1x16x1xf32> to vector<16x1xf32>
    %cst_41 = arith.constant dense<0.000000e+00> : vector<16x128xf32>
    %73 = tpu.matmul %70, %68, %cst_41 {dimension_numbers = #tpu.dot_dimension_numbers<[1], [0], [0], [1], [0, 0, 1, 1], [], []>} : vector<16x64xf32>, vector<64x128xf32>, vector<16x128xf32> -> vector<16x128xf32>
    %74 = vector.broadcast %72 : vector<16x1xf32> to vector<16x128xf32>
    %75 = arith.addf %73, %74 : vector<16x128xf32>
    %76 = vector.extract_strided_slice %75 {offsets = [0, 0], sizes = [5, 128], strides = [1, 1]} : vector<16x128xf32> to vector<5x128xf32>
    %77 = math.tanh %76 : vector<5x128xf32>
    %78 = vector.extract_strided_slice %75 {offsets = [5, 0], sizes = [5, 128], strides = [1, 1]} : vector<16x128xf32> to vector<5x128xf32>
    %79 = math.exp %77 : vector<5x128xf32>
    %80 = arith.mulf %39, %79 : vector<5x128xf32>
    %81 = arith.addf %80, %78 : vector<5x128xf32>
    %c3 = arith.constant 3 : index
    %c0_42 = arith.constant 0 : index
    %c0_43 = arith.constant 0 : index
    %82 = vector.load %arg4[%c3, %c0_42, %c0_43] : memref<8x80x128xf32, #tpu.memory_space<vmem>>, vector<1x64x5xf32>
    %83 = vector.shape_cast %82 : vector<1x64x5xf32> to vector<64x5xf32>
    %c3_44 = arith.constant 3 : index
    %c0_45 = arith.constant 0 : index
    %c5_46 = arith.constant 5 : index
    %84 = vector.load %arg4[%c3_44, %c0_45, %c5_46] : memref<8x80x128xf32, #tpu.memory_space<vmem>>, vector<1x64x1xf32>
    %85 = vector.shape_cast %84 : vector<1x64x1xf32> to vector<64x1xf32>
    %cst_47 = arith.constant dense<0.000000e+00> : vector<64x128xf32>
    %86 = tpu.matmul %83, %81, %cst_47 {dimension_numbers = #tpu.dot_dimension_numbers<[1], [0], [0], [1], [0, 0, 1, 1], [], []>} : vector<64x5xf32>, vector<5x128xf32>, vector<64x128xf32> -> vector<64x128xf32>
    %87 = vector.broadcast %85 : vector<64x1xf32> to vector<64x128xf32>
    %88 = arith.addf %86, %87 : vector<64x128xf32>
    %89 = math.tanh %88 : vector<64x128xf32>
    %c3_48 = arith.constant 3 : index
    %c64_49 = arith.constant 64 : index
    %c0_50 = arith.constant 0 : index
    %90 = vector.load %arg4[%c3_48, %c64_49, %c0_50] : memref<8x80x128xf32, #tpu.memory_space<vmem>>, vector<1x16x64xf32>
    %91 = vector.shape_cast %90 : vector<1x16x64xf32> to vector<16x64xf32>
    %c3_51 = arith.constant 3 : index
    %c64_52 = arith.constant 64 : index
    %c64_53 = arith.constant 64 : index
    %92 = vector.load %arg4[%c3_51, %c64_52, %c64_53] : memref<8x80x128xf32, #tpu.memory_space<vmem>>, vector<1x16x1xf32>
    %93 = vector.shape_cast %92 : vector<1x16x1xf32> to vector<16x1xf32>
    %cst_54 = arith.constant dense<0.000000e+00> : vector<16x128xf32>
    %94 = tpu.matmul %91, %89, %cst_54 {dimension_numbers = #tpu.dot_dimension_numbers<[1], [0], [0], [1], [0, 0, 1, 1], [], []>} : vector<16x64xf32>, vector<64x128xf32>, vector<16x128xf32> -> vector<16x128xf32>
    %95 = vector.broadcast %93 : vector<16x1xf32> to vector<16x128xf32>
    %96 = arith.addf %94, %95 : vector<16x128xf32>
    %97 = vector.extract_strided_slice %96 {offsets = [0, 0], sizes = [5, 128], strides = [1, 1]} : vector<16x128xf32> to vector<5x128xf32>
    %98 = math.tanh %97 : vector<5x128xf32>
    %99 = vector.extract_strided_slice %96 {offsets = [5, 0], sizes = [5, 128], strides = [1, 1]} : vector<16x128xf32> to vector<5x128xf32>
    %100 = math.exp %98 : vector<5x128xf32>
    %101 = arith.mulf %60, %100 : vector<5x128xf32>
    %102 = arith.addf %101, %99 : vector<5x128xf32>
    %c4 = arith.constant 4 : index
    %c0_55 = arith.constant 0 : index
    %c0_56 = arith.constant 0 : index
    %103 = vector.load %arg4[%c4, %c0_55, %c0_56] : memref<8x80x128xf32, #tpu.memory_space<vmem>>, vector<1x64x5xf32>
    %104 = vector.shape_cast %103 : vector<1x64x5xf32> to vector<64x5xf32>
    %c4_57 = arith.constant 4 : index
    %c0_58 = arith.constant 0 : index
    %c5_59 = arith.constant 5 : index
    %105 = vector.load %arg4[%c4_57, %c0_58, %c5_59] : memref<8x80x128xf32, #tpu.memory_space<vmem>>, vector<1x64x1xf32>
    %106 = vector.shape_cast %105 : vector<1x64x1xf32> to vector<64x1xf32>
    %cst_60 = arith.constant dense<0.000000e+00> : vector<64x128xf32>
    %107 = tpu.matmul %104, %102, %cst_60 {dimension_numbers = #tpu.dot_dimension_numbers<[1], [0], [0], [1], [0, 0, 1, 1], [], []>} : vector<64x5xf32>, vector<5x128xf32>, vector<64x128xf32> -> vector<64x128xf32>
    %108 = vector.broadcast %106 : vector<64x1xf32> to vector<64x128xf32>
    %109 = arith.addf %107, %108 : vector<64x128xf32>
    %110 = math.tanh %109 : vector<64x128xf32>
    %c4_61 = arith.constant 4 : index
    %c64_62 = arith.constant 64 : index
    %c0_63 = arith.constant 0 : index
    %111 = vector.load %arg4[%c4_61, %c64_62, %c0_63] : memref<8x80x128xf32, #tpu.memory_space<vmem>>, vector<1x16x64xf32>
    %112 = vector.shape_cast %111 : vector<1x16x64xf32> to vector<16x64xf32>
    %c4_64 = arith.constant 4 : index
    %c64_65 = arith.constant 64 : index
    %c64_66 = arith.constant 64 : index
    %113 = vector.load %arg4[%c4_64, %c64_65, %c64_66] : memref<8x80x128xf32, #tpu.memory_space<vmem>>, vector<1x16x1xf32>
    %114 = vector.shape_cast %113 : vector<1x16x1xf32> to vector<16x1xf32>
    %cst_67 = arith.constant dense<0.000000e+00> : vector<16x128xf32>
    %115 = tpu.matmul %112, %110, %cst_67 {dimension_numbers = #tpu.dot_dimension_numbers<[1], [0], [0], [1], [0, 0, 1, 1], [], []>} : vector<16x64xf32>, vector<64x128xf32>, vector<16x128xf32> -> vector<16x128xf32>
    %116 = vector.broadcast %114 : vector<16x1xf32> to vector<16x128xf32>
    %117 = arith.addf %115, %116 : vector<16x128xf32>
    %118 = vector.extract_strided_slice %117 {offsets = [0, 0], sizes = [5, 128], strides = [1, 1]} : vector<16x128xf32> to vector<5x128xf32>
    %119 = math.tanh %118 : vector<5x128xf32>
    %120 = vector.extract_strided_slice %117 {offsets = [5, 0], sizes = [5, 128], strides = [1, 1]} : vector<16x128xf32> to vector<5x128xf32>
    %121 = math.exp %119 : vector<5x128xf32>
    %122 = arith.mulf %81, %121 : vector<5x128xf32>
    %123 = arith.addf %122, %120 : vector<5x128xf32>
    %c5_68 = arith.constant 5 : index
    %c0_69 = arith.constant 0 : index
    %c0_70 = arith.constant 0 : index
    %124 = vector.load %arg4[%c5_68, %c0_69, %c0_70] : memref<8x80x128xf32, #tpu.memory_space<vmem>>, vector<1x64x5xf32>
    %125 = vector.shape_cast %124 : vector<1x64x5xf32> to vector<64x5xf32>
    %c5_71 = arith.constant 5 : index
    %c0_72 = arith.constant 0 : index
    %c5_73 = arith.constant 5 : index
    %126 = vector.load %arg4[%c5_71, %c0_72, %c5_73] : memref<8x80x128xf32, #tpu.memory_space<vmem>>, vector<1x64x1xf32>
    %127 = vector.shape_cast %126 : vector<1x64x1xf32> to vector<64x1xf32>
    %cst_74 = arith.constant dense<0.000000e+00> : vector<64x128xf32>
    %128 = tpu.matmul %125, %123, %cst_74 {dimension_numbers = #tpu.dot_dimension_numbers<[1], [0], [0], [1], [0, 0, 1, 1], [], []>} : vector<64x5xf32>, vector<5x128xf32>, vector<64x128xf32> -> vector<64x128xf32>
    %129 = vector.broadcast %127 : vector<64x1xf32> to vector<64x128xf32>
    %130 = arith.addf %128, %129 : vector<64x128xf32>
    %131 = math.tanh %130 : vector<64x128xf32>
    %c5_75 = arith.constant 5 : index
    %c64_76 = arith.constant 64 : index
    %c0_77 = arith.constant 0 : index
    %132 = vector.load %arg4[%c5_75, %c64_76, %c0_77] : memref<8x80x128xf32, #tpu.memory_space<vmem>>, vector<1x16x64xf32>
    %133 = vector.shape_cast %132 : vector<1x16x64xf32> to vector<16x64xf32>
    %c5_78 = arith.constant 5 : index
    %c64_79 = arith.constant 64 : index
    %c64_80 = arith.constant 64 : index
    %134 = vector.load %arg4[%c5_78, %c64_79, %c64_80] : memref<8x80x128xf32, #tpu.memory_space<vmem>>, vector<1x16x1xf32>
    %135 = vector.shape_cast %134 : vector<1x16x1xf32> to vector<16x1xf32>
    %cst_81 = arith.constant dense<0.000000e+00> : vector<16x128xf32>
    %136 = tpu.matmul %133, %131, %cst_81 {dimension_numbers = #tpu.dot_dimension_numbers<[1], [0], [0], [1], [0, 0, 1, 1], [], []>} : vector<16x64xf32>, vector<64x128xf32>, vector<16x128xf32> -> vector<16x128xf32>
    %137 = vector.broadcast %135 : vector<16x1xf32> to vector<16x128xf32>
    %138 = arith.addf %136, %137 : vector<16x128xf32>
    %139 = vector.extract_strided_slice %138 {offsets = [0, 0], sizes = [5, 128], strides = [1, 1]} : vector<16x128xf32> to vector<5x128xf32>
    %140 = math.tanh %139 : vector<5x128xf32>
    %141 = vector.extract_strided_slice %138 {offsets = [5, 0], sizes = [5, 128], strides = [1, 1]} : vector<16x128xf32> to vector<5x128xf32>
    %142 = math.exp %140 : vector<5x128xf32>
    %143 = arith.mulf %102, %142 : vector<5x128xf32>
    %144 = arith.addf %143, %141 : vector<5x128xf32>
    %c6 = arith.constant 6 : index
    %c0_82 = arith.constant 0 : index
    %c0_83 = arith.constant 0 : index
    %145 = vector.load %arg4[%c6, %c0_82, %c0_83] : memref<8x80x128xf32, #tpu.memory_space<vmem>>, vector<1x64x5xf32>
    %146 = vector.shape_cast %145 : vector<1x64x5xf32> to vector<64x5xf32>
    %c6_84 = arith.constant 6 : index
    %c0_85 = arith.constant 0 : index
    %c5_86 = arith.constant 5 : index
    %147 = vector.load %arg4[%c6_84, %c0_85, %c5_86] : memref<8x80x128xf32, #tpu.memory_space<vmem>>, vector<1x64x1xf32>
    %148 = vector.shape_cast %147 : vector<1x64x1xf32> to vector<64x1xf32>
    %cst_87 = arith.constant dense<0.000000e+00> : vector<64x128xf32>
    %149 = tpu.matmul %146, %144, %cst_87 {dimension_numbers = #tpu.dot_dimension_numbers<[1], [0], [0], [1], [0, 0, 1, 1], [], []>} : vector<64x5xf32>, vector<5x128xf32>, vector<64x128xf32> -> vector<64x128xf32>
    %150 = vector.broadcast %148 : vector<64x1xf32> to vector<64x128xf32>
    %151 = arith.addf %149, %150 : vector<64x128xf32>
    %152 = math.tanh %151 : vector<64x128xf32>
    %c6_88 = arith.constant 6 : index
    %c64_89 = arith.constant 64 : index
    %c0_90 = arith.constant 0 : index
    %153 = vector.load %arg4[%c6_88, %c64_89, %c0_90] : memref<8x80x128xf32, #tpu.memory_space<vmem>>, vector<1x16x64xf32>
    %154 = vector.shape_cast %153 : vector<1x16x64xf32> to vector<16x64xf32>
    %c6_91 = arith.constant 6 : index
    %c64_92 = arith.constant 64 : index
    %c64_93 = arith.constant 64 : index
    %155 = vector.load %arg4[%c6_91, %c64_92, %c64_93] : memref<8x80x128xf32, #tpu.memory_space<vmem>>, vector<1x16x1xf32>
    %156 = vector.shape_cast %155 : vector<1x16x1xf32> to vector<16x1xf32>
    %cst_94 = arith.constant dense<0.000000e+00> : vector<16x128xf32>
    %157 = tpu.matmul %154, %152, %cst_94 {dimension_numbers = #tpu.dot_dimension_numbers<[1], [0], [0], [1], [0, 0, 1, 1], [], []>} : vector<16x64xf32>, vector<64x128xf32>, vector<16x128xf32> -> vector<16x128xf32>
    %158 = vector.broadcast %156 : vector<16x1xf32> to vector<16x128xf32>
    %159 = arith.addf %157, %158 : vector<16x128xf32>
    %160 = vector.extract_strided_slice %159 {offsets = [0, 0], sizes = [5, 128], strides = [1, 1]} : vector<16x128xf32> to vector<5x128xf32>
    %161 = math.tanh %160 : vector<5x128xf32>
    %162 = vector.extract_strided_slice %159 {offsets = [5, 0], sizes = [5, 128], strides = [1, 1]} : vector<16x128xf32> to vector<5x128xf32>
    %163 = math.exp %161 : vector<5x128xf32>
    %164 = arith.mulf %123, %163 : vector<5x128xf32>
    %165 = arith.addf %164, %162 : vector<5x128xf32>
    %c7 = arith.constant 7 : index
    %c0_95 = arith.constant 0 : index
    %c0_96 = arith.constant 0 : index
    %166 = vector.load %arg4[%c7, %c0_95, %c0_96] : memref<8x80x128xf32, #tpu.memory_space<vmem>>, vector<1x64x5xf32>
    %167 = vector.shape_cast %166 : vector<1x64x5xf32> to vector<64x5xf32>
    %c7_97 = arith.constant 7 : index
    %c0_98 = arith.constant 0 : index
    %c5_99 = arith.constant 5 : index
    %168 = vector.load %arg4[%c7_97, %c0_98, %c5_99] : memref<8x80x128xf32, #tpu.memory_space<vmem>>, vector<1x64x1xf32>
    %169 = vector.shape_cast %168 : vector<1x64x1xf32> to vector<64x1xf32>
    %cst_100 = arith.constant dense<0.000000e+00> : vector<64x128xf32>
    %170 = tpu.matmul %167, %165, %cst_100 {dimension_numbers = #tpu.dot_dimension_numbers<[1], [0], [0], [1], [0, 0, 1, 1], [], []>} : vector<64x5xf32>, vector<5x128xf32>, vector<64x128xf32> -> vector<64x128xf32>
    %171 = vector.broadcast %169 : vector<64x1xf32> to vector<64x128xf32>
    %172 = arith.addf %170, %171 : vector<64x128xf32>
    %173 = math.tanh %172 : vector<64x128xf32>
    %c7_101 = arith.constant 7 : index
    %c64_102 = arith.constant 64 : index
    %c0_103 = arith.constant 0 : index
    %174 = vector.load %arg4[%c7_101, %c64_102, %c0_103] : memref<8x80x128xf32, #tpu.memory_space<vmem>>, vector<1x16x64xf32>
    %175 = vector.shape_cast %174 : vector<1x16x64xf32> to vector<16x64xf32>
    %c7_104 = arith.constant 7 : index
    %c64_105 = arith.constant 64 : index
    %c64_106 = arith.constant 64 : index
    %176 = vector.load %arg4[%c7_104, %c64_105, %c64_106] : memref<8x80x128xf32, #tpu.memory_space<vmem>>, vector<1x16x1xf32>
    %177 = vector.shape_cast %176 : vector<1x16x1xf32> to vector<16x1xf32>
    %cst_107 = arith.constant dense<0.000000e+00> : vector<16x128xf32>
    %178 = tpu.matmul %175, %173, %cst_107 {dimension_numbers = #tpu.dot_dimension_numbers<[1], [0], [0], [1], [0, 0, 1, 1], [], []>} : vector<16x64xf32>, vector<64x128xf32>, vector<16x128xf32> -> vector<16x128xf32>
    %179 = vector.broadcast %177 : vector<16x1xf32> to vector<16x128xf32>
    %180 = arith.addf %178, %179 : vector<16x128xf32>
    %181 = vector.extract_strided_slice %180 {offsets = [0, 0], sizes = [5, 128], strides = [1, 1]} : vector<16x128xf32> to vector<5x128xf32>
    %182 = math.tanh %181 : vector<5x128xf32>
    %183 = vector.extract_strided_slice %180 {offsets = [5, 0], sizes = [5, 128], strides = [1, 1]} : vector<16x128xf32> to vector<5x128xf32>
    %184 = math.exp %182 : vector<5x128xf32>
    %185 = arith.mulf %144, %184 : vector<5x128xf32>
    %186 = arith.addf %185, %183 : vector<5x128xf32>
    %187 = vector.extract_strided_slice %0 {offsets = [0, 0], sizes = [1, 128], strides = [1, 1]} : vector<10x128xf32> to vector<1x128xf32>
    %188 = vector.extract_strided_slice %186 {offsets = [0, 0], sizes = [1, 128], strides = [1, 1]} : vector<5x128xf32> to vector<1x128xf32>
    %189 = arith.addf %187, %188 : vector<1x128xf32>
    %190 = vector.extract_strided_slice %0 {offsets = [1, 0], sizes = [1, 128], strides = [1, 1]} : vector<10x128xf32> to vector<1x128xf32>
    %191 = vector.extract_strided_slice %186 {offsets = [1, 0], sizes = [1, 128], strides = [1, 1]} : vector<5x128xf32> to vector<1x128xf32>
    %192 = arith.addf %190, %191 : vector<1x128xf32>
    %193 = vector.extract_strided_slice %186 {offsets = [2, 0], sizes = [1, 128], strides = [1, 1]} : vector<5x128xf32> to vector<1x128xf32>
    %194 = arith.addf %189, %193 : vector<1x128xf32>
    %195 = vector.extract_strided_slice %186 {offsets = [3, 0], sizes = [1, 128], strides = [1, 1]} : vector<5x128xf32> to vector<1x128xf32>
    %196 = arith.addf %192, %195 : vector<1x128xf32>
    %c0_108 = arith.constant 0 : index
    %c0_109 = arith.constant 0 : index
    %c0_110 = arith.constant 0 : index
    %197 = vector.load %arg5[%c0_108, %c0_109, %c0_110] : memref<12x40x128xf32, #tpu.memory_space<vmem>>, vector<1x32x1xf32>
    %198 = vector.shape_cast %197 : vector<1x32x1xf32> to vector<32x1xf32>
    %c0_111 = arith.constant 0 : index
    %c0_112 = arith.constant 0 : index
    %c1_113 = arith.constant 1 : index
    %199 = vector.load %arg5[%c0_111, %c0_112, %c1_113] : memref<12x40x128xf32, #tpu.memory_space<vmem>>, vector<1x32x1xf32>
    %200 = vector.shape_cast %199 : vector<1x32x1xf32> to vector<32x1xf32>
    %201 = vector.broadcast %198 : vector<32x1xf32> to vector<32x128xf32>
    %202 = vector.broadcast %189 : vector<1x128xf32> to vector<32x128xf32>
    %203 = arith.mulf %201, %202 : vector<32x128xf32>
    %204 = vector.broadcast %200 : vector<32x1xf32> to vector<32x128xf32>
    %205 = arith.addf %203, %204 : vector<32x128xf32>
    %206 = math.tanh %205 : vector<32x128xf32>
    %c0_114 = arith.constant 0 : index
    %c32 = arith.constant 32 : index
    %c0_115 = arith.constant 0 : index
    %207 = vector.load %arg5[%c0_114, %c32, %c0_115] : memref<12x40x128xf32, #tpu.memory_space<vmem>>, vector<1x8x32xf32>
    %208 = vector.shape_cast %207 : vector<1x8x32xf32> to vector<8x32xf32>
    %c0_116 = arith.constant 0 : index
    %c32_117 = arith.constant 32 : index
    %c32_118 = arith.constant 32 : index
    %209 = vector.load %arg5[%c0_116, %c32_117, %c32_118] : memref<12x40x128xf32, #tpu.memory_space<vmem>>, vector<1x8x1xf32>
    %210 = vector.shape_cast %209 : vector<1x8x1xf32> to vector<8x1xf32>
    %cst_119 = arith.constant dense<0.000000e+00> : vector<8x128xf32>
    %211 = tpu.matmul %208, %206, %cst_119 {dimension_numbers = #tpu.dot_dimension_numbers<[1], [0], [0], [1], [0, 0, 1, 1], [], []>} : vector<8x32xf32>, vector<32x128xf32>, vector<8x128xf32> -> vector<8x128xf32>
    %212 = vector.broadcast %210 : vector<8x1xf32> to vector<8x128xf32>
    %213 = arith.addf %211, %212 : vector<8x128xf32>
    %214 = vector.extract_strided_slice %213 {offsets = [0, 0], sizes = [1, 128], strides = [1, 1]} : vector<8x128xf32> to vector<1x128xf32>
    %215 = math.tanh %214 : vector<1x128xf32>
    %216 = vector.extract_strided_slice %213 {offsets = [1, 0], sizes = [1, 128], strides = [1, 1]} : vector<8x128xf32> to vector<1x128xf32>
    %217 = math.exp %215 : vector<1x128xf32>
    %218 = arith.mulf %192, %217 : vector<1x128xf32>
    %219 = arith.addf %218, %216 : vector<1x128xf32>
    %c1_120 = arith.constant 1 : index
    %c0_121 = arith.constant 0 : index
    %c0_122 = arith.constant 0 : index
    %220 = vector.load %arg5[%c1_120, %c0_121, %c0_122] : memref<12x40x128xf32, #tpu.memory_space<vmem>>, vector<1x32x1xf32>
    %221 = vector.shape_cast %220 : vector<1x32x1xf32> to vector<32x1xf32>
    %c1_123 = arith.constant 1 : index
    %c0_124 = arith.constant 0 : index
    %c1_125 = arith.constant 1 : index
    %222 = vector.load %arg5[%c1_123, %c0_124, %c1_125] : memref<12x40x128xf32, #tpu.memory_space<vmem>>, vector<1x32x1xf32>
    %223 = vector.shape_cast %222 : vector<1x32x1xf32> to vector<32x1xf32>
    %224 = vector.broadcast %221 : vector<32x1xf32> to vector<32x128xf32>
    %225 = vector.broadcast %219 : vector<1x128xf32> to vector<32x128xf32>
    %226 = arith.mulf %224, %225 : vector<32x128xf32>
    %227 = vector.broadcast %223 : vector<32x1xf32> to vector<32x128xf32>
    %228 = arith.addf %226, %227 : vector<32x128xf32>
    %229 = math.tanh %228 : vector<32x128xf32>
    %c1_126 = arith.constant 1 : index
    %c32_127 = arith.constant 32 : index
    %c0_128 = arith.constant 0 : index
    %230 = vector.load %arg5[%c1_126, %c32_127, %c0_128] : memref<12x40x128xf32, #tpu.memory_space<vmem>>, vector<1x8x32xf32>
    %231 = vector.shape_cast %230 : vector<1x8x32xf32> to vector<8x32xf32>
    %c1_129 = arith.constant 1 : index
    %c32_130 = arith.constant 32 : index
    %c32_131 = arith.constant 32 : index
    %232 = vector.load %arg5[%c1_129, %c32_130, %c32_131] : memref<12x40x128xf32, #tpu.memory_space<vmem>>, vector<1x8x1xf32>
    %233 = vector.shape_cast %232 : vector<1x8x1xf32> to vector<8x1xf32>
    %cst_132 = arith.constant dense<0.000000e+00> : vector<8x128xf32>
    %234 = tpu.matmul %231, %229, %cst_132 {dimension_numbers = #tpu.dot_dimension_numbers<[1], [0], [0], [1], [0, 0, 1, 1], [], []>} : vector<8x32xf32>, vector<32x128xf32>, vector<8x128xf32> -> vector<8x128xf32>
    %235 = vector.broadcast %233 : vector<8x1xf32> to vector<8x128xf32>
    %236 = arith.addf %234, %235 : vector<8x128xf32>
    %237 = vector.extract_strided_slice %236 {offsets = [0, 0], sizes = [1, 128], strides = [1, 1]} : vector<8x128xf32> to vector<1x128xf32>
    %238 = math.tanh %237 : vector<1x128xf32>
    %239 = vector.extract_strided_slice %236 {offsets = [1, 0], sizes = [1, 128], strides = [1, 1]} : vector<8x128xf32> to vector<1x128xf32>
    %240 = math.exp %238 : vector<1x128xf32>
    %241 = arith.mulf %189, %240 : vector<1x128xf32>
    %242 = arith.addf %241, %239 : vector<1x128xf32>
    %243 = vector.extract_strided_slice %0 {offsets = [2, 0], sizes = [1, 128], strides = [1, 1]} : vector<10x128xf32> to vector<1x128xf32>
    %244 = arith.addf %243, %242 : vector<1x128xf32>
    %245 = vector.extract_strided_slice %0 {offsets = [3, 0], sizes = [1, 128], strides = [1, 1]} : vector<10x128xf32> to vector<1x128xf32>
    %246 = arith.addf %245, %219 : vector<1x128xf32>
    %247 = vector.extract_strided_slice %186 {offsets = [4, 0], sizes = [1, 128], strides = [1, 1]} : vector<5x128xf32> to vector<1x128xf32>
    %248 = arith.addf %194, %247 : vector<1x128xf32>
    %249 = vector.extract_strided_slice %165 {offsets = [0, 0], sizes = [1, 128], strides = [1, 1]} : vector<5x128xf32> to vector<1x128xf32>
    %250 = arith.addf %196, %249 : vector<1x128xf32>
    %c2_133 = arith.constant 2 : index
    %c0_134 = arith.constant 0 : index
    %c0_135 = arith.constant 0 : index
    %251 = vector.load %arg5[%c2_133, %c0_134, %c0_135] : memref<12x40x128xf32, #tpu.memory_space<vmem>>, vector<1x32x1xf32>
    %252 = vector.shape_cast %251 : vector<1x32x1xf32> to vector<32x1xf32>
    %c2_136 = arith.constant 2 : index
    %c0_137 = arith.constant 0 : index
    %c1_138 = arith.constant 1 : index
    %253 = vector.load %arg5[%c2_136, %c0_137, %c1_138] : memref<12x40x128xf32, #tpu.memory_space<vmem>>, vector<1x32x1xf32>
    %254 = vector.shape_cast %253 : vector<1x32x1xf32> to vector<32x1xf32>
    %255 = vector.broadcast %252 : vector<32x1xf32> to vector<32x128xf32>
    %256 = vector.broadcast %194 : vector<1x128xf32> to vector<32x128xf32>
    %257 = arith.mulf %255, %256 : vector<32x128xf32>
    %258 = vector.broadcast %254 : vector<32x1xf32> to vector<32x128xf32>
    %259 = arith.addf %257, %258 : vector<32x128xf32>
    %260 = math.tanh %259 : vector<32x128xf32>
    %c2_139 = arith.constant 2 : index
    %c32_140 = arith.constant 32 : index
    %c0_141 = arith.constant 0 : index
    %261 = vector.load %arg5[%c2_139, %c32_140, %c0_141] : memref<12x40x128xf32, #tpu.memory_space<vmem>>, vector<1x8x32xf32>
    %262 = vector.shape_cast %261 : vector<1x8x32xf32> to vector<8x32xf32>
    %c2_142 = arith.constant 2 : index
    %c32_143 = arith.constant 32 : index
    %c32_144 = arith.constant 32 : index
    %263 = vector.load %arg5[%c2_142, %c32_143, %c32_144] : memref<12x40x128xf32, #tpu.memory_space<vmem>>, vector<1x8x1xf32>
    %264 = vector.shape_cast %263 : vector<1x8x1xf32> to vector<8x1xf32>
    %cst_145 = arith.constant dense<0.000000e+00> : vector<8x128xf32>
    %265 = tpu.matmul %262, %260, %cst_145 {dimension_numbers = #tpu.dot_dimension_numbers<[1], [0], [0], [1], [0, 0, 1, 1], [], []>} : vector<8x32xf32>, vector<32x128xf32>, vector<8x128xf32> -> vector<8x128xf32>
    %266 = vector.broadcast %264 : vector<8x1xf32> to vector<8x128xf32>
    %267 = arith.addf %265, %266 : vector<8x128xf32>
    %268 = vector.extract_strided_slice %267 {offsets = [0, 0], sizes = [1, 128], strides = [1, 1]} : vector<8x128xf32> to vector<1x128xf32>
    %269 = math.tanh %268 : vector<1x128xf32>
    %270 = vector.extract_strided_slice %267 {offsets = [1, 0], sizes = [1, 128], strides = [1, 1]} : vector<8x128xf32> to vector<1x128xf32>
    %271 = math.exp %269 : vector<1x128xf32>
    %272 = arith.mulf %196, %271 : vector<1x128xf32>
    %273 = arith.addf %272, %270 : vector<1x128xf32>
    %c3_146 = arith.constant 3 : index
    %c0_147 = arith.constant 0 : index
    %c0_148 = arith.constant 0 : index
    %274 = vector.load %arg5[%c3_146, %c0_147, %c0_148] : memref<12x40x128xf32, #tpu.memory_space<vmem>>, vector<1x32x1xf32>
    %275 = vector.shape_cast %274 : vector<1x32x1xf32> to vector<32x1xf32>
    %c3_149 = arith.constant 3 : index
    %c0_150 = arith.constant 0 : index
    %c1_151 = arith.constant 1 : index
    %276 = vector.load %arg5[%c3_149, %c0_150, %c1_151] : memref<12x40x128xf32, #tpu.memory_space<vmem>>, vector<1x32x1xf32>
    %277 = vector.shape_cast %276 : vector<1x32x1xf32> to vector<32x1xf32>
    %278 = vector.broadcast %275 : vector<32x1xf32> to vector<32x128xf32>
    %279 = vector.broadcast %273 : vector<1x128xf32> to vector<32x128xf32>
    %280 = arith.mulf %278, %279 : vector<32x128xf32>
    %281 = vector.broadcast %277 : vector<32x1xf32> to vector<32x128xf32>
    %282 = arith.addf %280, %281 : vector<32x128xf32>
    %283 = math.tanh %282 : vector<32x128xf32>
    %c3_152 = arith.constant 3 : index
    %c32_153 = arith.constant 32 : index
    %c0_154 = arith.constant 0 : index
    %284 = vector.load %arg5[%c3_152, %c32_153, %c0_154] : memref<12x40x128xf32, #tpu.memory_space<vmem>>, vector<1x8x32xf32>
    %285 = vector.shape_cast %284 : vector<1x8x32xf32> to vector<8x32xf32>
    %c3_155 = arith.constant 3 : index
    %c32_156 = arith.constant 32 : index
    %c32_157 = arith.constant 32 : index
    %286 = vector.load %arg5[%c3_155, %c32_156, %c32_157] : memref<12x40x128xf32, #tpu.memory_space<vmem>>, vector<1x8x1xf32>
    %287 = vector.shape_cast %286 : vector<1x8x1xf32> to vector<8x1xf32>
    %cst_158 = arith.constant dense<0.000000e+00> : vector<8x128xf32>
    %288 = tpu.matmul %285, %283, %cst_158 {dimension_numbers = #tpu.dot_dimension_numbers<[1], [0], [0], [1], [0, 0, 1, 1], [], []>} : vector<8x32xf32>, vector<32x128xf32>, vector<8x128xf32> -> vector<8x128xf32>
    %289 = vector.broadcast %287 : vector<8x1xf32> to vector<8x128xf32>
    %290 = arith.addf %288, %289 : vector<8x128xf32>
    %291 = vector.extract_strided_slice %290 {offsets = [0, 0], sizes = [1, 128], strides = [1, 1]} : vector<8x128xf32> to vector<1x128xf32>
    %292 = math.tanh %291 : vector<1x128xf32>
    %293 = vector.extract_strided_slice %290 {offsets = [1, 0], sizes = [1, 128], strides = [1, 1]} : vector<8x128xf32> to vector<1x128xf32>
    %294 = math.exp %292 : vector<1x128xf32>
    %295 = arith.mulf %194, %294 : vector<1x128xf32>
    %296 = arith.addf %295, %293 : vector<1x128xf32>
    %297 = arith.addf %244, %296 : vector<1x128xf32>
    %298 = arith.addf %246, %273 : vector<1x128xf32>
    %c4_159 = arith.constant 4 : index
    %c0_160 = arith.constant 0 : index
    %c0_161 = arith.constant 0 : index
    %299 = vector.load %arg5[%c4_159, %c0_160, %c0_161] : memref<12x40x128xf32, #tpu.memory_space<vmem>>, vector<1x32x1xf32>
    %300 = vector.shape_cast %299 : vector<1x32x1xf32> to vector<32x1xf32>
    %c4_162 = arith.constant 4 : index
    %c0_163 = arith.constant 0 : index
    %c1_164 = arith.constant 1 : index
    %301 = vector.load %arg5[%c4_162, %c0_163, %c1_164] : memref<12x40x128xf32, #tpu.memory_space<vmem>>, vector<1x32x1xf32>
    %302 = vector.shape_cast %301 : vector<1x32x1xf32> to vector<32x1xf32>
    %303 = vector.broadcast %300 : vector<32x1xf32> to vector<32x128xf32>
    %304 = vector.broadcast %244 : vector<1x128xf32> to vector<32x128xf32>
    %305 = arith.mulf %303, %304 : vector<32x128xf32>
    %306 = vector.broadcast %302 : vector<32x1xf32> to vector<32x128xf32>
    %307 = arith.addf %305, %306 : vector<32x128xf32>
    %308 = math.tanh %307 : vector<32x128xf32>
    %c4_165 = arith.constant 4 : index
    %c32_166 = arith.constant 32 : index
    %c0_167 = arith.constant 0 : index
    %309 = vector.load %arg5[%c4_165, %c32_166, %c0_167] : memref<12x40x128xf32, #tpu.memory_space<vmem>>, vector<1x8x32xf32>
    %310 = vector.shape_cast %309 : vector<1x8x32xf32> to vector<8x32xf32>
    %c4_168 = arith.constant 4 : index
    %c32_169 = arith.constant 32 : index
    %c32_170 = arith.constant 32 : index
    %311 = vector.load %arg5[%c4_168, %c32_169, %c32_170] : memref<12x40x128xf32, #tpu.memory_space<vmem>>, vector<1x8x1xf32>
    %312 = vector.shape_cast %311 : vector<1x8x1xf32> to vector<8x1xf32>
    %cst_171 = arith.constant dense<0.000000e+00> : vector<8x128xf32>
    %313 = tpu.matmul %310, %308, %cst_171 {dimension_numbers = #tpu.dot_dimension_numbers<[1], [0], [0], [1], [0, 0, 1, 1], [], []>} : vector<8x32xf32>, vector<32x128xf32>, vector<8x128xf32> -> vector<8x128xf32>
    %314 = vector.broadcast %312 : vector<8x1xf32> to vector<8x128xf32>
    %315 = arith.addf %313, %314 : vector<8x128xf32>
    %316 = vector.extract_strided_slice %315 {offsets = [0, 0], sizes = [1, 128], strides = [1, 1]} : vector<8x128xf32> to vector<1x128xf32>
    %317 = math.tanh %316 : vector<1x128xf32>
    %318 = vector.extract_strided_slice %315 {offsets = [1, 0], sizes = [1, 128], strides = [1, 1]} : vector<8x128xf32> to vector<1x128xf32>
    %319 = math.exp %317 : vector<1x128xf32>
    %320 = arith.mulf %246, %319 : vector<1x128xf32>
    %321 = arith.addf %320, %318 : vector<1x128xf32>
    %c5_172 = arith.constant 5 : index
    %c0_173 = arith.constant 0 : index
    %c0_174 = arith.constant 0 : index
    %322 = vector.load %arg5[%c5_172, %c0_173, %c0_174] : memref<12x40x128xf32, #tpu.memory_space<vmem>>, vector<1x32x1xf32>
    %323 = vector.shape_cast %322 : vector<1x32x1xf32> to vector<32x1xf32>
    %c5_175 = arith.constant 5 : index
    %c0_176 = arith.constant 0 : index
    %c1_177 = arith.constant 1 : index
    %324 = vector.load %arg5[%c5_175, %c0_176, %c1_177] : memref<12x40x128xf32, #tpu.memory_space<vmem>>, vector<1x32x1xf32>
    %325 = vector.shape_cast %324 : vector<1x32x1xf32> to vector<32x1xf32>
    %326 = vector.broadcast %323 : vector<32x1xf32> to vector<32x128xf32>
    %327 = vector.broadcast %321 : vector<1x128xf32> to vector<32x128xf32>
    %328 = arith.mulf %326, %327 : vector<32x128xf32>
    %329 = vector.broadcast %325 : vector<32x1xf32> to vector<32x128xf32>
    %330 = arith.addf %328, %329 : vector<32x128xf32>
    %331 = math.tanh %330 : vector<32x128xf32>
    %c5_178 = arith.constant 5 : index
    %c32_179 = arith.constant 32 : index
    %c0_180 = arith.constant 0 : index
    %332 = vector.load %arg5[%c5_178, %c32_179, %c0_180] : memref<12x40x128xf32, #tpu.memory_space<vmem>>, vector<1x8x32xf32>
    %333 = vector.shape_cast %332 : vector<1x8x32xf32> to vector<8x32xf32>
    %c5_181 = arith.constant 5 : index
    %c32_182 = arith.constant 32 : index
    %c32_183 = arith.constant 32 : index
    %334 = vector.load %arg5[%c5_181, %c32_182, %c32_183] : memref<12x40x128xf32, #tpu.memory_space<vmem>>, vector<1x8x1xf32>
    %335 = vector.shape_cast %334 : vector<1x8x1xf32> to vector<8x1xf32>
    %cst_184 = arith.constant dense<0.000000e+00> : vector<8x128xf32>
    %336 = tpu.matmul %333, %331, %cst_184 {dimension_numbers = #tpu.dot_dimension_numbers<[1], [0], [0], [1], [0, 0, 1, 1], [], []>} : vector<8x32xf32>, vector<32x128xf32>, vector<8x128xf32> -> vector<8x128xf32>
    %337 = vector.broadcast %335 : vector<8x1xf32> to vector<8x128xf32>
    %338 = arith.addf %336, %337 : vector<8x128xf32>
    %339 = vector.extract_strided_slice %338 {offsets = [0, 0], sizes = [1, 128], strides = [1, 1]} : vector<8x128xf32> to vector<1x128xf32>
    %340 = math.tanh %339 : vector<1x128xf32>
    %341 = vector.extract_strided_slice %338 {offsets = [1, 0], sizes = [1, 128], strides = [1, 1]} : vector<8x128xf32> to vector<1x128xf32>
    %342 = math.exp %340 : vector<1x128xf32>
    %343 = arith.mulf %244, %342 : vector<1x128xf32>
    %344 = arith.addf %343, %341 : vector<1x128xf32>
    %345 = vector.extract_strided_slice %0 {offsets = [4, 0], sizes = [1, 128], strides = [1, 1]} : vector<10x128xf32> to vector<1x128xf32>
    %346 = arith.addf %345, %344 : vector<1x128xf32>
    %347 = vector.extract_strided_slice %0 {offsets = [5, 0], sizes = [1, 128], strides = [1, 1]} : vector<10x128xf32> to vector<1x128xf32>
    %348 = arith.addf %347, %321 : vector<1x128xf32>
    %349 = vector.extract_strided_slice %165 {offsets = [1, 0], sizes = [1, 128], strides = [1, 1]} : vector<5x128xf32> to vector<1x128xf32>
    %350 = arith.addf %248, %349 : vector<1x128xf32>
    %351 = vector.extract_strided_slice %165 {offsets = [2, 0], sizes = [1, 128], strides = [1, 1]} : vector<5x128xf32> to vector<1x128xf32>
    %352 = arith.addf %250, %351 : vector<1x128xf32>
    %c6_185 = arith.constant 6 : index
    %c0_186 = arith.constant 0 : index
    %c0_187 = arith.constant 0 : index
    %353 = vector.load %arg5[%c6_185, %c0_186, %c0_187] : memref<12x40x128xf32, #tpu.memory_space<vmem>>, vector<1x32x1xf32>
    %354 = vector.shape_cast %353 : vector<1x32x1xf32> to vector<32x1xf32>
    %c6_188 = arith.constant 6 : index
    %c0_189 = arith.constant 0 : index
    %c1_190 = arith.constant 1 : index
    %355 = vector.load %arg5[%c6_188, %c0_189, %c1_190] : memref<12x40x128xf32, #tpu.memory_space<vmem>>, vector<1x32x1xf32>
    %356 = vector.shape_cast %355 : vector<1x32x1xf32> to vector<32x1xf32>
    %357 = vector.broadcast %354 : vector<32x1xf32> to vector<32x128xf32>
    %358 = vector.broadcast %248 : vector<1x128xf32> to vector<32x128xf32>
    %359 = arith.mulf %357, %358 : vector<32x128xf32>
    %360 = vector.broadcast %356 : vector<32x1xf32> to vector<32x128xf32>
    %361 = arith.addf %359, %360 : vector<32x128xf32>
    %362 = math.tanh %361 : vector<32x128xf32>
    %c6_191 = arith.constant 6 : index
    %c32_192 = arith.constant 32 : index
    %c0_193 = arith.constant 0 : index
    %363 = vector.load %arg5[%c6_191, %c32_192, %c0_193] : memref<12x40x128xf32, #tpu.memory_space<vmem>>, vector<1x8x32xf32>
    %364 = vector.shape_cast %363 : vector<1x8x32xf32> to vector<8x32xf32>
    %c6_194 = arith.constant 6 : index
    %c32_195 = arith.constant 32 : index
    %c32_196 = arith.constant 32 : index
    %365 = vector.load %arg5[%c6_194, %c32_195, %c32_196] : memref<12x40x128xf32, #tpu.memory_space<vmem>>, vector<1x8x1xf32>
    %366 = vector.shape_cast %365 : vector<1x8x1xf32> to vector<8x1xf32>
    %cst_197 = arith.constant dense<0.000000e+00> : vector<8x128xf32>
    %367 = tpu.matmul %364, %362, %cst_197 {dimension_numbers = #tpu.dot_dimension_numbers<[1], [0], [0], [1], [0, 0, 1, 1], [], []>} : vector<8x32xf32>, vector<32x128xf32>, vector<8x128xf32> -> vector<8x128xf32>
    %368 = vector.broadcast %366 : vector<8x1xf32> to vector<8x128xf32>
    %369 = arith.addf %367, %368 : vector<8x128xf32>
    %370 = vector.extract_strided_slice %369 {offsets = [0, 0], sizes = [1, 128], strides = [1, 1]} : vector<8x128xf32> to vector<1x128xf32>
    %371 = math.tanh %370 : vector<1x128xf32>
    %372 = vector.extract_strided_slice %369 {offsets = [1, 0], sizes = [1, 128], strides = [1, 1]} : vector<8x128xf32> to vector<1x128xf32>
    %373 = math.exp %371 : vector<1x128xf32>
    %374 = arith.mulf %250, %373 : vector<1x128xf32>
    %375 = arith.addf %374, %372 : vector<1x128xf32>
    %c7_198 = arith.constant 7 : index
    %c0_199 = arith.constant 0 : index
    %c0_200 = arith.constant 0 : index
    %376 = vector.load %arg5[%c7_198, %c0_199, %c0_200] : memref<12x40x128xf32, #tpu.memory_space<vmem>>, vector<1x32x1xf32>
    %377 = vector.shape_cast %376 : vector<1x32x1xf32> to vector<32x1xf32>
    %c7_201 = arith.constant 7 : index
    %c0_202 = arith.constant 0 : index
    %c1_203 = arith.constant 1 : index
    %378 = vector.load %arg5[%c7_201, %c0_202, %c1_203] : memref<12x40x128xf32, #tpu.memory_space<vmem>>, vector<1x32x1xf32>
    %379 = vector.shape_cast %378 : vector<1x32x1xf32> to vector<32x1xf32>
    %380 = vector.broadcast %377 : vector<32x1xf32> to vector<32x128xf32>
    %381 = vector.broadcast %375 : vector<1x128xf32> to vector<32x128xf32>
    %382 = arith.mulf %380, %381 : vector<32x128xf32>
    %383 = vector.broadcast %379 : vector<32x1xf32> to vector<32x128xf32>
    %384 = arith.addf %382, %383 : vector<32x128xf32>
    %385 = math.tanh %384 : vector<32x128xf32>
    %c7_204 = arith.constant 7 : index
    %c32_205 = arith.constant 32 : index
    %c0_206 = arith.constant 0 : index
    %386 = vector.load %arg5[%c7_204, %c32_205, %c0_206] : memref<12x40x128xf32, #tpu.memory_space<vmem>>, vector<1x8x32xf32>
    %387 = vector.shape_cast %386 : vector<1x8x32xf32> to vector<8x32xf32>
    %c7_207 = arith.constant 7 : index
    %c32_208 = arith.constant 32 : index
    %c32_209 = arith.constant 32 : index
    %388 = vector.load %arg5[%c7_207, %c32_208, %c32_209] : memref<12x40x128xf32, #tpu.memory_space<vmem>>, vector<1x8x1xf32>
    %389 = vector.shape_cast %388 : vector<1x8x1xf32> to vector<8x1xf32>
    %cst_210 = arith.constant dense<0.000000e+00> : vector<8x128xf32>
    %390 = tpu.matmul %387, %385, %cst_210 {dimension_numbers = #tpu.dot_dimension_numbers<[1], [0], [0], [1], [0, 0, 1, 1], [], []>} : vector<8x32xf32>, vector<32x128xf32>, vector<8x128xf32> -> vector<8x128xf32>
    %391 = vector.broadcast %389 : vector<8x1xf32> to vector<8x128xf32>
    %392 = arith.addf %390, %391 : vector<8x128xf32>
    %393 = vector.extract_strided_slice %392 {offsets = [0, 0], sizes = [1, 128], strides = [1, 1]} : vector<8x128xf32> to vector<1x128xf32>
    %394 = math.tanh %393 : vector<1x128xf32>
    %395 = vector.extract_strided_slice %392 {offsets = [1, 0], sizes = [1, 128], strides = [1, 1]} : vector<8x128xf32> to vector<1x128xf32>
    %396 = math.exp %394 : vector<1x128xf32>
    %397 = arith.mulf %248, %396 : vector<1x128xf32>
    %398 = arith.addf %397, %395 : vector<1x128xf32>
    %399 = arith.addf %297, %398 : vector<1x128xf32>
    %400 = arith.addf %298, %375 : vector<1x128xf32>
    %c10 = arith.constant 10 : index
    %c0_211 = arith.constant 0 : index
    %c0_212 = arith.constant 0 : index
    %401 = vector.load %arg5[%c10, %c0_211, %c0_212] : memref<12x40x128xf32, #tpu.memory_space<vmem>>, vector<1x32x1xf32>
    %402 = vector.shape_cast %401 : vector<1x32x1xf32> to vector<32x1xf32>
    %c10_213 = arith.constant 10 : index
    %c0_214 = arith.constant 0 : index
    %c1_215 = arith.constant 1 : index
    %403 = vector.load %arg5[%c10_213, %c0_214, %c1_215] : memref<12x40x128xf32, #tpu.memory_space<vmem>>, vector<1x32x1xf32>
    %404 = vector.shape_cast %403 : vector<1x32x1xf32> to vector<32x1xf32>
    %405 = vector.broadcast %402 : vector<32x1xf32> to vector<32x128xf32>
    %406 = vector.broadcast %350 : vector<1x128xf32> to vector<32x128xf32>
    %407 = arith.mulf %405, %406 : vector<32x128xf32>
    %408 = vector.broadcast %404 : vector<32x1xf32> to vector<32x128xf32>
    %409 = arith.addf %407, %408 : vector<32x128xf32>
    %410 = math.tanh %409 : vector<32x128xf32>
    %c10_216 = arith.constant 10 : index
    %c32_217 = arith.constant 32 : index
    %c0_218 = arith.constant 0 : index
    %411 = vector.load %arg5[%c10_216, %c32_217, %c0_218] : memref<12x40x128xf32, #tpu.memory_space<vmem>>, vector<1x8x32xf32>
    %412 = vector.shape_cast %411 : vector<1x8x32xf32> to vector<8x32xf32>
    %c10_219 = arith.constant 10 : index
    %c32_220 = arith.constant 32 : index
    %c32_221 = arith.constant 32 : index
    %413 = vector.load %arg5[%c10_219, %c32_220, %c32_221] : memref<12x40x128xf32, #tpu.memory_space<vmem>>, vector<1x8x1xf32>
    %414 = vector.shape_cast %413 : vector<1x8x1xf32> to vector<8x1xf32>
    %cst_222 = arith.constant dense<0.000000e+00> : vector<8x128xf32>
    %415 = tpu.matmul %412, %410, %cst_222 {dimension_numbers = #tpu.dot_dimension_numbers<[1], [0], [0], [1], [0, 0, 1, 1], [], []>} : vector<8x32xf32>, vector<32x128xf32>, vector<8x128xf32> -> vector<8x128xf32>
    %416 = vector.broadcast %414 : vector<8x1xf32> to vector<8x128xf32>
    %417 = arith.addf %415, %416 : vector<8x128xf32>
    %418 = vector.extract_strided_slice %417 {offsets = [0, 0], sizes = [1, 128], strides = [1, 1]} : vector<8x128xf32> to vector<1x128xf32>
    %419 = math.tanh %418 : vector<1x128xf32>
    %420 = vector.extract_strided_slice %417 {offsets = [1, 0], sizes = [1, 128], strides = [1, 1]} : vector<8x128xf32> to vector<1x128xf32>
    %421 = math.exp %419 : vector<1x128xf32>
    %422 = arith.mulf %352, %421 : vector<1x128xf32>
    %423 = arith.addf %422, %420 : vector<1x128xf32>
    %c11 = arith.constant 11 : index
    %c0_223 = arith.constant 0 : index
    %c0_224 = arith.constant 0 : index
    %424 = vector.load %arg5[%c11, %c0_223, %c0_224] : memref<12x40x128xf32, #tpu.memory_space<vmem>>, vector<1x32x1xf32>
    %425 = vector.shape_cast %424 : vector<1x32x1xf32> to vector<32x1xf32>
    %c11_225 = arith.constant 11 : index
    %c0_226 = arith.constant 0 : index
    %c1_227 = arith.constant 1 : index
    %426 = vector.load %arg5[%c11_225, %c0_226, %c1_227] : memref<12x40x128xf32, #tpu.memory_space<vmem>>, vector<1x32x1xf32>
    %427 = vector.shape_cast %426 : vector<1x32x1xf32> to vector<32x1xf32>
    %428 = vector.broadcast %425 : vector<32x1xf32> to vector<32x128xf32>
    %429 = vector.broadcast %423 : vector<1x128xf32> to vector<32x128xf32>
    %430 = arith.mulf %428, %429 : vector<32x128xf32>
    %431 = vector.broadcast %427 : vector<32x1xf32> to vector<32x128xf32>
    %432 = arith.addf %430, %431 : vector<32x128xf32>
    %433 = math.tanh %432 : vector<32x128xf32>
    %c11_228 = arith.constant 11 : index
    %c32_229 = arith.constant 32 : index
    %c0_230 = arith.constant 0 : index
    %434 = vector.load %arg5[%c11_228, %c32_229, %c0_230] : memref<12x40x128xf32, #tpu.memory_space<vmem>>, vector<1x8x32xf32>
    %435 = vector.shape_cast %434 : vector<1x8x32xf32> to vector<8x32xf32>
    %c11_231 = arith.constant 11 : index
    %c32_232 = arith.constant 32 : index
    %c32_233 = arith.constant 32 : index
    %436 = vector.load %arg5[%c11_231, %c32_232, %c32_233] : memref<12x40x128xf32, #tpu.memory_space<vmem>>, vector<1x8x1xf32>
    %437 = vector.shape_cast %436 : vector<1x8x1xf32> to vector<8x1xf32>
    %cst_234 = arith.constant dense<0.000000e+00> : vector<8x128xf32>
    %438 = tpu.matmul %435, %433, %cst_234 {dimension_numbers = #tpu.dot_dimension_numbers<[1], [0], [0], [1], [0, 0, 1, 1], [], []>} : vector<8x32xf32>, vector<32x128xf32>, vector<8x128xf32> -> vector<8x128xf32>
    %439 = vector.broadcast %437 : vector<8x1xf32> to vector<8x128xf32>
    %440 = arith.addf %438, %439 : vector<8x128xf32>
    %441 = vector.extract_strided_slice %440 {offsets = [0, 0], sizes = [1, 128], strides = [1, 1]} : vector<8x128xf32> to vector<1x128xf32>
    %442 = math.tanh %441 : vector<1x128xf32>
    %443 = vector.extract_strided_slice %440 {offsets = [1, 0], sizes = [1, 128], strides = [1, 1]} : vector<8x128xf32> to vector<1x128xf32>
    %444 = math.exp %442 : vector<1x128xf32>
    %445 = arith.mulf %350, %444 : vector<1x128xf32>
    %446 = arith.addf %445, %443 : vector<1x128xf32>
    %c8 = arith.constant 8 : index
    %c0_235 = arith.constant 0 : index
    %c0_236 = arith.constant 0 : index
    %447 = vector.load %arg5[%c8, %c0_235, %c0_236] : memref<12x40x128xf32, #tpu.memory_space<vmem>>, vector<1x32x1xf32>
    %448 = vector.shape_cast %447 : vector<1x32x1xf32> to vector<32x1xf32>
    %c8_237 = arith.constant 8 : index
    %c0_238 = arith.constant 0 : index
    %c1_239 = arith.constant 1 : index
    %449 = vector.load %arg5[%c8_237, %c0_238, %c1_239] : memref<12x40x128xf32, #tpu.memory_space<vmem>>, vector<1x32x1xf32>
    %450 = vector.shape_cast %449 : vector<1x32x1xf32> to vector<32x1xf32>
    %451 = vector.broadcast %448 : vector<32x1xf32> to vector<32x128xf32>
    %452 = vector.broadcast %399 : vector<1x128xf32> to vector<32x128xf32>
    %453 = arith.mulf %451, %452 : vector<32x128xf32>
    %454 = vector.broadcast %450 : vector<32x1xf32> to vector<32x128xf32>
    %455 = arith.addf %453, %454 : vector<32x128xf32>
    %456 = math.tanh %455 : vector<32x128xf32>
    %c8_240 = arith.constant 8 : index
    %c32_241 = arith.constant 32 : index
    %c0_242 = arith.constant 0 : index
    %457 = vector.load %arg5[%c8_240, %c32_241, %c0_242] : memref<12x40x128xf32, #tpu.memory_space<vmem>>, vector<1x8x32xf32>
    %458 = vector.shape_cast %457 : vector<1x8x32xf32> to vector<8x32xf32>
    %c8_243 = arith.constant 8 : index
    %c32_244 = arith.constant 32 : index
    %c32_245 = arith.constant 32 : index
    %459 = vector.load %arg5[%c8_243, %c32_244, %c32_245] : memref<12x40x128xf32, #tpu.memory_space<vmem>>, vector<1x8x1xf32>
    %460 = vector.shape_cast %459 : vector<1x8x1xf32> to vector<8x1xf32>
    %cst_246 = arith.constant dense<0.000000e+00> : vector<8x128xf32>
    %461 = tpu.matmul %458, %456, %cst_246 {dimension_numbers = #tpu.dot_dimension_numbers<[1], [0], [0], [1], [0, 0, 1, 1], [], []>} : vector<8x32xf32>, vector<32x128xf32>, vector<8x128xf32> -> vector<8x128xf32>
    %462 = vector.broadcast %460 : vector<8x1xf32> to vector<8x128xf32>
    %463 = arith.addf %461, %462 : vector<8x128xf32>
    %464 = vector.extract_strided_slice %463 {offsets = [0, 0], sizes = [1, 128], strides = [1, 1]} : vector<8x128xf32> to vector<1x128xf32>
    %465 = math.tanh %464 : vector<1x128xf32>
    %466 = vector.extract_strided_slice %463 {offsets = [1, 0], sizes = [1, 128], strides = [1, 1]} : vector<8x128xf32> to vector<1x128xf32>
    %467 = math.exp %465 : vector<1x128xf32>
    %468 = arith.mulf %400, %467 : vector<1x128xf32>
    %469 = arith.addf %468, %466 : vector<1x128xf32>
    %c9 = arith.constant 9 : index
    %c0_247 = arith.constant 0 : index
    %c0_248 = arith.constant 0 : index
    %470 = vector.load %arg5[%c9, %c0_247, %c0_248] : memref<12x40x128xf32, #tpu.memory_space<vmem>>, vector<1x32x1xf32>
    %471 = vector.shape_cast %470 : vector<1x32x1xf32> to vector<32x1xf32>
    %c9_249 = arith.constant 9 : index
    %c0_250 = arith.constant 0 : index
    %c1_251 = arith.constant 1 : index
    %472 = vector.load %arg5[%c9_249, %c0_250, %c1_251] : memref<12x40x128xf32, #tpu.memory_space<vmem>>, vector<1x32x1xf32>
    %473 = vector.shape_cast %472 : vector<1x32x1xf32> to vector<32x1xf32>
    %474 = vector.broadcast %471 : vector<32x1xf32> to vector<32x128xf32>
    %475 = vector.broadcast %469 : vector<1x128xf32> to vector<32x128xf32>
    %476 = arith.mulf %474, %475 : vector<32x128xf32>
    %477 = vector.broadcast %473 : vector<32x1xf32> to vector<32x128xf32>
    %478 = arith.addf %476, %477 : vector<32x128xf32>
    %479 = math.tanh %478 : vector<32x128xf32>
    %c9_252 = arith.constant 9 : index
    %c32_253 = arith.constant 32 : index
    %c0_254 = arith.constant 0 : index
    %480 = vector.load %arg5[%c9_252, %c32_253, %c0_254] : memref<12x40x128xf32, #tpu.memory_space<vmem>>, vector<1x8x32xf32>
    %481 = vector.shape_cast %480 : vector<1x8x32xf32> to vector<8x32xf32>
    %c9_255 = arith.constant 9 : index
    %c32_256 = arith.constant 32 : index
    %c32_257 = arith.constant 32 : index
    %482 = vector.load %arg5[%c9_255, %c32_256, %c32_257] : memref<12x40x128xf32, #tpu.memory_space<vmem>>, vector<1x8x1xf32>
    %483 = vector.shape_cast %482 : vector<1x8x1xf32> to vector<8x1xf32>
    %cst_258 = arith.constant dense<0.000000e+00> : vector<8x128xf32>
    %484 = tpu.matmul %481, %479, %cst_258 {dimension_numbers = #tpu.dot_dimension_numbers<[1], [0], [0], [1], [0, 0, 1, 1], [], []>} : vector<8x32xf32>, vector<32x128xf32>, vector<8x128xf32> -> vector<8x128xf32>
    %485 = vector.broadcast %483 : vector<8x1xf32> to vector<8x128xf32>
    %486 = arith.addf %484, %485 : vector<8x128xf32>
    %487 = vector.extract_strided_slice %486 {offsets = [0, 0], sizes = [1, 128], strides = [1, 1]} : vector<8x128xf32> to vector<1x128xf32>
    %488 = math.tanh %487 : vector<1x128xf32>
    %489 = vector.extract_strided_slice %486 {offsets = [1, 0], sizes = [1, 128], strides = [1, 1]} : vector<8x128xf32> to vector<1x128xf32>
    %490 = math.exp %488 : vector<1x128xf32>
    %491 = arith.mulf %399, %490 : vector<1x128xf32>
    %492 = arith.addf %491, %489 : vector<1x128xf32>
    %493 = tpu.concatenate %297, %298 in 0 : vector<1x128xf32>, vector<1x128xf32> -> vector<2x128xf32>
    %494 = tpu.concatenate %346, %348 in 0 : vector<1x128xf32>, vector<1x128xf32> -> vector<2x128xf32>
    %c0_259 = arith.constant 0 : index
    %c0_260 = arith.constant 0 : index
    %c0_261 = arith.constant 0 : index
    %495 = vector.load %arg6[%c0_259, %c0_260, %c0_261] : memref<2x40x128xf32, #tpu.memory_space<vmem>>, vector<1x32x2xf32>
    %496 = vector.shape_cast %495 : vector<1x32x2xf32> to vector<32x2xf32>
    %c0_262 = arith.constant 0 : index
    %c0_263 = arith.constant 0 : index
    %c2_264 = arith.constant 2 : index
    %497 = vector.load %arg6[%c0_262, %c0_263, %c2_264] : memref<2x40x128xf32, #tpu.memory_space<vmem>>, vector<1x32x1xf32>
    %498 = vector.shape_cast %497 : vector<1x32x1xf32> to vector<32x1xf32>
    %cst_265 = arith.constant dense<0.000000e+00> : vector<32x128xf32>
    %499 = tpu.matmul %496, %493, %cst_265 {dimension_numbers = #tpu.dot_dimension_numbers<[1], [0], [0], [1], [0, 0, 1, 1], [], []>} : vector<32x2xf32>, vector<2x128xf32>, vector<32x128xf32> -> vector<32x128xf32>
    %500 = vector.broadcast %498 : vector<32x1xf32> to vector<32x128xf32>
    %501 = arith.addf %499, %500 : vector<32x128xf32>
    %502 = math.tanh %501 : vector<32x128xf32>
    %c0_266 = arith.constant 0 : index
    %c32_267 = arith.constant 32 : index
    %c0_268 = arith.constant 0 : index
    %503 = vector.load %arg6[%c0_266, %c32_267, %c0_268] : memref<2x40x128xf32, #tpu.memory_space<vmem>>, vector<1x8x32xf32>
    %504 = vector.shape_cast %503 : vector<1x8x32xf32> to vector<8x32xf32>
    %c0_269 = arith.constant 0 : index
    %c32_270 = arith.constant 32 : index
    %c32_271 = arith.constant 32 : index
    %505 = vector.load %arg6[%c0_269, %c32_270, %c32_271] : memref<2x40x128xf32, #tpu.memory_space<vmem>>, vector<1x8x1xf32>
    %506 = vector.shape_cast %505 : vector<1x8x1xf32> to vector<8x1xf32>
    %cst_272 = arith.constant dense<0.000000e+00> : vector<8x128xf32>
    %507 = tpu.matmul %504, %502, %cst_272 {dimension_numbers = #tpu.dot_dimension_numbers<[1], [0], [0], [1], [0, 0, 1, 1], [], []>} : vector<8x32xf32>, vector<32x128xf32>, vector<8x128xf32> -> vector<8x128xf32>
    %508 = vector.broadcast %506 : vector<8x1xf32> to vector<8x128xf32>
    %509 = arith.addf %507, %508 : vector<8x128xf32>
    %510 = vector.extract_strided_slice %509 {offsets = [0, 0], sizes = [2, 128], strides = [1, 1]} : vector<8x128xf32> to vector<2x128xf32>
    %511 = math.tanh %510 : vector<2x128xf32>
    %512 = vector.extract_strided_slice %509 {offsets = [2, 0], sizes = [2, 128], strides = [1, 1]} : vector<8x128xf32> to vector<2x128xf32>
    %513 = math.exp %511 : vector<2x128xf32>
    %514 = arith.mulf %494, %513 : vector<2x128xf32>
    %515 = arith.addf %514, %512 : vector<2x128xf32>
    %c1_273 = arith.constant 1 : index
    %c0_274 = arith.constant 0 : index
    %c0_275 = arith.constant 0 : index
    %516 = vector.load %arg6[%c1_273, %c0_274, %c0_275] : memref<2x40x128xf32, #tpu.memory_space<vmem>>, vector<1x32x2xf32>
    %517 = vector.shape_cast %516 : vector<1x32x2xf32> to vector<32x2xf32>
    %c1_276 = arith.constant 1 : index
    %c0_277 = arith.constant 0 : index
    %c2_278 = arith.constant 2 : index
    %518 = vector.load %arg6[%c1_276, %c0_277, %c2_278] : memref<2x40x128xf32, #tpu.memory_space<vmem>>, vector<1x32x1xf32>
    %519 = vector.shape_cast %518 : vector<1x32x1xf32> to vector<32x1xf32>
    %cst_279 = arith.constant dense<0.000000e+00> : vector<32x128xf32>
    %520 = tpu.matmul %517, %515, %cst_279 {dimension_numbers = #tpu.dot_dimension_numbers<[1], [0], [0], [1], [0, 0, 1, 1], [], []>} : vector<32x2xf32>, vector<2x128xf32>, vector<32x128xf32> -> vector<32x128xf32>
    %521 = vector.broadcast %519 : vector<32x1xf32> to vector<32x128xf32>
    %522 = arith.addf %520, %521 : vector<32x128xf32>
    %523 = math.tanh %522 : vector<32x128xf32>
    %c1_280 = arith.constant 1 : index
    %c32_281 = arith.constant 32 : index
    %c0_282 = arith.constant 0 : index
    %524 = vector.load %arg6[%c1_280, %c32_281, %c0_282] : memref<2x40x128xf32, #tpu.memory_space<vmem>>, vector<1x8x32xf32>
    %525 = vector.shape_cast %524 : vector<1x8x32xf32> to vector<8x32xf32>
    %c1_283 = arith.constant 1 : index
    %c32_284 = arith.constant 32 : index
    %c32_285 = arith.constant 32 : index
    %526 = vector.load %arg6[%c1_283, %c32_284, %c32_285] : memref<2x40x128xf32, #tpu.memory_space<vmem>>, vector<1x8x1xf32>
    %527 = vector.shape_cast %526 : vector<1x8x1xf32> to vector<8x1xf32>
    %cst_286 = arith.constant dense<0.000000e+00> : vector<8x128xf32>
    %528 = tpu.matmul %525, %523, %cst_286 {dimension_numbers = #tpu.dot_dimension_numbers<[1], [0], [0], [1], [0, 0, 1, 1], [], []>} : vector<8x32xf32>, vector<32x128xf32>, vector<8x128xf32> -> vector<8x128xf32>
    %529 = vector.broadcast %527 : vector<8x1xf32> to vector<8x128xf32>
    %530 = arith.addf %528, %529 : vector<8x128xf32>
    %531 = vector.extract_strided_slice %530 {offsets = [0, 0], sizes = [2, 128], strides = [1, 1]} : vector<8x128xf32> to vector<2x128xf32>
    %532 = math.tanh %531 : vector<2x128xf32>
    %533 = vector.extract_strided_slice %530 {offsets = [2, 0], sizes = [2, 128], strides = [1, 1]} : vector<8x128xf32> to vector<2x128xf32>
    %534 = math.exp %532 : vector<2x128xf32>
    %535 = arith.mulf %493, %534 : vector<2x128xf32>
    %536 = arith.addf %535, %533 : vector<2x128xf32>
    %537 = vector.extract_strided_slice %165 {offsets = [3, 0], sizes = [1, 128], strides = [1, 1]} : vector<5x128xf32> to vector<1x128xf32>
    %538 = arith.addf %350, %537 : vector<1x128xf32>
    %c0_287 = arith.constant 0 : index
    %c0_288 = arith.constant 0 : index
    %539 = vector.load %arg7[%c0_287, %c0_288] : memref<10x128xf32, #tpu.memory_space<vmem>>, vector<1x128xf32>
    tpu.vector_store %arg7[%c0_287, %c0_288], %538 {strides = array<i32>} : memref<10x128xf32, #tpu.memory_space<vmem>>, vector<1x128xf32>,
    %540 = vector.extract_strided_slice %165 {offsets = [4, 0], sizes = [1, 128], strides = [1, 1]} : vector<5x128xf32> to vector<1x128xf32>
    %541 = arith.addf %352, %540 : vector<1x128xf32>
    %c1_289 = arith.constant 1 : index
    %c0_290 = arith.constant 0 : index
    %542 = vector.load %arg7[%c1_289, %c0_290] : memref<10x128xf32, #tpu.memory_space<vmem>>, vector<1x128xf32>
    tpu.vector_store %arg7[%c1_289, %c0_290], %541 {strides = array<i32>} : memref<10x128xf32, #tpu.memory_space<vmem>>, vector<1x128xf32>,
    %543 = arith.addf %399, %446 : vector<1x128xf32>
    %c2_291 = arith.constant 2 : index
    %c0_292 = arith.constant 0 : index
    %544 = vector.load %arg7[%c2_291, %c0_292] : memref<10x128xf32, #tpu.memory_space<vmem>>, vector<1x128xf32>
    tpu.vector_store %arg7[%c2_291, %c0_292], %543 {strides = array<i32>} : memref<10x128xf32, #tpu.memory_space<vmem>>, vector<1x128xf32>,
    %545 = arith.addf %400, %423 : vector<1x128xf32>
    %c3_293 = arith.constant 3 : index
    %c0_294 = arith.constant 0 : index
    %546 = vector.load %arg7[%c3_293, %c0_294] : memref<10x128xf32, #tpu.memory_space<vmem>>, vector<1x128xf32>
    tpu.vector_store %arg7[%c3_293, %c0_294], %545 {strides = array<i32>} : memref<10x128xf32, #tpu.memory_space<vmem>>, vector<1x128xf32>,
    %547 = arith.addf %346, %492 : vector<1x128xf32>
    %c4_295 = arith.constant 4 : index
    %c0_296 = arith.constant 0 : index
    %548 = vector.load %arg7[%c4_295, %c0_296] : memref<10x128xf32, #tpu.memory_space<vmem>>, vector<1x128xf32>
    tpu.vector_store %arg7[%c4_295, %c0_296], %547 {strides = array<i32>} : memref<10x128xf32, #tpu.memory_space<vmem>>, vector<1x128xf32>,
    %549 = arith.addf %348, %469 : vector<1x128xf32>
    %c5_297 = arith.constant 5 : index
    %c0_298 = arith.constant 0 : index
    %550 = vector.load %arg7[%c5_297, %c0_298] : memref<10x128xf32, #tpu.memory_space<vmem>>, vector<1x128xf32>
    tpu.vector_store %arg7[%c5_297, %c0_298], %549 {strides = array<i32>} : memref<10x128xf32, #tpu.memory_space<vmem>>, vector<1x128xf32>,
    %551 = vector.extract_strided_slice %0 {offsets = [6, 0], sizes = [2, 128], strides = [1, 1]} : vector<10x128xf32> to vector<2x128xf32>
    %552 = arith.addf %551, %536 : vector<2x128xf32>
    %c6_299 = arith.constant 6 : index
    %c0_300 = arith.constant 0 : index
    %553 = vector.load %arg7[%c6_299, %c0_300] : memref<10x128xf32, #tpu.memory_space<vmem>>, vector<2x128xf32>
    tpu.vector_store %arg7[%c6_299, %c0_300], %552 {strides = array<i32>} : memref<10x128xf32, #tpu.memory_space<vmem>>, vector<2x128xf32>,
    %554 = vector.extract_strided_slice %0 {offsets = [8, 0], sizes = [2, 128], strides = [1, 1]} : vector<10x128xf32> to vector<2x128xf32>
    %555 = arith.addf %554, %515 : vector<2x128xf32>
    %c8_301 = arith.constant 8 : index
    %c0_302 = arith.constant 0 : index
    %556 = vector.load %arg7[%c8_301, %c0_302] : memref<10x128xf32, #tpu.memory_space<vmem>>, vector<2x128xf32>
    tpu.vector_store %arg7[%c8_301, %c0_302], %555 {strides = array<i32>} : memref<10x128xf32, #tpu.memory_space<vmem>>, vector<2x128xf32>,
    return
  }
  func.func @transform_0(%arg0: i32) -> (i32, i32) {
    %c0_i32 = arith.constant 0 : i32
    %c0_i32_0 = arith.constant 0 : i32
    return %c0_i32, %arg0 : i32, i32
  }
  func.func @transform_1(%arg0: i32) -> (i32, i32) {
    %c0_i32 = arith.constant 0 : i32
    %c0_i32_0 = arith.constant 0 : i32
    return %c0_i32, %arg0 : i32, i32
  }
  func.func @transform_2(%arg0: i32) -> (i32, i32) {
    %c0_i32 = arith.constant 0 : i32
    %c0_i32_0 = arith.constant 0 : i32
    %c0_i32_1 = arith.constant 0 : i32
    return %c0_i32, %c0_i32_0 : i32, i32
  }
  func.func @transform_3(%arg0: i32) -> (i32, i32, i32) {
    %c0_i32 = arith.constant 0 : i32
    %c0_i32_0 = arith.constant 0 : i32
    %c0_i32_1 = arith.constant 0 : i32
    %c0_i32_2 = arith.constant 0 : i32
    return %c0_i32, %c0_i32_0, %c0_i32_1 : i32, i32, i32
  }
  func.func @transform_4(%arg0: i32) -> (i32, i32, i32) {
    %c0_i32 = arith.constant 0 : i32
    %c0_i32_0 = arith.constant 0 : i32
    %c0_i32_1 = arith.constant 0 : i32
    %c0_i32_2 = arith.constant 0 : i32
    return %c0_i32, %c0_i32_0, %c0_i32_1 : i32, i32, i32
  }
  func.func @transform_5(%arg0: i32) -> (i32, i32, i32) {
    %c0_i32 = arith.constant 0 : i32
    %c0_i32_0 = arith.constant 0 : i32
    %c0_i32_1 = arith.constant 0 : i32
    %c0_i32_2 = arith.constant 0 : i32
    return %c0_i32, %c0_i32_0, %c0_i32_1 : i32, i32, i32
  }
  func.func @transform_6(%arg0: i32) -> (i32, i32) {
    %c0_i32 = arith.constant 0 : i32
    %c0_i32_0 = arith.constant 0 : i32
    return %c0_i32, %arg0 : i32, i32
  }
}

</mosaic_0001>

<llo_original>
// kernel: insulin_cho_forward.1
$region0: #{insulin_cho_forward.1}
  #allocation0 [shape = 'u32[]', space=smem, size = 0x4, offset = 0x4, fixed_abs, tag = 'smem constant byte address 0x4 - core index']
  #allocation1 [shape = 'u32[144,128]{1,0:T(1,128)}', space=vmem, size = 0x12000, scoped, tag = 'internal scratch']
  %s0 = inlined_call_operand.vmem [shape: f32[10,256], index: 0, kind: input, shape index: {}]
  %s1 = inlined_call_operand.vmem [shape: f32[2,256], index: 1, kind: input, shape index: {}]
  %s2 = inlined_call_operand.vmem [shape: f32[10,128], index: 2, kind: input, shape index: {}]
  %s3 = inlined_call_operand.vmem [shape: f32[8,80,128], index: 3, kind: input, shape index: {}]
  %s4 = inlined_call_operand.vmem [shape: f32[12,40,128], index: 4, kind: input, shape index: {}]
  %s5 = inlined_call_operand.vmem [shape: f32[2,40,128], index: 5, kind: input, shape index: {}]
  %s6 = inlined_call_operand.hbm [shape: f32[10,256], index: 6, kind: output, shape index: {}]
  %s7 = sld [smem:[#allocation0]]
  $region95: #{insulin_cho_forward.1} parent=0
    _
  %s9 = ssub.s32 1, %s7
  %s10 = scalar_select 0, %s9, %s7
  $region1: #{insulin_cho_forward.1} parent=0
    #allocation2 [shape = 'u8[16384]{0}', space=vmem, size = 0x4000, scoped, tag = 'input window, operand 0']
    #allocation3 [shape = 'u8[16384]{0}', space=vmem, size = 0x4000, scoped, tag = 'output window, operand 0']
    #allocation4 [shape = 's32[2]{0}', space=sflag, size = 0x8, scoped, tag = 'scoped memory for insulin_cho_forward.1']
    %11 = vsyncpa [#allocation4], 0
    %s12 = scalar_lea.sflag [#allocation4], 1
    %13 = vsyncpa %s12, 0
    loop: start=0, step=1, limit=4
    $region2: #{insulin_cho_forward.1} parent=1 // loop_pre_header
      _
    $region3: #{insulin_cho_forward.1} parent=1 // loop_header
      %s15 = sphi 0, %s19
      %p16 = scmp.ge.s32.totalorder %s15, 4
      %s25 = sphi 0, %s27
      %s28 = sphi 0, %s25
      %s29 = sphi 0, %s28
      %s45 = sphi 0, %s29
      %s51 = sphi 0, %s53
      %s54 = sphi 0, %s51
      %s55 = sphi 0, %s54
      %s71 = sphi 0, %s55
      %s75 = sphi 0, %s75
      %s77 = sphi 0, %s75
      %s78 = sphi 0, %s77
      %s92 = sphi 0, %s78
      %s96 = sphi 0, %s96
      %s98 = sphi 0, %s96
      %s99 = sphi 0, %s98
      %s113 = sphi 0, %s99
      %s117 = sphi 0, %s117
      %s119 = sphi 0, %s117
      %s120 = sphi 0, %s119
      %s134 = sphi 0, %s120
      %s138 = sphi 0, %s138
      %s140 = sphi 0, %s138
      %s141 = sphi 0, %s140
      %s155 = sphi 0, %s141
      %s161 = sphi 0, %s163
      %s164 = sphi 0, %s161
      %s165 = sphi 0, %s164
      %s181 = sphi 0, %s165
    $region4: #{insulin_cho_forward.1} parent=1 // loop_header_branch
      %18 = sbr.rel (%p16) target = $region8
    $region5: #{insulin_cho_forward.1} parent=1 // loop_body
      %s20 = ssub.s32 %s15, 1
      %s21 = ssub.s32 %s15, 2
      %s22 = sadd.s32 %s15, 1
      %s23 = ssub.s32 %s15, %s22
      %p24 = scmp.eq.s32.totalorder %s23, 0
      %s26 = sadd.s32 %s25, 1
      %s27 = scalar_select %p24, %s25, %s26
      %p30 = pneg %p24
      %p31 = scmp.eq.s32.totalorder %s15, 1
      %p32 = por %p30, %p31
      %p33 = scmp.ne.s32.totalorder %s25, %s28
      %p34 = scmp.eq.s32.totalorder %s15, 0
      %p35 = por %p33, %p34
      %p36 = scmp.ne.s32.totalorder %s25, %s28
      %p37 = scmp.eq.s32.totalorder %s20, 1
      %p38 = por %p36, %p37
      %p39 = scmp.ne.s32.totalorder %s28, %s29
      %p40 = scmp.eq.s32.totalorder %s20, 0
      %p41 = por %p39, %p40
      %p42 = scmp.ne.s32.totalorder %s28, %s29
      %p43 = scmp.eq.s32.totalorder %s21, 1
      %p44 = por %p42, %p43
      %p46 = scmp.ne.s32.totalorder %s29, %s45
      %p47 = scmp.eq.s32.totalorder %s21, 0
      %p48 = por %p46, %p47
      %s49 = ssub.s32 %s15, %s22
      %p50 = scmp.eq.s32.totalorder %s49, 0
      %s52 = sadd.s32 %s51, 1
      %s53 = scalar_select %p50, %s51, %s52
      %p56 = pneg %p50
      %p57 = scmp.eq.s32.totalorder %s15, 1
      %p58 = por %p56, %p57
      %p59 = scmp.ne.s32.totalorder %s51, %s54
      %p60 = scmp.eq.s32.totalorder %s15, 0
      %p61 = por %p59, %p60
      %p62 = scmp.ne.s32.totalorder %s51, %s54
      %p63 = scmp.eq.s32.totalorder %s20, 1
      %p64 = por %p62, %p63
      %p65 = scmp.ne.s32.totalorder %s54, %s55
      %p66 = scmp.eq.s32.totalorder %s20, 0
      %p67 = por %p65, %p66
      %p68 = scmp.ne.s32.totalorder %s54, %s55
      %p69 = scmp.eq.s32.totalorder %s21, 1
      %p70 = por %p68, %p69
      %p72 = scmp.ne.s32.totalorder %s55, %s71
      %p73 = scmp.eq.s32.totalorder %s21, 0
      %p74 = por %p72, %p73
      %s76 = sadd.s32 %s75, 1
      %p79 = scmp.eq.s32.totalorder %s15, 1
      %p80 = scmp.ne.s32.totalorder %s75, %s77
      %p81 = scmp.eq.s32.totalorder %s15, 0
      %p82 = por %p80, %p81
      %p83 = scmp.ne.s32.totalorder %s75, %s77
      %p84 = scmp.eq.s32.totalorder %s20, 1
      %p85 = por %p83, %p84
      %p86 = scmp.ne.s32.totalorder %s77, %s78
      %p87 = scmp.eq.s32.totalorder %s20, 0
      %p88 = por %p86, %p87
      %p89 = scmp.ne.s32.totalorder %s77, %s78
      %p90 = scmp.eq.s32.totalorder %s21, 1
      %p91 = por %p89, %p90
      %p93 = scmp.ne.s32.totalorder %s78, %s92
      %p94 = scmp.eq.s32.totalorder %s21, 0
      %p95 = por %p93, %p94
      %s97 = sadd.s32 %s96, 1
      %p100 = scmp.eq.s32.totalorder %s15, 1
      %p101 = scmp.ne.s32.totalorder %s96, %s98
      %p102 = scmp.eq.s32.totalorder %s15, 0
      %p103 = por %p101, %p102
      %p104 = scmp.ne.s32.totalorder %s96, %s98
      %p105 = scmp.eq.s32.totalorder %s20, 1
      %p106 = por %p104, %p105
      %p107 = scmp.ne.s32.totalorder %s98, %s99
      %p108 = scmp.eq.s32.totalorder %s20, 0
      %p109 = por %p107, %p108
      %p110 = scmp.ne.s32.totalorder %s98, %s99
      %p111 = scmp.eq.s32.totalorder %s21, 1
      %p112 = por %p110, %p111
      %p114 = scmp.ne.s32.totalorder %s99, %s113
      %p115 = scmp.eq.s32.totalorder %s21, 0
      %p116 = por %p114, %p115
      %s118 = sadd.s32 %s117, 1
      %p121 = scmp.eq.s32.totalorder %s15, 1
      %p122 = scmp.ne.s32.totalorder %s117, %s119
      %p123 = scmp.eq.s32.totalorder %s15, 0
      %p124 = por %p122, %p123
      %p125 = scmp.ne.s32.totalorder %s117, %s119
      %p126 = scmp.eq.s32.totalorder %s20, 1
      %p127 = por %p125, %p126
      %p128 = scmp.ne.s32.totalorder %s119, %s120
      %p129 = scmp.eq.s32.totalorder %s20, 0
      %p130 = por %p128, %p129
      %p131 = scmp.ne.s32.totalorder %s119, %s120
      %p132 = scmp.eq.s32.totalorder %s21, 1
      %p133 = por %p131, %p132
      %p135 = scmp.ne.s32.totalorder %s120, %s134
      %p136 = scmp.eq.s32.totalorder %s21, 0
      %p137 = por %p135, %p136
      %s139 = sadd.s32 %s138, 1
      %p142 = scmp.eq.s32.totalorder %s15, 1
      %p143 = scmp.ne.s32.totalorder %s138, %s140
      %p144 = scmp.eq.s32.totalorder %s15, 0
      %p145 = por %p143, %p144
      %p146 = scmp.ne.s32.totalorder %s138, %s140
      %p147 = scmp.eq.s32.totalorder %s20, 1
      %p148 = por %p146, %p147
      %p149 = scmp.ne.s32.totalorder %s140, %s141
      %p150 = scmp.eq.s32.totalorder %s20, 0
      %p151 = por %p149, %p150
      %p152 = scmp.ne.s32.totalorder %s140, %s141
      %p153 = scmp.eq.s32.totalorder %s21, 1
      %p154 = por %p152, %p153
      %p156 = scmp.ne.s32.totalorder %s141, %s155
      %p157 = scmp.eq.s32.totalorder %s21, 0
      %p158 = por %p156, %p157
      %s159 = ssub.s32 %s15, %s22
      %p160 = scmp.eq.s32.totalorder %s159, 0
      %s162 = sadd.s32 %s161, 1
      %s163 = scalar_select %p160, %s161, %s162
      %p166 = pneg %p160
      %p167 = scmp.eq.s32.totalorder %s15, 1
      %p168 = por %p166, %p167
      %p169 = scmp.ne.s32.totalorder %s161, %s164
      %p170 = scmp.eq.s32.totalorder %s15, 0
      %p171 = por %p169, %p170
      %p172 = scmp.ne.s32.totalorder %s161, %s164
      %p173 = scmp.eq.s32.totalorder %s20, 1
      %p174 = por %p172, %p173
      %p175 = scmp.ne.s32.totalorder %s164, %s165
      %p176 = scmp.eq.s32.totalorder %s20, 0
      %p177 = por %p175, %p176
      %p178 = scmp.ne.s32.totalorder %s164, %s165
      %p179 = scmp.eq.s32.totalorder %s21, 1
      %p180 = por %p178, %p179
      %p182 = scmp.ne.s32.totalorder %s165, %s181
      %p183 = scmp.eq.s32.totalorder %s21, 0
      %p184 = por %p182, %p183
      %p185 = scmp.le.s32.totalorder 1, %s15
      %p186 = scmp.lt.s32.totalorder %s15, 3
      %p187 = pnand %p185, %p186
      %p188 = pneg %p187
      // Predicated region
      $region9: #{insulin_cho_forward.1} parent=5 // pred_check
        _
      $region10: #{insulin_cho_forward.1} parent=5 // pred_check_branch
        %190 = sbr.rel (%p187) target = $region12
      $region11: #{insulin_cho_forward.1} parent=5 // pred_region
        %s191 = ssub.s32 %s15, 1
        // Predicated region
        $region13: #{insulin_cho_forward.1} parent=11 // pred_check
          %p192 = pneg %p88
        $region14: #{insulin_cho_forward.1} parent=11 // pred_check_branch
          %194 = sbr.rel (%p192) target = $region16
        $region15: #{insulin_cho_forward.1} parent=11 // pred_region
          _
        $region16: #{insulin_cho_forward.1} parent=11 // pred_fallthru
          _
        // Predicated region
        $region17: #{insulin_cho_forward.1} parent=11 // pred_check
          %p195 = pneg %p109
        $region18: #{insulin_cho_forward.1} parent=11 // pred_check_branch
          %197 = sbr.rel (%p195) target = $region20
        $region19: #{insulin_cho_forward.1} parent=11 // pred_region
          _
        $region20: #{insulin_cho_forward.1} parent=11 // pred_fallthru
          _
        // Predicated region
        $region21: #{insulin_cho_forward.1} parent=11 // pred_check
          %p198 = pneg %p130
        $region22: #{insulin_cho_forward.1} parent=11 // pred_check_branch
          %200 = sbr.rel (%p198) target = $region24
        $region23: #{insulin_cho_forward.1} parent=11 // pred_region
          _
        $region24: #{insulin_cho_forward.1} parent=11 // pred_fallthru
          _
        // Predicated region
        $region25: #{insulin_cho_forward.1} parent=11 // pred_check
          %p201 = pneg %p151
        $region26: #{insulin_cho_forward.1} parent=11 // pred_check_branch
          %203 = sbr.rel (%p201) target = $region28
        $region27: #{insulin_cho_forward.1} parent=11 // pred_region
          _
        $region28: #{insulin_cho_forward.1} parent=11 // pred_fallthru
          _
      $region12: #{insulin_cho_forward.1} parent=5 // pred_fallthru
        _
      %p204 = scmp.lt.s32.totalorder %s15, 2
      // Predicated region
      $region29: #{insulin_cho_forward.1} parent=5 // pred_check
        %p205 = pneg %p204
      $region30: #{insulin_cho_forward.1} parent=5 // pred_check_branch
        %207 = sbr.rel (%p205) target = $region32
      $region31: #{insulin_cho_forward.1} parent=5 // pred_region
        // Predicated region
        $region33: #{insulin_cho_forward.1} parent=31 // pred_check
          %p208 = pneg %p35
        $region34: #{insulin_cho_forward.1} parent=31 // pred_check_branch
          %210 = sbr.rel (%p208) target = $region36
        $region35: #{insulin_cho_forward.1} parent=31 // pred_region
          %s211 = sand.u32 %s25, 1
          %s212 = sand.u32 %s25, 1
          %s213 = smul.addr %s212, 16
          %s214 = scalar_lea.vmem [#allocation2], %s213
          %s215 = smul.addr %s15, 8
          %s216 = scalar_lea.vmem %s0, %s215
          // Predicated region
          $region37: #{insulin_cho_forward.1} parent=35 // pred_check
            _
          $region38: #{insulin_cho_forward.1} parent=35 // pred_check_branch
            %218 = sbr.rel (0) target = $region40
          $region39: #{insulin_cho_forward.1} parent=35 // pred_region
            // Predicated region
            $region41: #{insulin_cho_forward.1} parent=39 // pred_check
              _
            $region42: #{insulin_cho_forward.1} parent=39 // pred_check_branch
              %220 = sbr.rel (0) target = $region44
            $region43: #{insulin_cho_forward.1} parent=39 // pred_region
              // Predicated region
              $region56: #{insulin_cho_forward.1} parent=43 // pred_check
                _
              $region57: #{insulin_cho_forward.1} parent=43 // pred_check_branch
                %237 = sbr.rel (0) target = $region59
              $region58: #{insulin_cho_forward.1} parent=43 // pred_region
                loop: start=0, step=1, limit=1
                $region60: #{insulin_cho_forward.1} parent=58 // loop_pre_header
                  _
                $region61: #{insulin_cho_forward.1} parent=58 // loop_header
                  %s239 = sphi 0, %s243
                  %p240 = scmp.ge.s32.totalorder %s239, 1
                  %s244 = sphi %s216, %s216
                  %s245 = sphi %s214, %s214
                $region62: #{insulin_cho_forward.1} parent=58 // loop_header_branch
                  %242 = sbr.rel (%p240) target = $region66
                $region63: #{insulin_cho_forward.1} parent=58 // loop_body
                  %v246 = vld [vmem:[%s244] sm:$0xff]
                  %247 = vst [vmem:[%s245] sm:$0xff] %v246
                  %v248 = vld [vmem:[%s244 + $0x10] sm:$0xff]
                  %249 = vst [vmem:[%s245 + $0x8] sm:$0xff] %v248
                $region64: #{insulin_cho_forward.1} parent=58 // loop_footer
                  %s243 = sadd.s32 1, %s239
                $region65: #{insulin_cho_forward.1} parent=58 // loop_footer_branch
                  %238 = sbr.rel target = $region61
                $region66: #{insulin_cho_forward.1} parent=58 // loop_exit
                  _
              $region59: #{insulin_cho_forward.1} parent=43 // pred_fallthru
                _
              // Predicated region
              $region67: #{insulin_cho_forward.1} parent=43 // pred_check
                _
              $region68: #{insulin_cho_forward.1} parent=43 // pred_check_branch
                %251 = sbr.rel target = $region70
              $region69: #{insulin_cho_forward.1} parent=43 // pred_region
                _
              $region70: #{insulin_cho_forward.1} parent=43 // pred_fallthru
                _
            $region44: #{insulin_cho_forward.1} parent=39 // pred_fallthru
              _
            // Predicated region
            $region45: #{insulin_cho_forward.1} parent=39 // pred_check
              _
            $region46: #{insulin_cho_forward.1} parent=39 // pred_check_branch
              %222 = sbr.rel target = $region48
            $region47: #{insulin_cho_forward.1} parent=39 // pred_region
              loop: start=0, step=1, limit=1
              $region49: #{insulin_cho_forward.1} parent=47 // loop_pre_header
                _
              $region50: #{insulin_cho_forward.1} parent=47 // loop_header
                %s225 = sphi 0, %s229
                %p226 = scmp.ge.s32.totalorder %s225, 1
                %s230 = sphi %s216, %s216
                %s231 = sphi %s214, %s214
              $region51: #{insulin_cho_forward.1} parent=47 // loop_header_branch
                %228 = sbr.rel (%p226) target = $region55
              $region52: #{insulin_cho_forward.1} parent=47 // loop_body
                %v232 = vld [vmem:[%s230] sm:$0xff]
                %233 = vst [vmem:[%s231] sm:$0xff] %v232
                %v234 = vld [vmem:[%s230 + $0x10] sm:$0xff]
                %235 = vst [vmem:[%s231 + $0x8] sm:$0xff] %v234
              $region53: #{insulin_cho_forward.1} parent=47 // loop_footer
                %s229 = sadd.s32 1, %s225
              $region54: #{insulin_cho_forward.1} parent=47 // loop_footer_branch
                %224 = sbr.rel target = $region50
              $region55: #{insulin_cho_forward.1} parent=47 // loop_exit
                _
            $region48: #{insulin_cho_forward.1} parent=39 // pred_fallthru
              _
          $region40: #{insulin_cho_forward.1} parent=35 // pred_fallthru
            _
          %252 = vnop
        $region36: #{insulin_cho_forward.1} parent=31 // pred_fallthru
          _
        // Predicated region
        $region71: #{insulin_cho_forward.1} parent=31 // pred_check
          %p253 = pneg %p61
        $region72: #{insulin_cho_forward.1} parent=31 // pred_check_branch
          %255 = sbr.rel (%p253) target = $region74
        $region73: #{insulin_cho_forward.1} parent=31 // pred_region
          %p256 = scmp.lt.s32.totalorder %s15, 1
          %s257 = scalar_select %p256, %s15, 1
          %s258 = smul.addr %s257, 2
          %s259 = scalar_lea.vmem %s1, %s258
        $region74: #{insulin_cho_forward.1} parent=31 // pred_fallthru
          _
      $region32: #{insulin_cho_forward.1} parent=5 // pred_fallthru
        _
      %p260 = scmp.le.s32.totalorder 1, %s15
      %p261 = scmp.lt.s32.totalorder %s15, 3
      %p262 = pnand %p260, %p261
      %p263 = pneg %p262
      // Predicated region
      $region75: #{insulin_cho_forward.1} parent=5 // pred_check
        _
      $region76: #{insulin_cho_forward.1} parent=5 // pred_check_branch
        %265 = sbr.rel (%p262) target = $region78
      $region77: #{insulin_cho_forward.1} parent=5 // pred_region
        %s266 = ssub.s32 %s15, 1
        %s267 = sand.u32 %s28, 1
        %s268 = sand.u32 %s28, 1
        %s269 = smul.addr %s268, 16
        %s270 = scalar_lea.vmem [#allocation2], %s269
        // Predicated region
        $region79: #{insulin_cho_forward.1} parent=77 // pred_check
          %p271 = pneg %p41
        $region80: #{insulin_cho_forward.1} parent=77 // pred_check_branch
          %273 = sbr.rel (%p271) target = $region82
        $region81: #{insulin_cho_forward.1} parent=77 // pred_region
          _
        $region82: #{insulin_cho_forward.1} parent=77 // pred_fallthru
          _
        %s274 = sand.u32 %s28, 1
        %s275 = sand.u32 %s28, 1
        %s276 = smul.addr %s275, 16
        %s277 = scalar_lea.vmem [#allocation2], %s276
        %p278 = pneg %p41
        %p279 = pneg %p38
        %p280 = scmp.lt.s32.totalorder %s20, 1
        %s281 = scalar_select %p280, %s20, 1
        %s282 = smul.addr %s281, 2
        %s283 = scalar_lea.vmem %s1, %s282
        %p284 = pneg %p67
        %p285 = pneg %p64
        %p286 = pneg %p88
        %p287 = pneg %p85
        %p288 = pneg %p109
        %p289 = pneg %p106
        %p290 = pneg %p130
        %p291 = pneg %p127
        %p292 = pneg %p151
        %p293 = pneg %p148
        %p294 = pneg %p177
        %p295 = pneg %p174
        %s296 = sand.u32 %s164, 1
        %s297 = scalar_lea.sflag [#allocation4], %s296
        %s298 = sand.u32 %s164, 1
        %s299 = smul.addr %s298, 16
        %s300 = scalar_lea.vmem [#allocation3], %s299
        %p301 = scmp.lt.s32.totalorder %s20, 1
        %s302 = scalar_select %p301, %s20, 1
        %s303 = smul.addr %s302, 2
        %s304 = scalar_lea.vmem %s1, %s303
        %v305 = vld [vmem:[%s270] sm:$0xff]
        %v306 = vld [vmem:[%s270 + $0x8] sm:$0x3]
        %v307 = vld [vmem:[%s304] sm:$0x3]
        %v308 = vld [vmem:[%s2] sm:$0xff]
        %v309 = vld [vmem:[%s2 + $0x8] sm:$0x3]
        %311 = vset.pattern.permute.xlu0 0
        %312 = vperm.xlu0 %311, %v308
        %v313 = vpop.permute.xlu0 %312
        %316 = vset.pattern.permute.xlu0 0
        %317 = vperm.xlu0 %316, %v309
        %v318 = vpop.permute.xlu0 %317
        %v320 = vlaneseq
        %v321 = vshrl.u32 %v320, 7
        %v322 = vsub.s32 0, %v321
        %v323 = vrot.slane %v307, %v322
        %v324 = vmul.f32 %v313, %v323
        %v325 = vmul.f32 %v318, %v323
        %326 = vset.pattern.permute.xlu0 2
        %327 = vperm.xlu0 %326, %v308
        %v328 = vpop.permute.xlu0 %327
        %330 = vset.pattern.permute.xlu0 2
        %331 = vperm.xlu0 %330, %v309
        %v332 = vpop.permute.xlu0 %331
        %v334 = vadd.f32 %v328, %v324
        %v335 = vadd.f32 %v332, %v325
        %336 = vset.pattern.permute.xlu0 1
        %337 = vperm.xlu0 %336, %v308
        %v338 = vpop.permute.xlu0 %337
        %340 = vset.pattern.permute.xlu0 1
        %341 = vperm.xlu0 %340, %v309
        %v342 = vpop.permute.xlu0 %341
        %v344 = vlaneseq
        %v345 = vshrl.u32 %v344, 7
        %v346 = vsub.s32 1, %v345
        %v347 = vrot.slane %v307, %v346
        %v348 = vmul.f32 %v338, %v347
        %v349 = vmul.f32 %v342, %v347
        %v350 = vadd.f32 %v334, %v348
        %v351 = vadd.f32 %v335, %v349
        %v352 = vld [vmem:[%s3] sm:$0xff]
        %v353 = vld [vmem:[%s3 + $0x8] sm:$0xff]
        %v354 = vld [vmem:[%s3 + $0x10] sm:$0xff]
        %v355 = vld [vmem:[%s3 + $0x18] sm:$0xff]
        %v356 = vld [vmem:[%s3 + $0x20] sm:$0xff]
        %v357 = vld [vmem:[%s3 + $0x28] sm:$0xff]
        %v358 = vld [vmem:[%s3 + $0x30] sm:$0xff]
        %v359 = vld [vmem:[%s3 + $0x38] sm:$0xff]
        %361 = vset.pattern.permute.xlu0 5
        %362 = vperm.xlu0 %361, %v352
        %v363 = vpop.permute.xlu0 %362
        %366 = vset.pattern.permute.xlu0 5
        %367 = vperm.xlu0 %366, %v353
        %v368 = vpop.permute.xlu0 %367
        %371 = vset.pattern.permute.xlu0 5
        %372 = vperm.xlu0 %371, %v354
        %v373 = vpop.permute.xlu0 %372
        %376 = vset.pattern.permute.xlu0 5
        %377 = vperm.xlu0 %376, %v355
        %v378 = vpop.permute.xlu0 %377
        %381 = vset.pattern.permute.xlu0 5
        %382 = vperm.xlu0 %381, %v356
        %v383 = vpop.permute.xlu0 %382
        %386 = vset.pattern.permute.xlu0 5
        %387 = vperm.xlu0 %386, %v357
        %v388 = vpop.permute.xlu0 %387
        %391 = vset.pattern.permute.xlu0 5
        %392 = vperm.xlu0 %391, %v358
        %v393 = vpop.permute.xlu0 %392
        %396 = vset.pattern.permute.xlu0 5
        %397 = vperm.xlu0 %396, %v359
        %v398 = vpop.permute.xlu0 %397
        %vm400 = vcmask 39936
        %v401 = vsel %vm400, %v352, 0
        %v403 = vsel %vm400, %v353, 0
        %v405 = vsel %vm400, %v354, 0
        %v407 = vsel %vm400, %v355, 0
        %v409 = vsel %vm400, %v356, 0
        %v411 = vsel %vm400, %v357, 0
        %v413 = vsel %vm400, %v358, 0
        %v415 = vsel %vm400, %v359, 0
        %vm417 = vcmask 1044480
        %v419 = vsel %vm417, %v350, 0
        %421 = vmatprep.subr.mxu0 0.0
        %422 = vmatpush1.msra.mxu0 %v419
        %423 = vmatprep.subr.mxu0 0.0
        %424 = vmatpush1.msra.mxu0 0.0
        %425 = vmatprep.subr.mxu0 0.0
        %426 = vmatpush1.msra.mxu0 0.0
        %427 = vmatprep.subr.mxu0 0.0
        %428 = vmatpush1.msra.mxu0 0.0
        %429 = vmatprep.subr.mxu0 0.0
        %430 = vmatpush1.msra.mxu0 0.0
        %431 = vmatprep.subr.mxu0 0.0
        %432 = vmatpush1.msra.mxu0 0.0
        %433 = vmatprep.subr.mxu0 0.0
        %434 = vmatpush1.msra.mxu0 0.0
        %435 = vmatprep.subr.mxu0 0.0
        %436 = vmatpush1.msra.mxu0 0.0
        %437 = vmatprep.subr.mxu0 0.0
        %438 = vmatpush1.msra.mxu0 0.0
        %439 = vmatprep.subr.mxu0 0.0
        %440 = vmatpush1.msra.mxu0 0.0
        %441 = vmatprep.subr.mxu0 0.0
        %442 = vmatpush1.msra.mxu0 0.0
        %443 = vmatprep.subr.mxu0 0.0
        %444 = vmatpush1.msra.mxu0 0.0
        %445 = vmatprep.subr.mxu0 0.0
        %446 = vmatpush1.msra.mxu0 0.0
        %447 = vmatprep.subr.mxu0 0.0
        %448 = vmatpush1.msra.mxu0 0.0
        %449 = vmatprep.subr.mxu0 0.0
        %450 = vmatpush1.msra.mxu0 0.0
        %451 = vmatprep.subr.mxu0 0.0
        %452 = vmatpush1.msra.mxu0 0.0
        %453 = vmatprep.subr.mxu0 0.0
        %454 = vmatpush1.msra.mxu0 0.0
        %455 = vmatprep.subr.mxu0 0.0
        %456 = vmatpush1.msra.mxu0 0.0
        %457 = vmatprep.subr.mxu0 0.0
        %458 = vmatpush1.msra.mxu0 0.0
        %459 = vmatprep.subr.mxu0 0.0
        %460 = vmatpush1.msra.mxu0 0.0
        %461 = vmatprep.subr.mxu0 0.0
        %462 = vmatpush1.msra.mxu0 0.0
        %463 = vmatprep.subr.mxu0 0.0
        %464 = vmatpush1.msra.mxu0 0.0
        %465 = vmatprep.subr.mxu0 0.0
        %466 = vmatpush1.msra.mxu0 0.0
        %467 = vmatprep.subr.mxu0 0.0
        %468 = vmatpush1.msra.mxu0 0.0
        %469 = vmatprep.subr.mxu0 0.0
        %470 = vmatpush1.msra.mxu0 0.0
        %471 = vmatprep.subr.mxu0 0.0
        %472 = vmatpush1.msra.mxu0 0.0
        %473 = vmatprep.subr.mxu0 0.0
        %474 = vmatpush1.msra.mxu0 0.0
        %475 = vmatprep.subr.mxu0 0.0
        %476 = vmatpush1.msra.mxu0 0.0
        %477 = vmatprep.subr.mxu0 0.0
        %478 = vmatpush1.msra.mxu0 0.0
        %479 = vmatprep.subr.mxu0 0.0
        %480 = vmatpush1.msra.mxu0 0.0
        %481 = vmatprep.subr.mxu0 0.0
        %482 = vmatpush1.msra.mxu0 0.0
        %483 = vmatprep.subr.mxu0 0.0
        %484 = vmatpush1.msra.mxu0 0.0
        %485 = vmatprep.mubr.f32.mxu0 0.0
        %486 = vmatmul.mubr.f32.gmra.mrb[0].mxu0 %v401
        %v487 = vpop.f32.mrb[0].mxu0
        %v488 = vadd.f32 %v363, %v487
        %v489 = vpop.f32.mrb[0].mxu0
        %490 = vmatprep.mubr.f32.mxu0 0.0
        %491 = vmatmul.mubr.f32.gmra.mrb[0].mxu0 %v403
        %v492 = vpop.f32.mrb[0].mxu0
        %v493 = vadd.f32 %v368, %v492
        %v494 = vpop.f32.mrb[0].mxu0
        %495 = vmatprep.mubr.f32.mxu0 0.0
        %496 = vmatmul.mubr.f32.gmra.mrb[0].mxu0 %v405
        %v497 = vpop.f32.mrb[0].mxu0
        %v498 = vadd.f32 %v373, %v497
        %v499 = vpop.f32.mrb[0].mxu0
        %500 = vmatprep.mubr.f32.mxu0 0.0
        %501 = vmatmul.mubr.f32.gmra.mrb[0].mxu0 %v407
        %v502 = vpop.f32.mrb[0].mxu0
        %v503 = vadd.f32 %v378, %v502
        %v504 = vpop.f32.mrb[0].mxu0
        %505 = vmatprep.mubr.f32.mxu0 0.0
        %506 = vmatmul.mubr.f32.gmra.mrb[0].mxu0 %v409
        %v507 = vpop.f32.mrb[0].mxu0
        %v508 = vadd.f32 %v383, %v507
        %v509 = vpop.f32.mrb[0].mxu0
        %510 = vmatprep.mubr.f32.mxu0 0.0
        %511 = vmatmul.mubr.f32.gmra.mrb[0].mxu0 %v411
        %v512 = vpop.f32.mrb[0].mxu0
        %v513 = vadd.f32 %v388, %v512
        %v514 = vpop.f32.mrb[0].mxu0
        %515 = vmatprep.mubr.f32.mxu0 0.0
        %516 = vmatmul.mubr.f32.gmra.mrb[0].mxu0 %v413
        %v517 = vpop.f32.mrb[0].mxu0
        %v518 = vadd.f32 %v393, %v517
        %v519 = vpop.f32.mrb[0].mxu0
        %520 = vmatprep.mubr.f32.mxu0 0.0
        %521 = vmatmul.mubr.f32.gmra.mrb[0].mxu0 %v415
        %v522 = vpop.f32.mrb[0].mxu0
        %v523 = vadd.f32 %v398, %v522
        %v524 = vpop.f32.mrb[0].mxu0
        %525 = vdwg.mxu0
        %v526 = vtanh.pop %v488
        %v527 = vtanh.pop %v493
        %v528 = vtanh.pop %v498
        %v529 = vtanh.pop %v503
        %v530 = vtanh.pop %v508
        %v531 = vtanh.pop %v513
        %v532 = vtanh.pop %v518
        %v533 = vtanh.pop %v523
        %v534 = vld [vmem:[%s3 + $0x40] sm:$0xff]
        %v535 = vld [vmem:[%s3 + $0x48] sm:$0xff]
        %537 = vset.pattern.permute.xlu0 64
        %538 = vperm.xlu0 %537, %v534
        %v539 = vpop.permute.xlu0 %538
        %542 = vset.pattern.permute.xlu0 64
        %543 = vperm.xlu0 %542, %v535
        %v544 = vpop.permute.xlu0 %543
        %vm546 = vcmask 523264
        %v547 = vsel %vm546, %v534, 0
        %v549 = vsel %vm546, %v535, 0
        %551 = vmatprep.subr.mxu0 0.0
        %552 = vmatpush1.msra.mxu0 %v526
        %553 = vmatprep.subr.mxu0 0.0
        %554 = vmatpush1.msra.mxu0 %v527
        %555 = vmatprep.subr.mxu0 0.0
        %556 = vmatpush1.msra.mxu0 %v528
        %557 = vmatprep.subr.mxu0 0.0
        %558 = vmatpush1.msra.mxu0 %v529
        %559 = vmatprep.subr.mxu0 0.0
        %560 = vmatpush1.msra.mxu0 %v530
        %561 = vmatprep.subr.mxu0 0.0
        %562 = vmatpush1.msra.mxu0 %v531
        %563 = vmatprep.subr.mxu0 0.0
        %564 = vmatpush1.msra.mxu0 %v532
        %565 = vmatprep.subr.mxu0 0.0
        %566 = vmatpush1.msra.mxu0 %v533
        %567 = vmatprep.subr.mxu0 0.0
        %568 = vmatpush1.msra.mxu0 0.0
        %569 = vmatprep.subr.mxu0 0.0
        %570 = vmatpush1.msra.mxu0 0.0
        %571 = vmatprep.subr.mxu0 0.0
        %572 = vmatpush1.msra.mxu0 0.0
        %573 = vmatprep.subr.mxu0 0.0
        %574 = vmatpush1.msra.mxu0 0.0
        %575 = vmatprep.subr.mxu0 0.0
        %576 = vmatpush1.msra.mxu0 0.0
        %577 = vmatprep.subr.mxu0 0.0
        %578 = vmatpush1.msra.mxu0 0.0
        %579 = vmatprep.subr.mxu0 0.0
        %580 = vmatpush1.msra.mxu0 0.0
        %581 = vmatprep.subr.mxu0 0.0
        %582 = vmatpush1.msra.mxu0 0.0
        %583 = vmatprep.subr.mxu0 0.0
        %584 = vmatpush1.msra.mxu0 0.0
        %585 = vmatprep.subr.mxu0 0.0
        %586 = vmatpush1.msra.mxu0 0.0
        %587 = vmatprep.subr.mxu0 0.0
        %588 = vmatpush1.msra.mxu0 0.0
        %589 = vmatprep.subr.mxu0 0.0
        %590 = vmatpush1.msra.mxu0 0.0
        %591 = vmatprep.subr.mxu0 0.0
        %592 = vmatpush1.msra.mxu0 0.0
        %593 = vmatprep.subr.mxu0 0.0
        %594 = vmatpush1.msra.mxu0 0.0
        %595 = vmatprep.subr.mxu0 0.0
        %596 = vmatpush1.msra.mxu0 0.0
        %597 = vmatprep.subr.mxu0 0.0
        %598 = vmatpush1.msra.mxu0 0.0
        %599 = vmatprep.subr.mxu0 0.0
        %600 = vmatpush1.msra.mxu0 0.0
        %601 = vmatprep.subr.mxu0 0.0
        %602 = vmatpush1.msra.mxu0 0.0
        %603 = vmatprep.subr.mxu0 0.0
        %604 = vmatpush1.msra.mxu0 0.0
        %605 = vmatprep.subr.mxu0 0.0
        %606 = vmatpush1.msra.mxu0 0.0
        %607 = vmatprep.subr.mxu0 0.0
        %608 = vmatpush1.msra.mxu0 0.0
        %609 = vmatprep.subr.mxu0 0.0
        %610 = vmatpush1.msra.mxu0 0.0
        %611 = vmatprep.subr.mxu0 0.0
        %612 = vmatpush1.msra.mxu0 0.0
        %613 = vmatprep.subr.mxu0 0.0
        %614 = vmatpush1.msra.mxu0 0.0
        %615 = vmatprep.mubr.f32.mxu0 0.0
        %616 = vmatmul.mubr.f32.gmra.mrb[0].mxu0 %v547
        %v617 = vpop.f32.mrb[0].mxu0
        %v618 = vadd.f32 %v539, %v617
        %v619 = vpop.f32.mrb[0].mxu0
        %620 = vmatprep.mubr.f32.mxu0 0.0
        %621 = vmatmul.mubr.f32.gmra.mrb[0].mxu0 %v549
        %v622 = vpop.f32.mrb[0].mxu0
        %v623 = vadd.f32 %v544, %v622
        %v624 = vpop.f32.mrb[0].mxu0
        %625 = vdwg.mxu0
        %v626 = vtanh.pop %v618
        %v627 = vmul.f32 %v626, 1.442695
        %v628 = vpow.pop %v627
        %v630 = vrot.slane %v628, 3
        %v632 = vmul.f32 %v350, %v630
        %v633 = vmul.f32 %v351, %v630
        %v634 = vadd.f32 %v632, %v618
        %v635 = vadd.f32 %v633, %v623
        %s636 = scalar_lea.vmem %s3, 80
        %v637 = vld [vmem:[%s636] sm:$0xff]
        %v638 = vld [vmem:[%s636 + $0x8] sm:$0xff]
        %v639 = vld [vmem:[%s636 + $0x10] sm:$0xff]
        %v640 = vld [vmem:[%s636 + $0x18] sm:$0xff]
        %v641 = vld [vmem:[%s636 + $0x20] sm:$0xff]
        %v642 = vld [vmem:[%s636 + $0x28] sm:$0xff]
        %v643 = vld [vmem:[%s636 + $0x30] sm:$0xff]
        %v644 = vld [vmem:[%s636 + $0x38] sm:$0xff]
        %646 = vset.pattern.permute.xlu0 5
        %647 = vperm.xlu0 %646, %v637
        %v648 = vpop.permute.xlu0 %647
        %651 = vset.pattern.permute.xlu0 5
        %652 = vperm.xlu0 %651, %v638
        %v653 = vpop.permute.xlu0 %652
        %656 = vset.pattern.permute.xlu0 5
        %657 = vperm.xlu0 %656, %v639
        %v658 = vpop.permute.xlu0 %657
        %661 = vset.pattern.permute.xlu0 5
        %662 = vperm.xlu0 %661, %v640
        %v663 = vpop.permute.xlu0 %662
        %666 = vset.pattern.permute.xlu0 5
        %667 = vperm.xlu0 %666, %v641
        %v668 = vpop.permute.xlu0 %667
        %671 = vset.pattern.permute.xlu0 5
        %672 = vperm.xlu0 %671, %v642
        %v673 = vpop.permute.xlu0 %672
        %676 = vset.pattern.permute.xlu0 5
        %677 = vperm.xlu0 %676, %v643
        %v678 = vpop.permute.xlu0 %677
        %681 = vset.pattern.permute.xlu0 5
        %682 = vperm.xlu0 %681, %v644
        %v683 = vpop.permute.xlu0 %682
        %vm687 = vcmask 1042432
        %v688 = vrot.slane %v634, 5
        %v689 = vrot.slane %v635, 5
        %v690 = vsel %vm687, %v688, %v689
        %v691 = vsel %vm400, %v637, 0
        %v693 = vsel %vm400, %v638, 0
        %v695 = vsel %vm400, %v639, 0
        %v697 = vsel %vm400, %v640, 0
        %v699 = vsel %vm400, %v641, 0
        %v701 = vsel %vm400, %v642, 0
        %v703 = vsel %vm400, %v643, 0
        %v705 = vsel %vm400, %v644, 0
        %v707 = vsel %vm417, %v690, 0
        %709 = vmatprep.subr.mxu0 0.0
        %710 = vmatpush1.msra.mxu0 %v707
        %711 = vmatprep.subr.mxu0 0.0
        %712 = vmatpush1.msra.mxu0 0.0
        %713 = vmatprep.subr.mxu0 0.0
        %714 = vmatpush1.msra.mxu0 0.0
        %715 = vmatprep.subr.mxu0 0.0
        %716 = vmatpush1.msra.mxu0 0.0
        %717 = vmatprep.subr.mxu0 0.0
        %718 = vmatpush1.msra.mxu0 0.0
        %719 = vmatprep.subr.mxu0 0.0
        %720 = vmatpush1.msra.mxu0 0.0
        %721 = vmatprep.subr.mxu0 0.0
        %722 = vmatpush1.msra.mxu0 0.0
        %723 = vmatprep.subr.mxu0 0.0
        %724 = vmatpush1.msra.mxu0 0.0
        %725 = vmatprep.subr.mxu0 0.0
        %726 = vmatpush1.msra.mxu0 0.0
        %727 = vmatprep.subr.mxu0 0.0
        %728 = vmatpush1.msra.mxu0 0.0
        %729 = vmatprep.subr.mxu0 0.0
        %730 = vmatpush1.msra.mxu0 0.0
        %731 = vmatprep.subr.mxu0 0.0
        %732 = vmatpush1.msra.mxu0 0.0
        %733 = vmatprep.subr.mxu0 0.0
        %734 = vmatpush1.msra.mxu0 0.0
        %735 = vmatprep.subr.mxu0 0.0
        %736 = vmatpush1.msra.mxu0 0.0
        %737 = vmatprep.subr.mxu0 0.0
        %738 = vmatpush1.msra.mxu0 0.0
        %739 = vmatprep.subr.mxu0 0.0
        %740 = vmatpush1.msra.mxu0 0.0
        %741 = vmatprep.subr.mxu0 0.0
        %742 = vmatpush1.msra.mxu0 0.0
        %743 = vmatprep.subr.mxu0 0.0
        %744 = vmatpush1.msra.mxu0 0.0
        %745 = vmatprep.subr.mxu0 0.0
        %746 = vmatpush1.msra.mxu0 0.0
        %747 = vmatprep.subr.mxu0 0.0
        %748 = vmatpush1.msra.mxu0 0.0
        %749 = vmatprep.subr.mxu0 0.0
        %750 = vmatpush1.msra.mxu0 0.0
        %751 = vmatprep.subr.mxu0 0.0
        %752 = vmatpush1.msra.mxu0 0.0
        %753 = vmatprep.subr.mxu0 0.0
        %754 = vmatpush1.msra.mxu0 0.0
        %755 = vmatprep.subr.mxu0 0.0
        %756 = vmatpush1.msra.mxu0 0.0
        %757 = vmatprep.subr.mxu0 0.0
        %758 = vmatpush1.msra.mxu0 0.0
        %759 = vmatprep.subr.mxu0 0.0
        %760 = vmatpush1.msra.mxu0 0.0
        %761 = vmatprep.subr.mxu0 0.0
        %762 = vmatpush1.msra.mxu0 0.0
        %763 = vmatprep.subr.mxu0 0.0
        %764 = vmatpush1.msra.mxu0 0.0
        %765 = vmatprep.subr.mxu0 0.0
        %766 = vmatpush1.msra.mxu0 0.0
        %767 = vmatprep.subr.mxu0 0.0
        %768 = vmatpush1.msra.mxu0 0.0
        %769 = vmatprep.subr.mxu0 0.0
        %770 = vmatpush1.msra.mxu0 0.0
        %771 = vmatprep.subr.mxu0 0.0
        %772 = vmatpush1.msra.mxu0 0.0
        %773 = vmatprep.mubr.f32.mxu0 0.0
        %774 = vmatmul.mubr.f32.gmra.mrb[0].mxu0 %v691
        %v775 = vpop.f32.mrb[0].mxu0
        %v776 = vadd.f32 %v648, %v775
        %v777 = vpop.f32.mrb[0].mxu0
        %778 = vmatprep.mubr.f32.mxu0 0.0
        %779 = vmatmul.mubr.f32.gmra.mrb[0].mxu0 %v693
        %v780 = vpop.f32.mrb[0].mxu0
        %v781 = vadd.f32 %v653, %v780
        %v782 = vpop.f32.mrb[0].mxu0
        %783 = vmatprep.mubr.f32.mxu0 0.0
        %784 = vmatmul.mubr.f32.gmra.mrb[0].mxu0 %v695
        %v785 = vpop.f32.mrb[0].mxu0
        %v786 = vadd.f32 %v658, %v785
        %v787 = vpop.f32.mrb[0].mxu0
        %788 = vmatprep.mubr.f32.mxu0 0.0
        %789 = vmatmul.mubr.f32.gmra.mrb[0].mxu0 %v697
        %v790 = vpop.f32.mrb[0].mxu0
        %v791 = vadd.f32 %v663, %v790
        %v792 = vpop.f32.mrb[0].mxu0
        %793 = vmatprep.mubr.f32.mxu0 0.0
        %794 = vmatmul.mubr.f32.gmra.mrb[0].mxu0 %v699
        %v795 = vpop.f32.mrb[0].mxu0
        %v796 = vadd.f32 %v668, %v795
        %v797 = vpop.f32.mrb[0].mxu0
        %798 = vmatprep.mubr.f32.mxu0 0.0
        %799 = vmatmul.mubr.f32.gmra.mrb[0].mxu0 %v701
        %v800 = vpop.f32.mrb[0].mxu0
        %v801 = vadd.f32 %v673, %v800
        %v802 = vpop.f32.mrb[0].mxu0
        %803 = vmatprep.mubr.f32.mxu0 0.0
        %804 = vmatmul.mubr.f32.gmra.mrb[0].mxu0 %v703
        %v805 = vpop.f32.mrb[0].mxu0
        %v806 = vadd.f32 %v678, %v805
        %v807 = vpop.f32.mrb[0].mxu0
        %808 = vmatprep.mubr.f32.mxu0 0.0
        %809 = vmatmul.mubr.f32.gmra.mrb[0].mxu0 %v705
        %v810 = vpop.f32.mrb[0].mxu0
        %v811 = vadd.f32 %v683, %v810
        %v812 = vpop.f32.mrb[0].mxu0
        %813 = vdwg.mxu0
        %v814 = vtanh.pop %v776
        %v815 = vtanh.pop %v781
        %v816 = vtanh.pop %v786
        %v817 = vtanh.pop %v791
        %v818 = vtanh.pop %v796
        %v819 = vtanh.pop %v801
        %v820 = vtanh.pop %v806
        %v821 = vtanh.pop %v811
        %v822 = vld [vmem:[%s636 + $0x40] sm:$0xff]
        %v823 = vld [vmem:[%s636 + $0x48] sm:$0xff]
        %825 = vset.pattern.permute.xlu0 64
        %826 = vperm.xlu0 %825, %v822
        %v827 = vpop.permute.xlu0 %826
        %830 = vset.pattern.permute.xlu0 64
        %831 = vperm.xlu0 %830, %v823
        %v832 = vpop.permute.xlu0 %831
        %v834 = vsel %vm546, %v822, 0
        %v836 = vsel %vm546, %v823, 0
        %838 = vmatprep.subr.mxu0 0.0
        %839 = vmatpush1.msra.mxu0 %v814
        %840 = vmatprep.subr.mxu0 0.0
        %841 = vmatpush1.msra.mxu0 %v815
        %842 = vmatprep.subr.mxu0 0.0
        %843 = vmatpush1.msra.mxu0 %v816
        %844 = vmatprep.subr.mxu0 0.0
        %845 = vmatpush1.msra.mxu0 %v817
        %846 = vmatprep.subr.mxu0 0.0
        %847 = vmatpush1.msra.mxu0 %v818
        %848 = vmatprep.subr.mxu0 0.0
        %849 = vmatpush1.msra.mxu0 %v819
        %850 = vmatprep.subr.mxu0 0.0
        %851 = vmatpush1.msra.mxu0 %v820
        %852 = vmatprep.subr.mxu0 0.0
        %853 = vmatpush1.msra.mxu0 %v821
        %854 = vmatprep.subr.mxu0 0.0
        %855 = vmatpush1.msra.mxu0 0.0
        %856 = vmatprep.subr.mxu0 0.0
        %857 = vmatpush1.msra.mxu0 0.0
        %858 = vmatprep.subr.mxu0 0.0
        %859 = vmatpush1.msra.mxu0 0.0
        %860 = vmatprep.subr.mxu0 0.0
        %861 = vmatpush1.msra.mxu0 0.0
        %862 = vmatprep.subr.mxu0 0.0
        %863 = vmatpush1.msra.mxu0 0.0
        %864 = vmatprep.subr.mxu0 0.0
        %865 = vmatpush1.msra.mxu0 0.0
        %866 = vmatprep.subr.mxu0 0.0
        %867 = vmatpush1.msra.mxu0 0.0
        %868 = vmatprep.subr.mxu0 0.0
        %869 = vmatpush1.msra.mxu0 0.0
        %870 = vmatprep.subr.mxu0 0.0
        %871 = vmatpush1.msra.mxu0 0.0
        %872 = vmatprep.subr.mxu0 0.0
        %873 = vmatpush1.msra.mxu0 0.0
        %874 = vmatprep.subr.mxu0 0.0
        %875 = vmatpush1.msra.mxu0 0.0
        %876 = vmatprep.subr.mxu0 0.0
        %877 = vmatpush1.msra.mxu0 0.0
        %878 = vmatprep.subr.mxu0 0.0
        %879 = vmatpush1.msra.mxu0 0.0
        %880 = vmatprep.subr.mxu0 0.0
        %881 = vmatpush1.msra.mxu0 0.0
        %882 = vmatprep.subr.mxu0 0.0
        %883 = vmatpush1.msra.mxu0 0.0
        %884 = vmatprep.subr.mxu0 0.0
        %885 = vmatpush1.msra.mxu0 0.0
        %886 = vmatprep.subr.mxu0 0.0
        %887 = vmatpush1.msra.mxu0 0.0
        %888 = vmatprep.subr.mxu0 0.0
        %889 = vmatpush1.msra.mxu0 0.0
        %890 = vmatprep.subr.mxu0 0.0
        %891 = vmatpush1.msra.mxu0 0.0
        %892 = vmatprep.subr.mxu0 0.0
        %893 = vmatpush1.msra.mxu0 0.0
        %894 = vmatprep.subr.mxu0 0.0
        %895 = vmatpush1.msra.mxu0 0.0
        %896 = vmatprep.subr.mxu0 0.0
        %897 = vmatpush1.msra.mxu0 0.0
        %898 = vmatprep.subr.mxu0 0.0
        %899 = vmatpush1.msra.mxu0 0.0
        %900 = vmatprep.subr.mxu0 0.0
        %901 = vmatpush1.msra.mxu0 0.0
        %902 = vmatprep.mubr.f32.mxu0 0.0
        %903 = vmatmul.mubr.f32.gmra.mrb[0].mxu0 %v834
        %v904 = vpop.f32.mrb[0].mxu0
        %v905 = vadd.f32 %v827, %v904
        %v906 = vpop.f32.mrb[0].mxu0
        %907 = vmatprep.mubr.f32.mxu0 0.0
        %908 = vmatmul.mubr.f32.gmra.mrb[0].mxu0 %v836
        %v909 = vpop.f32.mrb[0].mxu0
        %v910 = vadd.f32 %v832, %v909
        %v911 = vpop.f32.mrb[0].mxu0
        %912 = vdwg.mxu0
        %v913 = vtanh.pop %v905
        %v914 = vmul.f32 %v913, 1.442695
        %v915 = vpow.pop %v914
        %v916 = vmul.f32 %v350, %v915
        %v919 = vrot.slane %v905, 5
        %v920 = vrot.slane %v910, 5
        %v921 = vsel %vm687, %v919, %v920
        %v923 = vadd.f32 %v916, %v921
        %s924 = scalar_lea.vmem %s3, 160
        %v925 = vld [vmem:[%s924] sm:$0xff]
        %v926 = vld [vmem:[%s924 + $0x8] sm:$0xff]
        %v927 = vld [vmem:[%s924 + $0x10] sm:$0xff]
        %v928 = vld [vmem:[%s924 + $0x18] sm:$0xff]
        %v929 = vld [vmem:[%s924 + $0x20] sm:$0xff]
        %v930 = vld [vmem:[%s924 + $0x28] sm:$0xff]
        %v931 = vld [vmem:[%s924 + $0x30] sm:$0xff]
        %v932 = vld [vmem:[%s924 + $0x38] sm:$0xff]
        %934 = vset.pattern.permute.xlu0 5
        %935 = vperm.xlu0 %934, %v925
        %v936 = vpop.permute.xlu0 %935
        %939 = vset.pattern.permute.xlu0 5
        %940 = vperm.xlu0 %939, %v926
        %v941 = vpop.permute.xlu0 %940
        %944 = vset.pattern.permute.xlu0 5
        %945 = vperm.xlu0 %944, %v927
        %v946 = vpop.permute.xlu0 %945
        %949 = vset.pattern.permute.xlu0 5
        %950 = vperm.xlu0 %949, %v928
        %v951 = vpop.permute.xlu0 %950
        %954 = vset.pattern.permute.xlu0 5
        %955 = vperm.xlu0 %954, %v929
        %v956 = vpop.permute.xlu0 %955
        %959 = vset.pattern.permute.xlu0 5
        %960 = vperm.xlu0 %959, %v930
        %v961 = vpop.permute.xlu0 %960
        %964 = vset.pattern.permute.xlu0 5
        %965 = vperm.xlu0 %964, %v931
        %v966 = vpop.permute.xlu0 %965
        %969 = vset.pattern.permute.xlu0 5
        %970 = vperm.xlu0 %969, %v932
        %v971 = vpop.permute.xlu0 %970
        %v973 = vsel %vm400, %v925, 0
        %v975 = vsel %vm400, %v926, 0
        %v977 = vsel %vm400, %v927, 0
        %v979 = vsel %vm400, %v928, 0
        %v981 = vsel %vm400, %v929, 0
        %v983 = vsel %vm400, %v930, 0
        %v985 = vsel %vm400, %v931, 0
        %v987 = vsel %vm400, %v932, 0
        %v990 = vsel %vm417, %v923, 0
        %992 = vmatprep.subr.mxu0 0.0
        %993 = vmatpush1.msra.mxu0 %v990
        %994 = vmatprep.subr.mxu0 0.0
        %995 = vmatpush1.msra.mxu0 0.0
        %996 = vmatprep.subr.mxu0 0.0
        %997 = vmatpush1.msra.mxu0 0.0
        %998 = vmatprep.subr.mxu0 0.0
        %999 = vmatpush1.msra.mxu0 0.0
        %1000 = vmatprep.subr.mxu0 0.0
        %1001 = vmatpush1.msra.mxu0 0.0
        %1002 = vmatprep.subr.mxu0 0.0
        %1003 = vmatpush1.msra.mxu0 0.0
        %1004 = vmatprep.subr.mxu0 0.0
        %1005 = vmatpush1.msra.mxu0 0.0
        %1006 = vmatprep.subr.mxu0 0.0
        %1007 = vmatpush1.msra.mxu0 0.0
        %1008 = vmatprep.subr.mxu0 0.0
        %1009 = vmatpush1.msra.mxu0 0.0
        %1010 = vmatprep.subr.mxu0 0.0
        %1011 = vmatpush1.msra.mxu0 0.0
        %1012 = vmatprep.subr.mxu0 0.0
        %1013 = vmatpush1.msra.mxu0 0.0
        %1014 = vmatprep.subr.mxu0 0.0
        %1015 = vmatpush1.msra.mxu0 0.0
        %1016 = vmatprep.subr.mxu0 0.0
        %1017 = vmatpush1.msra.mxu0 0.0
        %1018 = vmatprep.subr.mxu0 0.0
        %1019 = vmatpush1.msra.mxu0 0.0
        %1020 = vmatprep.subr.mxu0 0.0
        %1021 = vmatpush1.msra.mxu0 0.0
        %1022 = vmatprep.subr.mxu0 0.0
        %1023 = vmatpush1.msra.mxu0 0.0
        %1024 = vmatprep.subr.mxu0 0.0
        %1025 = vmatpush1.msra.mxu0 0.0
        %1026 = vmatprep.subr.mxu0 0.0
        %1027 = vmatpush1.msra.mxu0 0.0
        %1028 = vmatprep.subr.mxu0 0.0
        %1029 = vmatpush1.msra.mxu0 0.0
        %1030 = vmatprep.subr.mxu0 0.0
        %1031 = vmatpush1.msra.mxu0 0.0
        %1032 = vmatprep.subr.mxu0 0.0
        %1033 = vmatpush1.msra.mxu0 0.0
        %1034 = vmatprep.subr.mxu0 0.0
        %1035 = vmatpush1.msra.mxu0 0.0
        %1036 = vmatprep.subr.mxu0 0.0
        %1037 = vmatpush1.msra.mxu0 0.0
        %1038 = vmatprep.subr.mxu0 0.0
        %1039 = vmatpush1.msra.mxu0 0.0
        %1040 = vmatprep.subr.mxu0 0.0
        %1041 = vmatpush1.msra.mxu0 0.0
        %1042 = vmatprep.subr.mxu0 0.0
        %1043 = vmatpush1.msra.mxu0 0.0
        %1044 = vmatprep.subr.mxu0 0.0
        %1045 = vmatpush1.msra.mxu0 0.0
        %1046 = vmatprep.subr.mxu0 0.0
        %1047 = vmatpush1.msra.mxu0 0.0
        %1048 = vmatprep.subr.mxu0 0.0
        %1049 = vmatpush1.msra.mxu0 0.0
        %1050 = vmatprep.subr.mxu0 0.0
        %1051 = vmatpush1.msra.mxu0 0.0
        %1052 = vmatprep.subr.mxu0 0.0
        %1053 = vmatpush1.msra.mxu0 0.0
        %1054 = vmatprep.subr.mxu0 0.0
        %1055 = vmatpush1.msra.mxu0 0.0
        %1056 = vmatprep.mubr.f32.mxu0 0.0
        %1057 = vmatmul.mubr.f32.gmra.mrb[0].mxu0 %v973
        %v1058 = vpop.f32.mrb[0].mxu0
        %v1059 = vadd.f32 %v936, %v1058
        %v1060 = vpop.f32.mrb[0].mxu0
        %1061 = vmatprep.mubr.f32.mxu0 0.0
        %1062 = vmatmul.mubr.f32.gmra.mrb[0].mxu0 %v975
        %v1063 = vpop.f32.mrb[0].mxu0
        %v1064 = vadd.f32 %v941, %v1063
        %v1065 = vpop.f32.mrb[0].mxu0
        %1066 = vmatprep.mubr.f32.mxu0 0.0
        %1067 = vmatmul.mubr.f32.gmra.mrb[0].mxu0 %v977
        %v1068 = vpop.f32.mrb[0].mxu0
        %v1069 = vadd.f32 %v946, %v1068
        %v1070 = vpop.f32.mrb[0].mxu0
        %1071 = vmatprep.mubr.f32.mxu0 0.0
        %1072 = vmatmul.mubr.f32.gmra.mrb[0].mxu0 %v979
        %v1073 = vpop.f32.mrb[0].mxu0
        %v1074 = vadd.f32 %v951, %v1073
        %v1075 = vpop.f32.mrb[0].mxu0
        %1076 = vmatprep.mubr.f32.mxu0 0.0
        %1077 = vmatmul.mubr.f32.gmra.mrb[0].mxu0 %v981
        %v1078 = vpop.f32.mrb[0].mxu0
        %v1079 = vadd.f32 %v956, %v1078
        %v1080 = vpop.f32.mrb[0].mxu0
        %1081 = vmatprep.mubr.f32.mxu0 0.0
        %1082 = vmatmul.mubr.f32.gmra.mrb[0].mxu0 %v983
        %v1083 = vpop.f32.mrb[0].mxu0
        %v1084 = vadd.f32 %v961, %v1083
        %v1085 = vpop.f32.mrb[0].mxu0
        %1086 = vmatprep.mubr.f32.mxu0 0.0
        %1087 = vmatmul.mubr.f32.gmra.mrb[0].mxu0 %v985
        %v1088 = vpop.f32.mrb[0].mxu0
        %v1089 = vadd.f32 %v966, %v1088
        %v1090 = vpop.f32.mrb[0].mxu0
        %1091 = vmatprep.mubr.f32.mxu0 0.0
        %1092 = vmatmul.mubr.f32.gmra.mrb[0].mxu0 %v987
        %v1093 = vpop.f32.mrb[0].mxu0
        %v1094 = vadd.f32 %v971, %v1093
        %v1095 = vpop.f32.mrb[0].mxu0
        %1096 = vdwg.mxu0
        %v1097 = vtanh.pop %v1059
        %v1098 = vtanh.pop %v1064
        %v1099 = vtanh.pop %v1069
        %v1100 = vtanh.pop %v1074
        %v1101 = vtanh.pop %v1079
        %v1102 = vtanh.pop %v1084
        %v1103 = vtanh.pop %v1089
        %v1104 = vtanh.pop %v1094
        %v1105 = vld [vmem:[%s924 + $0x40] sm:$0xff]
        %v1106 = vld [vmem:[%s924 + $0x48] sm:$0xff]
        %1108 = vset.pattern.permute.xlu0 64
        %1109 = vperm.xlu0 %1108, %v1105
        %v1110 = vpop.permute.xlu0 %1109
        %1113 = vset.pattern.permute.xlu0 64
        %1114 = vperm.xlu0 %1113, %v1106
        %v1115 = vpop.permute.xlu0 %1114
        %v1117 = vsel %vm546, %v1105, 0
        %v1119 = vsel %vm546, %v1106, 0
        %1121 = vmatprep.subr.mxu0 0.0
        %1122 = vmatpush1.msra.mxu0 %v1097
        %1123 = vmatprep.subr.mxu0 0.0
        %1124 = vmatpush1.msra.mxu0 %v1098
        %1125 = vmatprep.subr.mxu0 0.0
        %1126 = vmatpush1.msra.mxu0 %v1099
        %1127 = vmatprep.subr.mxu0 0.0
        %1128 = vmatpush1.msra.mxu0 %v1100
        %1129 = vmatprep.subr.mxu0 0.0
        %1130 = vmatpush1.msra.mxu0 %v1101
        %1131 = vmatprep.subr.mxu0 0.0
        %1132 = vmatpush1.msra.mxu0 %v1102
        %1133 = vmatprep.subr.mxu0 0.0
        %1134 = vmatpush1.msra.mxu0 %v1103
        %1135 = vmatprep.subr.mxu0 0.0
        %1136 = vmatpush1.msra.mxu0 %v1104
        %1137 = vmatprep.subr.mxu0 0.0
        %1138 = vmatpush1.msra.mxu0 0.0
        %1139 = vmatprep.subr.mxu0 0.0
        %1140 = vmatpush1.msra.mxu0 0.0
        %1141 = vmatprep.subr.mxu0 0.0
        %1142 = vmatpush1.msra.mxu0 0.0
        %1143 = vmatprep.subr.mxu0 0.0
        %1144 = vmatpush1.msra.mxu0 0.0
        %1145 = vmatprep.subr.mxu0 0.0
        %1146 = vmatpush1.msra.mxu0 0.0
        %1147 = vmatprep.subr.mxu0 0.0
        %1148 = vmatpush1.msra.mxu0 0.0
        %1149 = vmatprep.subr.mxu0 0.0
        %1150 = vmatpush1.msra.mxu0 0.0
        %1151 = vmatprep.subr.mxu0 0.0
        %1152 = vmatpush1.msra.mxu0 0.0
        %1153 = vmatprep.subr.mxu0 0.0
        %1154 = vmatpush1.msra.mxu0 0.0
        %1155 = vmatprep.subr.mxu0 0.0
        %1156 = vmatpush1.msra.mxu0 0.0
        %1157 = vmatprep.subr.mxu0 0.0
        %1158 = vmatpush1.msra.mxu0 0.0
        %1159 = vmatprep.subr.mxu0 0.0
        %1160 = vmatpush1.msra.mxu0 0.0
        %1161 = vmatprep.subr.mxu0 0.0
        %1162 = vmatpush1.msra.mxu0 0.0
        %1163 = vmatprep.subr.mxu0 0.0
        %1164 = vmatpush1.msra.mxu0 0.0
        %1165 = vmatprep.subr.mxu0 0.0
        %1166 = vmatpush1.msra.mxu0 0.0
        %1167 = vmatprep.subr.mxu0 0.0
        %1168 = vmatpush1.msra.mxu0 0.0
        %1169 = vmatprep.subr.mxu0 0.0
        %1170 = vmatpush1.msra.mxu0 0.0
        %1171 = vmatprep.subr.mxu0 0.0
        %1172 = vmatpush1.msra.mxu0 0.0
        %1173 = vmatprep.subr.mxu0 0.0
        %1174 = vmatpush1.msra.mxu0 0.0
        %1175 = vmatprep.subr.mxu0 0.0
        %1176 = vmatpush1.msra.mxu0 0.0
        %1177 = vmatprep.subr.mxu0 0.0
        %1178 = vmatpush1.msra.mxu0 0.0
        %1179 = vmatprep.subr.mxu0 0.0
        %1180 = vmatpush1.msra.mxu0 0.0
        %1181 = vmatprep.subr.mxu0 0.0
        %1182 = vmatpush1.msra.mxu0 0.0
        %1183 = vmatprep.subr.mxu0 0.0
        %1184 = vmatpush1.msra.mxu0 0.0
        %1185 = vmatprep.mubr.f32.mxu0 0.0
        %1186 = vmatmul.mubr.f32.gmra.mrb[0].mxu0 %v1117
        %v1187 = vpop.f32.mrb[0].mxu0
        %v1188 = vadd.f32 %v1110, %v1187
        %v1189 = vpop.f32.mrb[0].mxu0
        %1190 = vmatprep.mubr.f32.mxu0 0.0
        %1191 = vmatmul.mubr.f32.gmra.mrb[0].mxu0 %v1119
        %v1192 = vpop.f32.mrb[0].mxu0
        %v1193 = vadd.f32 %v1115, %v1192
        %v1194 = vpop.f32.mrb[0].mxu0
        %1195 = vdwg.mxu0
        %v1196 = vtanh.pop %v1188
        %v1197 = vmul.f32 %v1196, 1.442695
        %v1198 = vpow.pop %v1197
        %v1200 = vrot.slane %v1198, 3
        %v1202 = vmul.f32 %v634, %v1200
        %v1203 = vmul.f32 %v635, %v1200
        %v1204 = vadd.f32 %v1202, %v1188
        %v1205 = vadd.f32 %v1203, %v1193
        %s1206 = scalar_lea.vmem %s3, 240
        %v1207 = vld [vmem:[%s1206] sm:$0xff]
        %v1208 = vld [vmem:[%s1206 + $0x8] sm:$0xff]
        %v1209 = vld [vmem:[%s1206 + $0x10] sm:$0xff]
        %v1210 = vld [vmem:[%s1206 + $0x18] sm:$0xff]
        %v1211 = vld [vmem:[%s1206 + $0x20] sm:$0xff]
        %v1212 = vld [vmem:[%s1206 + $0x28] sm:$0xff]
        %v1213 = vld [vmem:[%s1206 + $0x30] sm:$0xff]
        %v1214 = vld [vmem:[%s1206 + $0x38] sm:$0xff]
        %1216 = vset.pattern.permute.xlu0 5
        %1217 = vperm.xlu0 %1216, %v1207
        %v1218 = vpop.permute.xlu0 %1217
        %1221 = vset.pattern.permute.xlu0 5
        %1222 = vperm.xlu0 %1221, %v1208
        %v1223 = vpop.permute.xlu0 %1222
        %1226 = vset.pattern.permute.xlu0 5
        %1227 = vperm.xlu0 %1226, %v1209
        %v1228 = vpop.permute.xlu0 %1227
        %1231 = vset.pattern.permute.xlu0 5
        %1232 = vperm.xlu0 %1231, %v1210
        %v1233 = vpop.permute.xlu0 %1232
        %1236 = vset.pattern.permute.xlu0 5
        %1237 = vperm.xlu0 %1236, %v1211
        %v1238 = vpop.permute.xlu0 %1237
        %1241 = vset.pattern.permute.xlu0 5
        %1242 = vperm.xlu0 %1241, %v1212
        %v1243 = vpop.permute.xlu0 %1242
        %1246 = vset.pattern.permute.xlu0 5
        %1247 = vperm.xlu0 %1246, %v1213
        %v1248 = vpop.permute.xlu0 %1247
        %1251 = vset.pattern.permute.xlu0 5
        %1252 = vperm.xlu0 %1251, %v1214
        %v1253 = vpop.permute.xlu0 %1252
        %v1257 = vrot.slane %v1204, 5
        %v1258 = vrot.slane %v1205, 5
        %v1259 = vsel %vm687, %v1257, %v1258
        %v1260 = vsel %vm400, %v1207, 0
        %v1262 = vsel %vm400, %v1208, 0
        %v1264 = vsel %vm400, %v1209, 0
        %v1266 = vsel %vm400, %v1210, 0
        %v1268 = vsel %vm400, %v1211, 0
        %v1270 = vsel %vm400, %v1212, 0
        %v1272 = vsel %vm400, %v1213, 0
        %v1274 = vsel %vm400, %v1214, 0
        %v1276 = vsel %vm417, %v1259, 0
        %1278 = vmatprep.subr.mxu0 0.0
        %1279 = vmatpush1.msra.mxu0 %v1276
        %1280 = vmatprep.subr.mxu0 0.0
        %1281 = vmatpush1.msra.mxu0 0.0
        %1282 = vmatprep.subr.mxu0 0.0
        %1283 = vmatpush1.msra.mxu0 0.0
        %1284 = vmatprep.subr.mxu0 0.0
        %1285 = vmatpush1.msra.mxu0 0.0
        %1286 = vmatprep.subr.mxu0 0.0
        %1287 = vmatpush1.msra.mxu0 0.0
        %1288 = vmatprep.subr.mxu0 0.0
        %1289 = vmatpush1.msra.mxu0 0.0
        %1290 = vmatprep.subr.mxu0 0.0
        %1291 = vmatpush1.msra.mxu0 0.0
        %1292 = vmatprep.subr.mxu0 0.0
        %1293 = vmatpush1.msra.mxu0 0.0
        %1294 = vmatprep.subr.mxu0 0.0
        %1295 = vmatpush1.msra.mxu0 0.0
        %1296 = vmatprep.subr.mxu0 0.0
        %1297 = vmatpush1.msra.mxu0 0.0
        %1298 = vmatprep.subr.mxu0 0.0
        %1299 = vmatpush1.msra.mxu0 0.0
        %1300 = vmatprep.subr.mxu0 0.0
        %1301 = vmatpush1.msra.mxu0 0.0
        %1302 = vmatprep.subr.mxu0 0.0
        %1303 = vmatpush1.msra.mxu0 0.0
        %1304 = vmatprep.subr.mxu0 0.0
        %1305 = vmatpush1.msra.mxu0 0.0
        %1306 = vmatprep.subr.mxu0 0.0
        %1307 = vmatpush1.msra.mxu0 0.0
        %1308 = vmatprep.subr.mxu0 0.0
        %1309 = vmatpush1.msra.mxu0 0.0
        %1310 = vmatprep.subr.mxu0 0.0
        %1311 = vmatpush1.msra.mxu0 0.0
        %1312 = vmatprep.subr.mxu0 0.0
        %1313 = vmatpush1.msra.mxu0 0.0
        %1314 = vmatprep.subr.mxu0 0.0
        %1315 = vmatpush1.msra.mxu0 0.0
        %1316 = vmatprep.subr.mxu0 0.0
        %1317 = vmatpush1.msra.mxu0 0.0
        %1318 = vmatprep.subr.mxu0 0.0
        %1319 = vmatpush1.msra.mxu0 0.0
        %1320 = vmatprep.subr.mxu0 0.0
        %1321 = vmatpush1.msra.mxu0 0.0
        %1322 = vmatprep.subr.mxu0 0.0
        %1323 = vmatpush1.msra.mxu0 0.0
        %1324 = vmatprep.subr.mxu0 0.0
        %1325 = vmatpush1.msra.mxu0 0.0
        %1326 = vmatprep.subr.mxu0 0.0
        %1327 = vmatpush1.msra.mxu0 0.0
        %1328 = vmatprep.subr.mxu0 0.0
        %1329 = vmatpush1.msra.mxu0 0.0
        %1330 = vmatprep.subr.mxu0 0.0
        %1331 = vmatpush1.msra.mxu0 0.0
        %1332 = vmatprep.subr.mxu0 0.0
        %1333 = vmatpush1.msra.mxu0 0.0
        %1334 = vmatprep.subr.mxu0 0.0
        %1335 = vmatpush1.msra.mxu0 0.0
        %1336 = vmatprep.subr.mxu0 0.0
        %1337 = vmatpush1.msra.mxu0 0.0
        %1338 = vmatprep.subr.mxu0 0.0
        %1339 = vmatpush1.msra.mxu0 0.0
        %1340 = vmatprep.subr.mxu0 0.0
        %1341 = vmatpush1.msra.mxu0 0.0
        %1342 = vmatprep.mubr.f32.mxu0 0.0
        %1343 = vmatmul.mubr.f32.gmra.mrb[0].mxu0 %v1260
        %v1344 = vpop.f32.mrb[0].mxu0
        %v1345 = vadd.f32 %v1218, %v1344
        %v1346 = vpop.f32.mrb[0].mxu0
        %1347 = vmatprep.mubr.f32.mxu0 0.0
        %1348 = vmatmul.mubr.f32.gmra.mrb[0].mxu0 %v1262
        %v1349 = vpop.f32.mrb[0].mxu0
        %v1350 = vadd.f32 %v1223, %v1349
        %v1351 = vpop.f32.mrb[0].mxu0
        %1352 = vmatprep.mubr.f32.mxu0 0.0
        %1353 = vmatmul.mubr.f32.gmra.mrb[0].mxu0 %v1264
        %v1354 = vpop.f32.mrb[0].mxu0
        %v1355 = vadd.f32 %v1228, %v1354
        %v1356 = vpop.f32.mrb[0].mxu0
        %1357 = vmatprep.mubr.f32.mxu0 0.0
        %1358 = vmatmul.mubr.f32.gmra.mrb[0].mxu0 %v1266
        %v1359 = vpop.f32.mrb[0].mxu0
        %v1360 = vadd.f32 %v1233, %v1359
        %v1361 = vpop.f32.mrb[0].mxu0
        %1362 = vmatprep.mubr.f32.mxu0 0.0
        %1363 = vmatmul.mubr.f32.gmra.mrb[0].mxu0 %v1268
        %v1364 = vpop.f32.mrb[0].mxu0
        %v1365 = vadd.f32 %v1238, %v1364
        %v1366 = vpop.f32.mrb[0].mxu0
        %1367 = vmatprep.mubr.f32.mxu0 0.0
        %1368 = vmatmul.mubr.f32.gmra.mrb[0].mxu0 %v1270
        %v1369 = vpop.f32.mrb[0].mxu0
        %v1370 = vadd.f32 %v1243, %v1369
        %v1371 = vpop.f32.mrb[0].mxu0
        %1372 = vmatprep.mubr.f32.mxu0 0.0
        %1373 = vmatmul.mubr.f32.gmra.mrb[0].mxu0 %v1272
        %v1374 = vpop.f32.mrb[0].mxu0
        %v1375 = vadd.f32 %v1248, %v1374
        %v1376 = vpop.f32.mrb[0].mxu0
        %1377 = vmatprep.mubr.f32.mxu0 0.0
        %1378 = vmatmul.mubr.f32.gmra.mrb[0].mxu0 %v1274
        %v1379 = vpop.f32.mrb[0].mxu0
        %v1380 = vadd.f32 %v1253, %v1379
        %v1381 = vpop.f32.mrb[0].mxu0
        %1382 = vdwg.mxu0
        %v1383 = vtanh.pop %v1345
        %v1384 = vtanh.pop %v1350
        %v1385 = vtanh.pop %v1355
        %v1386 = vtanh.pop %v1360
        %v1387 = vtanh.pop %v1365
        %v1388 = vtanh.pop %v1370
        %v1389 = vtanh.pop %v1375
        %v1390 = vtanh.pop %v1380
        %v1391 = vld [vmem:[%s1206 + $0x40] sm:$0xff]
        %v1392 = vld [vmem:[%s1206 + $0x48] sm:$0xff]
        %1394 = vset.pattern.permute.xlu0 64
        %1395 = vperm.xlu0 %1394, %v1391
        %v1396 = vpop.permute.xlu0 %1395
        %1399 = vset.pattern.permute.xlu0 64
        %1400 = vperm.xlu0 %1399, %v1392
        %v1401 = vpop.permute.xlu0 %1400
        %v1403 = vsel %vm546, %v1391, 0
        %v1405 = vsel %vm546, %v1392, 0
        %1407 = vmatprep.subr.mxu0 0.0
        %1408 = vmatpush1.msra.mxu0 %v1383
        %1409 = vmatprep.subr.mxu0 0.0
        %1410 = vmatpush1.msra.mxu0 %v1384
        %1411 = vmatprep.subr.mxu0 0.0
        %1412 = vmatpush1.msra.mxu0 %v1385
        %1413 = vmatprep.subr.mxu0 0.0
        %1414 = vmatpush1.msra.mxu0 %v1386
        %1415 = vmatprep.subr.mxu0 0.0
        %1416 = vmatpush1.msra.mxu0 %v1387
        %1417 = vmatprep.subr.mxu0 0.0
        %1418 = vmatpush1.msra.mxu0 %v1388
        %1419 = vmatprep.subr.mxu0 0.0
        %1420 = vmatpush1.msra.mxu0 %v1389
        %1421 = vmatprep.subr.mxu0 0.0
        %1422 = vmatpush1.msra.mxu0 %v1390
        %1423 = vmatprep.subr.mxu0 0.0
        %1424 = vmatpush1.msra.mxu0 0.0
        %1425 = vmatprep.subr.mxu0 0.0
        %1426 = vmatpush1.msra.mxu0 0.0
        %1427 = vmatprep.subr.mxu0 0.0
        %1428 = vmatpush1.msra.mxu0 0.0
        %1429 = vmatprep.subr.mxu0 0.0
        %1430 = vmatpush1.msra.mxu0 0.0
        %1431 = vmatprep.subr.mxu0 0.0
        %1432 = vmatpush1.msra.mxu0 0.0
        %1433 = vmatprep.subr.mxu0 0.0
        %1434 = vmatpush1.msra.mxu0 0.0
        %1435 = vmatprep.subr.mxu0 0.0
        %1436 = vmatpush1.msra.mxu0 0.0
        %1437 = vmatprep.subr.mxu0 0.0
        %1438 = vmatpush1.msra.mxu0 0.0
        %1439 = vmatprep.subr.mxu0 0.0
        %1440 = vmatpush1.msra.mxu0 0.0
        %1441 = vmatprep.subr.mxu0 0.0
        %1442 = vmatpush1.msra.mxu0 0.0
        %1443 = vmatprep.subr.mxu0 0.0
        %1444 = vmatpush1.msra.mxu0 0.0
        %1445 = vmatprep.subr.mxu0 0.0
        %1446 = vmatpush1.msra.mxu0 0.0
        %1447 = vmatprep.subr.mxu0 0.0
        %1448 = vmatpush1.msra.mxu0 0.0
        %1449 = vmatprep.subr.mxu0 0.0
        %1450 = vmatpush1.msra.mxu0 0.0
        %1451 = vmatprep.subr.mxu0 0.0
        %1452 = vmatpush1.msra.mxu0 0.0
        %1453 = vmatprep.subr.mxu0 0.0
        %1454 = vmatpush1.msra.mxu0 0.0
        %1455 = vmatprep.subr.mxu0 0.0
        %1456 = vmatpush1.msra.mxu0 0.0
        %1457 = vmatprep.subr.mxu0 0.0
        %1458 = vmatpush1.msra.mxu0 0.0
        %1459 = vmatprep.subr.mxu0 0.0
        %1460 = vmatpush1.msra.mxu0 0.0
        %1461 = vmatprep.subr.mxu0 0.0
        %1462 = vmatpush1.msra.mxu0 0.0
        %1463 = vmatprep.subr.mxu0 0.0
        %1464 = vmatpush1.msra.mxu0 0.0
        %1465 = vmatprep.subr.mxu0 0.0
        %1466 = vmatpush1.msra.mxu0 0.0
        %1467 = vmatprep.subr.mxu0 0.0
        %1468 = vmatpush1.msra.mxu0 0.0
        %1469 = vmatprep.subr.mxu0 0.0
        %1470 = vmatpush1.msra.mxu0 0.0
        %1471 = vmatprep.mubr.f32.mxu0 0.0
        %1472 = vmatmul.mubr.f32.gmra.mrb[0].mxu0 %v1403
        %v1473 = vpop.f32.mrb[0].mxu0
        %v1474 = vadd.f32 %v1396, %v1473
        %v1475 = vpop.f32.mrb[0].mxu0
        %1476 = vmatprep.mubr.f32.mxu0 0.0
        %1477 = vmatmul.mubr.f32.gmra.mrb[0].mxu0 %v1405
        %v1478 = vpop.f32.mrb[0].mxu0
        %v1479 = vadd.f32 %v1401, %v1478
        %v1480 = vpop.f32.mrb[0].mxu0
        %1481 = vdwg.mxu0
        %v1482 = vtanh.pop %v1474
        %v1483 = vmul.f32 %v1482, 1.442695
        %v1484 = vpow.pop %v1483
        %v1485 = vmul.f32 %v923, %v1484
        %v1488 = vrot.slane %v1474, 5
        %v1489 = vrot.slane %v1479, 5
        %v1490 = vsel %vm687, %v1488, %v1489
        %v1492 = vadd.f32 %v1485, %v1490
        %s1493 = scalar_lea.vmem %s3, 320
        %v1494 = vld [vmem:[%s1493] sm:$0xff]
        %v1495 = vld [vmem:[%s1493 + $0x8] sm:$0xff]
        %v1496 = vld [vmem:[%s1493 + $0x10] sm:$0xff]
        %v1497 = vld [vmem:[%s1493 + $0x18] sm:$0xff]
        %v1498 = vld [vmem:[%s1493 + $0x20] sm:$0xff]
        %v1499 = vld [vmem:[%s1493 + $0x28] sm:$0xff]
        %v1500 = vld [vmem:[%s1493 + $0x30] sm:$0xff]
        %v1501 = vld [vmem:[%s1493 + $0x38] sm:$0xff]
        %1503 = vset.pattern.permute.xlu0 5
        %1504 = vperm.xlu0 %1503, %v1494
        %v1505 = vpop.permute.xlu0 %1504
        %1508 = vset.pattern.permute.xlu0 5
        %1509 = vperm.xlu0 %1508, %v1495
        %v1510 = vpop.permute.xlu0 %1509
        %1513 = vset.pattern.permute.xlu0 5
        %1514 = vperm.xlu0 %1513, %v1496
        %v1515 = vpop.permute.xlu0 %1514
        %1518 = vset.pattern.permute.xlu0 5
        %1519 = vperm.xlu0 %1518, %v1497
        %v1520 = vpop.permute.xlu0 %1519
        %1523 = vset.pattern.permute.xlu0 5
        %1524 = vperm.xlu0 %1523, %v1498
        %v1525 = vpop.permute.xlu0 %1524
        %1528 = vset.pattern.permute.xlu0 5
        %1529 = vperm.xlu0 %1528, %v1499
        %v1530 = vpop.permute.xlu0 %1529
        %1533 = vset.pattern.permute.xlu0 5
        %1534 = vperm.xlu0 %1533, %v1500
        %v1535 = vpop.permute.xlu0 %1534
        %1538 = vset.pattern.permute.xlu0 5
        %1539 = vperm.xlu0 %1538, %v1501
        %v1540 = vpop.permute.xlu0 %1539
        %v1542 = vsel %vm400, %v1494, 0
        %v1544 = vsel %vm400, %v1495, 0
        %v1546 = vsel %vm400, %v1496, 0
        %v1548 = vsel %vm400, %v1497, 0
        %v1550 = vsel %vm400, %v1498, 0
        %v1552 = vsel %vm400, %v1499, 0
        %v1554 = vsel %vm400, %v1500, 0
        %v1556 = vsel %vm400, %v1501, 0
        %v1559 = vsel %vm417, %v1492, 0
        %1561 = vmatprep.subr.mxu0 0.0
        %1562 = vmatpush1.msra.mxu0 %v1559
        %1563 = vmatprep.subr.mxu0 0.0
        %1564 = vmatpush1.msra.mxu0 0.0
        %1565 = vmatprep.subr.mxu0 0.0
        %1566 = vmatpush1.msra.mxu0 0.0
        %1567 = vmatprep.subr.mxu0 0.0
        %1568 = vmatpush1.msra.mxu0 0.0
        %1569 = vmatprep.subr.mxu0 0.0
        %1570 = vmatpush1.msra.mxu0 0.0
        %1571 = vmatprep.subr.mxu0 0.0
        %1572 = vmatpush1.msra.mxu0 0.0
        %1573 = vmatprep.subr.mxu0 0.0
        %1574 = vmatpush1.msra.mxu0 0.0
        %1575 = vmatprep.subr.mxu0 0.0
        %1576 = vmatpush1.msra.mxu0 0.0
        %1577 = vmatprep.subr.mxu0 0.0
        %1578 = vmatpush1.msra.mxu0 0.0
        %1579 = vmatprep.subr.mxu0 0.0
        %1580 = vmatpush1.msra.mxu0 0.0
        %1581 = vmatprep.subr.mxu0 0.0
        %1582 = vmatpush1.msra.mxu0 0.0
        %1583 = vmatprep.subr.mxu0 0.0
        %1584 = vmatpush1.msra.mxu0 0.0
        %1585 = vmatprep.subr.mxu0 0.0
        %1586 = vmatpush1.msra.mxu0 0.0
        %1587 = vmatprep.subr.mxu0 0.0
        %1588 = vmatpush1.msra.mxu0 0.0
        %1589 = vmatprep.subr.mxu0 0.0
        %1590 = vmatpush1.msra.mxu0 0.0
        %1591 = vmatprep.subr.mxu0 0.0
        %1592 = vmatpush1.msra.mxu0 0.0
        %1593 = vmatprep.subr.mxu0 0.0
        %1594 = vmatpush1.msra.mxu0 0.0
        %1595 = vmatprep.subr.mxu0 0.0
        %1596 = vmatpush1.msra.mxu0 0.0
        %1597 = vmatprep.subr.mxu0 0.0
        %1598 = vmatpush1.msra.mxu0 0.0
        %1599 = vmatprep.subr.mxu0 0.0
        %1600 = vmatpush1.msra.mxu0 0.0
        %1601 = vmatprep.subr.mxu0 0.0
        %1602 = vmatpush1.msra.mxu0 0.0
        %1603 = vmatprep.subr.mxu0 0.0
        %1604 = vmatpush1.msra.mxu0 0.0
        %1605 = vmatprep.subr.mxu0 0.0
        %1606 = vmatpush1.msra.mxu0 0.0
        %1607 = vmatprep.subr.mxu0 0.0
        %1608 = vmatpush1.msra.mxu0 0.0
        %1609 = vmatprep.subr.mxu0 0.0
        %1610 = vmatpush1.msra.mxu0 0.0
        %1611 = vmatprep.subr.mxu0 0.0
        %1612 = vmatpush1.msra.mxu0 0.0
        %1613 = vmatprep.subr.mxu0 0.0
        %1614 = vmatpush1.msra.mxu0 0.0
        %1615 = vmatprep.subr.mxu0 0.0
        %1616 = vmatpush1.msra.mxu0 0.0
        %1617 = vmatprep.subr.mxu0 0.0
        %1618 = vmatpush1.msra.mxu0 0.0
        %1619 = vmatprep.subr.mxu0 0.0
        %1620 = vmatpush1.msra.mxu0 0.0
        %1621 = vmatprep.subr.mxu0 0.0
        %1622 = vmatpush1.msra.mxu0 0.0
        %1623 = vmatprep.subr.mxu0 0.0
        %1624 = vmatpush1.msra.mxu0 0.0
        %1625 = vmatprep.mubr.f32.mxu0 0.0
        %1626 = vmatmul.mubr.f32.gmra.mrb[0].mxu0 %v1542
        %v1627 = vpop.f32.mrb[0].mxu0
        %v1628 = vadd.f32 %v1505, %v1627
        %v1629 = vpop.f32.mrb[0].mxu0
        %1630 = vmatprep.mubr.f32.mxu0 0.0
        %1631 = vmatmul.mubr.f32.gmra.mrb[0].mxu0 %v1544
        %v1632 = vpop.f32.mrb[0].mxu0
        %v1633 = vadd.f32 %v1510, %v1632
        %v1634 = vpop.f32.mrb[0].mxu0
        %1635 = vmatprep.mubr.f32.mxu0 0.0
        %1636 = vmatmul.mubr.f32.gmra.mrb[0].mxu0 %v1546
        %v1637 = vpop.f32.mrb[0].mxu0
        %v1638 = vadd.f32 %v1515, %v1637
        %v1639 = vpop.f32.mrb[0].mxu0
        %1640 = vmatprep.mubr.f32.mxu0 0.0
        %1641 = vmatmul.mubr.f32.gmra.mrb[0].mxu0 %v1548
        %v1642 = vpop.f32.mrb[0].mxu0
        %v1643 = vadd.f32 %v1520, %v1642
        %v1644 = vpop.f32.mrb[0].mxu0
        %1645 = vmatprep.mubr.f32.mxu0 0.0
        %1646 = vmatmul.mubr.f32.gmra.mrb[0].mxu0 %v1550
        %v1647 = vpop.f32.mrb[0].mxu0
        %v1648 = vadd.f32 %v1525, %v1647
        %v1649 = vpop.f32.mrb[0].mxu0
        %1650 = vmatprep.mubr.f32.mxu0 0.0
        %1651 = vmatmul.mubr.f32.gmra.mrb[0].mxu0 %v1552
        %v1652 = vpop.f32.mrb[0].mxu0
        %v1653 = vadd.f32 %v1530, %v1652
        %v1654 = vpop.f32.mrb[0].mxu0
        %1655 = vmatprep.mubr.f32.mxu0 0.0
        %1656 = vmatmul.mubr.f32.gmra.mrb[0].mxu0 %v1554
        %v1657 = vpop.f32.mrb[0].mxu0
        %v1658 = vadd.f32 %v1535, %v1657
        %v1659 = vpop.f32.mrb[0].mxu0
        %1660 = vmatprep.mubr.f32.mxu0 0.0
        %1661 = vmatmul.mubr.f32.gmra.mrb[0].mxu0 %v1556
        %v1662 = vpop.f32.mrb[0].mxu0
        %v1663 = vadd.f32 %v1540, %v1662
        %v1664 = vpop.f32.mrb[0].mxu0
        %1665 = vdwg.mxu0
        %v1666 = vtanh.pop %v1628
        %v1667 = vtanh.pop %v1633
        %v1668 = vtanh.pop %v1638
        %v1669 = vtanh.pop %v1643
        %v1670 = vtanh.pop %v1648
        %v1671 = vtanh.pop %v1653
        %v1672 = vtanh.pop %v1658
        %v1673 = vtanh.pop %v1663
        %v1674 = vld [vmem:[%s1493 + $0x40] sm:$0xff]
        %v1675 = vld [vmem:[%s1493 + $0x48] sm:$0xff]
        %1677 = vset.pattern.permute.xlu0 64
        %1678 = vperm.xlu0 %1677, %v1674
        %v1679 = vpop.permute.xlu0 %1678
        %1682 = vset.pattern.permute.xlu0 64
        %1683 = vperm.xlu0 %1682, %v1675
        %v1684 = vpop.permute.xlu0 %1683
        %v1686 = vsel %vm546, %v1674, 0
        %v1688 = vsel %vm546, %v1675, 0
        %1690 = vmatprep.subr.mxu0 0.0
        %1691 = vmatpush1.msra.mxu0 %v1666
        %1692 = vmatprep.subr.mxu0 0.0
        %1693 = vmatpush1.msra.mxu0 %v1667
        %1694 = vmatprep.subr.mxu0 0.0
        %1695 = vmatpush1.msra.mxu0 %v1668
        %1696 = vmatprep.subr.mxu0 0.0
        %1697 = vmatpush1.msra.mxu0 %v1669
        %1698 = vmatprep.subr.mxu0 0.0
        %1699 = vmatpush1.msra.mxu0 %v1670
        %1700 = vmatprep.subr.mxu0 0.0
        %1701 = vmatpush1.msra.mxu0 %v1671
        %1702 = vmatprep.subr.mxu0 0.0
        %1703 = vmatpush1.msra.mxu0 %v1672
        %1704 = vmatprep.subr.mxu0 0.0
        %1705 = vmatpush1.msra.mxu0 %v1673
        %1706 = vmatprep.subr.mxu0 0.0
        %1707 = vmatpush1.msra.mxu0 0.0
        %1708 = vmatprep.subr.mxu0 0.0
        %1709 = vmatpush1.msra.mxu0 0.0
        %1710 = vmatprep.subr.mxu0 0.0
        %1711 = vmatpush1.msra.mxu0 0.0
        %1712 = vmatprep.subr.mxu0 0.0
        %1713 = vmatpush1.msra.mxu0 0.0
        %1714 = vmatprep.subr.mxu0 0.0
        %1715 = vmatpush1.msra.mxu0 0.0
        %1716 = vmatprep.subr.mxu0 0.0
        %1717 = vmatpush1.msra.mxu0 0.0
        %1718 = vmatprep.subr.mxu0 0.0
        %1719 = vmatpush1.msra.mxu0 0.0
        %1720 = vmatprep.subr.mxu0 0.0
        %1721 = vmatpush1.msra.mxu0 0.0
        %1722 = vmatprep.subr.mxu0 0.0
        %1723 = vmatpush1.msra.mxu0 0.0
        %1724 = vmatprep.subr.mxu0 0.0
        %1725 = vmatpush1.msra.mxu0 0.0
        %1726 = vmatprep.subr.mxu0 0.0
        %1727 = vmatpush1.msra.mxu0 0.0
        %1728 = vmatprep.subr.mxu0 0.0
        %1729 = vmatpush1.msra.mxu0 0.0
        %1730 = vmatprep.subr.mxu0 0.0
        %1731 = vmatpush1.msra.mxu0 0.0
        %1732 = vmatprep.subr.mxu0 0.0
        %1733 = vmatpush1.msra.mxu0 0.0
        %1734 = vmatprep.subr.mxu0 0.0
        %1735 = vmatpush1.msra.mxu0 0.0
        %1736 = vmatprep.subr.mxu0 0.0
        %1737 = vmatpush1.msra.mxu0 0.0
        %1738 = vmatprep.subr.mxu0 0.0
        %1739 = vmatpush1.msra.mxu0 0.0
        %1740 = vmatprep.subr.mxu0 0.0
        %1741 = vmatpush1.msra.mxu0 0.0
        %1742 = vmatprep.subr.mxu0 0.0
        %1743 = vmatpush1.msra.mxu0 0.0
        %1744 = vmatprep.subr.mxu0 0.0
        %1745 = vmatpush1.msra.mxu0 0.0
        %1746 = vmatprep.subr.mxu0 0.0
        %1747 = vmatpush1.msra.mxu0 0.0
        %1748 = vmatprep.subr.mxu0 0.0
        %1749 = vmatpush1.msra.mxu0 0.0
        %1750 = vmatprep.subr.mxu0 0.0
        %1751 = vmatpush1.msra.mxu0 0.0
        %1752 = vmatprep.subr.mxu0 0.0
        %1753 = vmatpush1.msra.mxu0 0.0
        %1754 = vmatprep.mubr.f32.mxu0 0.0
        %1755 = vmatmul.mubr.f32.gmra.mrb[0].mxu0 %v1686
        %v1756 = vpop.f32.mrb[0].mxu0
        %v1757 = vadd.f32 %v1679, %v1756
        %v1758 = vpop.f32.mrb[0].mxu0
        %1759 = vmatprep.mubr.f32.mxu0 0.0
        %1760 = vmatmul.mubr.f32.gmra.mrb[0].mxu0 %v1688
        %v1761 = vpop.f32.mrb[0].mxu0
        %v1762 = vadd.f32 %v1684, %v1761
        %v1763 = vpop.f32.mrb[0].mxu0
        %1764 = vdwg.mxu0
        %v1765 = vtanh.pop %v1757
        %v1766 = vmul.f32 %v1765, 1.442695
        %v1767 = vpow.pop %v1766
        %v1769 = vrot.slane %v1767, 3
        %v1771 = vmul.f32 %v1204, %v1769
        %v1772 = vmul.f32 %v1205, %v1769
        %v1773 = vadd.f32 %v1771, %v1757
        %v1774 = vadd.f32 %v1772, %v1762
        %s1775 = scalar_lea.vmem %s3, 400
        %v1776 = vld [vmem:[%s1775] sm:$0xff]
        %v1777 = vld [vmem:[%s1775 + $0x8] sm:$0xff]
        %v1778 = vld [vmem:[%s1775 + $0x10] sm:$0xff]
        %v1779 = vld [vmem:[%s1775 + $0x18] sm:$0xff]
        %v1780 = vld [vmem:[%s1775 + $0x20] sm:$0xff]
        %v1781 = vld [vmem:[%s1775 + $0x28] sm:$0xff]
        %v1782 = vld [vmem:[%s1775 + $0x30] sm:$0xff]
        %v1783 = vld [vmem:[%s1775 + $0x38] sm:$0xff]
        %1785 = vset.pattern.permute.xlu0 5
        %1786 = vperm.xlu0 %1785, %v1776
        %v1787 = vpop.permute.xlu0 %1786
        %1790 = vset.pattern.permute.xlu0 5
        %1791 = vperm.xlu0 %1790, %v1777
        %v1792 = vpop.permute.xlu0 %1791
        %1795 = vset.pattern.permute.xlu0 5
        %1796 = vperm.xlu0 %1795, %v1778
        %v1797 = vpop.permute.xlu0 %1796
        %1800 = vset.pattern.permute.xlu0 5
        %1801 = vperm.xlu0 %1800, %v1779
        %v1802 = vpop.permute.xlu0 %1801
        %1805 = vset.pattern.permute.xlu0 5
        %1806 = vperm.xlu0 %1805, %v1780
        %v1807 = vpop.permute.xlu0 %1806
        %1810 = vset.pattern.permute.xlu0 5
        %1811 = vperm.xlu0 %1810, %v1781
        %v1812 = vpop.permute.xlu0 %1811
        %1815 = vset.pattern.permute.xlu0 5
        %1816 = vperm.xlu0 %1815, %v1782
        %v1817 = vpop.permute.xlu0 %1816
        %1820 = vset.pattern.permute.xlu0 5
        %1821 = vperm.xlu0 %1820, %v1783
        %v1822 = vpop.permute.xlu0 %1821
        %v1826 = vrot.slane %v1773, 5
        %v1827 = vrot.slane %v1774, 5
        %v1828 = vsel %vm687, %v1826, %v1827
        %v1829 = vsel %vm400, %v1776, 0
        %v1831 = vsel %vm400, %v1777, 0
        %v1833 = vsel %vm400, %v1778, 0
        %v1835 = vsel %vm400, %v1779, 0
        %v1837 = vsel %vm400, %v1780, 0
        %v1839 = vsel %vm400, %v1781, 0
        %v1841 = vsel %vm400, %v1782, 0
        %v1843 = vsel %vm400, %v1783, 0
        %v1845 = vsel %vm417, %v1828, 0
        %1847 = vmatprep.subr.mxu0 0.0
        %1848 = vmatpush1.msra.mxu0 %v1845
        %1849 = vmatprep.subr.mxu0 0.0
        %1850 = vmatpush1.msra.mxu0 0.0
        %1851 = vmatprep.subr.mxu0 0.0
        %1852 = vmatpush1.msra.mxu0 0.0
        %1853 = vmatprep.subr.mxu0 0.0
        %1854 = vmatpush1.msra.mxu0 0.0
        %1855 = vmatprep.subr.mxu0 0.0
        %1856 = vmatpush1.msra.mxu0 0.0
        %1857 = vmatprep.subr.mxu0 0.0
        %1858 = vmatpush1.msra.mxu0 0.0
        %1859 = vmatprep.subr.mxu0 0.0
        %1860 = vmatpush1.msra.mxu0 0.0
        %1861 = vmatprep.subr.mxu0 0.0
        %1862 = vmatpush1.msra.mxu0 0.0
        %1863 = vmatprep.subr.mxu0 0.0
        %1864 = vmatpush1.msra.mxu0 0.0
        %1865 = vmatprep.subr.mxu0 0.0
        %1866 = vmatpush1.msra.mxu0 0.0
        %1867 = vmatprep.subr.mxu0 0.0
        %1868 = vmatpush1.msra.mxu0 0.0
        %1869 = vmatprep.subr.mxu0 0.0
        %1870 = vmatpush1.msra.mxu0 0.0
        %1871 = vmatprep.subr.mxu0 0.0
        %1872 = vmatpush1.msra.mxu0 0.0
        %1873 = vmatprep.subr.mxu0 0.0
        %1874 = vmatpush1.msra.mxu0 0.0
        %1875 = vmatprep.subr.mxu0 0.0
        %1876 = vmatpush1.msra.mxu0 0.0
        %1877 = vmatprep.subr.mxu0 0.0
        %1878 = vmatpush1.msra.mxu0 0.0
        %1879 = vmatprep.subr.mxu0 0.0
        %1880 = vmatpush1.msra.mxu0 0.0
        %1881 = vmatprep.subr.mxu0 0.0
        %1882 = vmatpush1.msra.mxu0 0.0
        %1883 = vmatprep.subr.mxu0 0.0
        %1884 = vmatpush1.msra.mxu0 0.0
        %1885 = vmatprep.subr.mxu0 0.0
        %1886 = vmatpush1.msra.mxu0 0.0
        %1887 = vmatprep.subr.mxu0 0.0
        %1888 = vmatpush1.msra.mxu0 0.0
        %1889 = vmatprep.subr.mxu0 0.0
        %1890 = vmatpush1.msra.mxu0 0.0
        %1891 = vmatprep.subr.mxu0 0.0
        %1892 = vmatpush1.msra.mxu0 0.0
        %1893 = vmatprep.subr.mxu0 0.0
        %1894 = vmatpush1.msra.mxu0 0.0
        %1895 = vmatprep.subr.mxu0 0.0
        %1896 = vmatpush1.msra.mxu0 0.0
        %1897 = vmatprep.subr.mxu0 0.0
        %1898 = vmatpush1.msra.mxu0 0.0
        %1899 = vmatprep.subr.mxu0 0.0
        %1900 = vmatpush1.msra.mxu0 0.0
        %1901 = vmatprep.subr.mxu0 0.0
        %1902 = vmatpush1.msra.mxu0 0.0
        %1903 = vmatprep.subr.mxu0 0.0
        %1904 = vmatpush1.msra.mxu0 0.0
        %1905 = vmatprep.subr.mxu0 0.0
        %1906 = vmatpush1.msra.mxu0 0.0
        %1907 = vmatprep.subr.mxu0 0.0
        %1908 = vmatpush1.msra.mxu0 0.0
        %1909 = vmatprep.subr.mxu0 0.0
        %1910 = vmatpush1.msra.mxu0 0.0
        %1911 = vmatprep.mubr.f32.mxu0 0.0
        %1912 = vmatmul.mubr.f32.gmra.mrb[0].mxu0 %v1829
        %v1913 = vpop.f32.mrb[0].mxu0
        %v1914 = vadd.f32 %v1787, %v1913
        %v1915 = vpop.f32.mrb[0].mxu0
        %1916 = vmatprep.mubr.f32.mxu0 0.0
        %1917 = vmatmul.mubr.f32.gmra.mrb[0].mxu0 %v1831
        %v1918 = vpop.f32.mrb[0].mxu0
        %v1919 = vadd.f32 %v1792, %v1918
        %v1920 = vpop.f32.mrb[0].mxu0
        %1921 = vmatprep.mubr.f32.mxu0 0.0
        %1922 = vmatmul.mubr.f32.gmra.mrb[0].mxu0 %v1833
        %v1923 = vpop.f32.mrb[0].mxu0
        %v1924 = vadd.f32 %v1797, %v1923
        %v1925 = vpop.f32.mrb[0].mxu0
        %1926 = vmatprep.mubr.f32.mxu0 0.0
        %1927 = vmatmul.mubr.f32.gmra.mrb[0].mxu0 %v1835
        %v1928 = vpop.f32.mrb[0].mxu0
        %v1929 = vadd.f32 %v1802, %v1928
        %v1930 = vpop.f32.mrb[0].mxu0
        %1931 = vmatprep.mubr.f32.mxu0 0.0
        %1932 = vmatmul.mubr.f32.gmra.mrb[0].mxu0 %v1837
        %v1933 = vpop.f32.mrb[0].mxu0
        %v1934 = vadd.f32 %v1807, %v1933
        %v1935 = vpop.f32.mrb[0].mxu0
        %1936 = vmatprep.mubr.f32.mxu0 0.0
        %1937 = vmatmul.mubr.f32.gmra.mrb[0].mxu0 %v1839
        %v1938 = vpop.f32.mrb[0].mxu0
        %v1939 = vadd.f32 %v1812, %v1938
        %v1940 = vpop.f32.mrb[0].mxu0
        %1941 = vmatprep.mubr.f32.mxu0 0.0
        %1942 = vmatmul.mubr.f32.gmra.mrb[0].mxu0 %v1841
        %v1943 = vpop.f32.mrb[0].mxu0
        %v1944 = vadd.f32 %v1817, %v1943
        %v1945 = vpop.f32.mrb[0].mxu0
        %1946 = vmatprep.mubr.f32.mxu0 0.0
        %1947 = vmatmul.mubr.f32.gmra.mrb[0].mxu0 %v1843
        %v1948 = vpop.f32.mrb[0].mxu0
        %v1949 = vadd.f32 %v1822, %v1948
        %v1950 = vpop.f32.mrb[0].mxu0
        %1951 = vdwg.mxu0
        %v1952 = vtanh.pop %v1914
        %v1953 = vtanh.pop %v1919
        %v1954 = vtanh.pop %v1924
        %v1955 = vtanh.pop %v1929
        %v1956 = vtanh.pop %v1934
        %v1957 = vtanh.pop %v1939
        %v1958 = vtanh.pop %v1944
        %v1959 = vtanh.pop %v1949
        %v1960 = vld [vmem:[%s1775 + $0x40] sm:$0xff]
        %v1961 = vld [vmem:[%s1775 + $0x48] sm:$0xff]
        %1963 = vset.pattern.permute.xlu0 64
        %1964 = vperm.xlu0 %1963, %v1960
        %v1965 = vpop.permute.xlu0 %1964
        %1968 = vset.pattern.permute.xlu0 64
        %1969 = vperm.xlu0 %1968, %v1961
        %v1970 = vpop.permute.xlu0 %1969
        %v1972 = vsel %vm546, %v1960, 0
        %v1974 = vsel %vm546, %v1961, 0
        %1976 = vmatprep.subr.mxu0 0.0
        %1977 = vmatpush1.msra.mxu0 %v1952
        %1978 = vmatprep.subr.mxu0 0.0
        %1979 = vmatpush1.msra.mxu0 %v1953
        %1980 = vmatprep.subr.mxu0 0.0
        %1981 = vmatpush1.msra.mxu0 %v1954
        %1982 = vmatprep.subr.mxu0 0.0
        %1983 = vmatpush1.msra.mxu0 %v1955
        %1984 = vmatprep.subr.mxu0 0.0
        %1985 = vmatpush1.msra.mxu0 %v1956
        %1986 = vmatprep.subr.mxu0 0.0
        %1987 = vmatpush1.msra.mxu0 %v1957
        %1988 = vmatprep.subr.mxu0 0.0
        %1989 = vmatpush1.msra.mxu0 %v1958
        %1990 = vmatprep.subr.mxu0 0.0
        %1991 = vmatpush1.msra.mxu0 %v1959
        %1992 = vmatprep.subr.mxu0 0.0
        %1993 = vmatpush1.msra.mxu0 0.0
        %1994 = vmatprep.subr.mxu0 0.0
        %1995 = vmatpush1.msra.mxu0 0.0
        %1996 = vmatprep.subr.mxu0 0.0
        %1997 = vmatpush1.msra.mxu0 0.0
        %1998 = vmatprep.subr.mxu0 0.0
        %1999 = vmatpush1.msra.mxu0 0.0
        %2000 = vmatprep.subr.mxu0 0.0
        %2001 = vmatpush1.msra.mxu0 0.0
        %2002 = vmatprep.subr.mxu0 0.0
        %2003 = vmatpush1.msra.mxu0 0.0
        %2004 = vmatprep.subr.mxu0 0.0
        %2005 = vmatpush1.msra.mxu0 0.0
        %2006 = vmatprep.subr.mxu0 0.0
        %2007 = vmatpush1.msra.mxu0 0.0
        %2008 = vmatprep.subr.mxu0 0.0
        %2009 = vmatpush1.msra.mxu0 0.0
        %2010 = vmatprep.subr.mxu0 0.0
        %2011 = vmatpush1.msra.mxu0 0.0
        %2012 = vmatprep.subr.mxu0 0.0
        %2013 = vmatpush1.msra.mxu0 0.0
        %2014 = vmatprep.subr.mxu0 0.0
        %2015 = vmatpush1.msra.mxu0 0.0
        %2016 = vmatprep.subr.mxu0 0.0
        %2017 = vmatpush1.msra.mxu0 0.0
        %2018 = vmatprep.subr.mxu0 0.0
        %2019 = vmatpush1.msra.mxu0 0.0
        %2020 = vmatprep.subr.mxu0 0.0
        %2021 = vmatpush1.msra.mxu0 0.0
        %2022 = vmatprep.subr.mxu0 0.0
        %2023 = vmatpush1.msra.mxu0 0.0
        %2024 = vmatprep.subr.mxu0 0.0
        %2025 = vmatpush1.msra.mxu0 0.0
        %2026 = vmatprep.subr.mxu0 0.0
        %2027 = vmatpush1.msra.mxu0 0.0
        %2028 = vmatprep.subr.mxu0 0.0
        %2029 = vmatpush1.msra.mxu0 0.0
        %2030 = vmatprep.subr.mxu0 0.0
        %2031 = vmatpush1.msra.mxu0 0.0
        %2032 = vmatprep.subr.mxu0 0.0
        %2033 = vmatpush1.msra.mxu0 0.0
        %2034 = vmatprep.subr.mxu0 0.0
        %2035 = vmatpush1.msra.mxu0 0.0
        %2036 = vmatprep.subr.mxu0 0.0
        %2037 = vmatpush1.msra.mxu0 0.0
        %2038 = vmatprep.subr.mxu0 0.0
        %2039 = vmatpush1.msra.mxu0 0.0
        %2040 = vmatprep.mubr.f32.mxu0 0.0
        %2041 = vmatmul.mubr.f32.gmra.mrb[0].mxu0 %v1972
        %v2042 = vpop.f32.mrb[0].mxu0
        %v2043 = vadd.f32 %v1965, %v2042
        %v2044 = vpop.f32.mrb[0].mxu0
        %2045 = vmatprep.mubr.f32.mxu0 0.0
        %2046 = vmatmul.mubr.f32.gmra.mrb[0].mxu0 %v1974
        %v2047 = vpop.f32.mrb[0].mxu0
        %v2048 = vadd.f32 %v1970, %v2047
        %v2049 = vpop.f32.mrb[0].mxu0
        %2050 = vdwg.mxu0
        %v2051 = vtanh.pop %v2043
        %v2052 = vmul.f32 %v2051, 1.442695
        %v2053 = vpow.pop %v2052
        %v2054 = vmul.f32 %v1492, %v2053
        %v2057 = vrot.slane %v2043, 5
        %v2058 = vrot.slane %v2048, 5
        %v2059 = vsel %vm687, %v2057, %v2058
        %v2061 = vadd.f32 %v2054, %v2059
        %s2062 = scalar_lea.vmem %s3, 480
        %v2063 = vld [vmem:[%s2062] sm:$0xff]
        %v2064 = vld [vmem:[%s2062 + $0x8] sm:$0xff]
        %v2065 = vld [vmem:[%s2062 + $0x10] sm:$0xff]
        %v2066 = vld [vmem:[%s2062 + $0x18] sm:$0xff]
        %v2067 = vld [vmem:[%s2062 + $0x20] sm:$0xff]
        %v2068 = vld [vmem:[%s2062 + $0x28] sm:$0xff]
        %v2069 = vld [vmem:[%s2062 + $0x30] sm:$0xff]
        %v2070 = vld [vmem:[%s2062 + $0x38] sm:$0xff]
        %2072 = vset.pattern.permute.xlu0 5
        %2073 = vperm.xlu0 %2072, %v2063
        %v2074 = vpop.permute.xlu0 %2073
        %2077 = vset.pattern.permute.xlu0 5
        %2078 = vperm.xlu0 %2077, %v2064
        %v2079 = vpop.permute.xlu0 %2078
        %2082 = vset.pattern.permute.xlu0 5
        %2083 = vperm.xlu0 %2082, %v2065
        %v2084 = vpop.permute.xlu0 %2083
        %2087 = vset.pattern.permute.xlu0 5
        %2088 = vperm.xlu0 %2087, %v2066
        %v2089 = vpop.permute.xlu0 %2088
        %2092 = vset.pattern.permute.xlu0 5
        %2093 = vperm.xlu0 %2092, %v2067
        %v2094 = vpop.permute.xlu0 %2093
        %2097 = vset.pattern.permute.xlu0 5
        %2098 = vperm.xlu0 %2097, %v2068
        %v2099 = vpop.permute.xlu0 %2098
        %2102 = vset.pattern.permute.xlu0 5
        %2103 = vperm.xlu0 %2102, %v2069
        %v2104 = vpop.permute.xlu0 %2103
        %2107 = vset.pattern.permute.xlu0 5
        %2108 = vperm.xlu0 %2107, %v2070
        %v2109 = vpop.permute.xlu0 %2108
        %v2111 = vsel %vm400, %v2063, 0
        %v2113 = vsel %vm400, %v2064, 0
        %v2115 = vsel %vm400, %v2065, 0
        %v2117 = vsel %vm400, %v2066, 0
        %v2119 = vsel %vm400, %v2067, 0
        %v2121 = vsel %vm400, %v2068, 0
        %v2123 = vsel %vm400, %v2069, 0
        %v2125 = vsel %vm400, %v2070, 0
        %v2128 = vsel %vm417, %v2061, 0
        %2130 = vmatprep.subr.mxu0 0.0
        %2131 = vmatpush1.msra.mxu0 %v2128
        %2132 = vmatprep.subr.mxu0 0.0
        %2133 = vmatpush1.msra.mxu0 0.0
        %2134 = vmatprep.subr.mxu0 0.0
        %2135 = vmatpush1.msra.mxu0 0.0
        %2136 = vmatprep.subr.mxu0 0.0
        %2137 = vmatpush1.msra.mxu0 0.0
        %2138 = vmatprep.subr.mxu0 0.0
        %2139 = vmatpush1.msra.mxu0 0.0
        %2140 = vmatprep.subr.mxu0 0.0
        %2141 = vmatpush1.msra.mxu0 0.0
        %2142 = vmatprep.subr.mxu0 0.0
        %2143 = vmatpush1.msra.mxu0 0.0
        %2144 = vmatprep.subr.mxu0 0.0
        %2145 = vmatpush1.msra.mxu0 0.0
        %2146 = vmatprep.subr.mxu0 0.0
        %2147 = vmatpush1.msra.mxu0 0.0
        %2148 = vmatprep.subr.mxu0 0.0
        %2149 = vmatpush1.msra.mxu0 0.0
        %2150 = vmatprep.subr.mxu0 0.0
        %2151 = vmatpush1.msra.mxu0 0.0
        %2152 = vmatprep.subr.mxu0 0.0
        %2153 = vmatpush1.msra.mxu0 0.0
        %2154 = vmatprep.subr.mxu0 0.0
        %2155 = vmatpush1.msra.mxu0 0.0
        %2156 = vmatprep.subr.mxu0 0.0
        %2157 = vmatpush1.msra.mxu0 0.0
        %2158 = vmatprep.subr.mxu0 0.0
        %2159 = vmatpush1.msra.mxu0 0.0
        %2160 = vmatprep.subr.mxu0 0.0
        %2161 = vmatpush1.msra.mxu0 0.0
        %2162 = vmatprep.subr.mxu0 0.0
        %2163 = vmatpush1.msra.mxu0 0.0
        %2164 = vmatprep.subr.mxu0 0.0
        %2165 = vmatpush1.msra.mxu0 0.0
        %2166 = vmatprep.subr.mxu0 0.0
        %2167 = vmatpush1.msra.mxu0 0.0
        %2168 = vmatprep.subr.mxu0 0.0
        %2169 = vmatpush1.msra.mxu0 0.0
        %2170 = vmatprep.subr.mxu0 0.0
        %2171 = vmatpush1.msra.mxu0 0.0
        %2172 = vmatprep.subr.mxu0 0.0
        %2173 = vmatpush1.msra.mxu0 0.0
        %2174 = vmatprep.subr.mxu0 0.0
        %2175 = vmatpush1.msra.mxu0 0.0
        %2176 = vmatprep.subr.mxu0 0.0
        %2177 = vmatpush1.msra.mxu0 0.0
        %2178 = vmatprep.subr.mxu0 0.0
        %2179 = vmatpush1.msra.mxu0 0.0
        %2180 = vmatprep.subr.mxu0 0.0
        %2181 = vmatpush1.msra.mxu0 0.0
        %2182 = vmatprep.subr.mxu0 0.0
        %2183 = vmatpush1.msra.mxu0 0.0
        %2184 = vmatprep.subr.mxu0 0.0
        %2185 = vmatpush1.msra.mxu0 0.0
        %2186 = vmatprep.subr.mxu0 0.0
        %2187 = vmatpush1.msra.mxu0 0.0
        %2188 = vmatprep.subr.mxu0 0.0
        %2189 = vmatpush1.msra.mxu0 0.0
        %2190 = vmatprep.subr.mxu0 0.0
        %2191 = vmatpush1.msra.mxu0 0.0
        %2192 = vmatprep.subr.mxu0 0.0
        %2193 = vmatpush1.msra.mxu0 0.0
        %2194 = vmatprep.mubr.f32.mxu0 0.0
        %2195 = vmatmul.mubr.f32.gmra.mrb[0].mxu0 %v2111
        %v2196 = vpop.f32.mrb[0].mxu0
        %v2197 = vadd.f32 %v2074, %v2196
        %v2198 = vpop.f32.mrb[0].mxu0
        %2199 = vmatprep.mubr.f32.mxu0 0.0
        %2200 = vmatmul.mubr.f32.gmra.mrb[0].mxu0 %v2113
        %v2201 = vpop.f32.mrb[0].mxu0
        %v2202 = vadd.f32 %v2079, %v2201
        %v2203 = vpop.f32.mrb[0].mxu0
        %2204 = vmatprep.mubr.f32.mxu0 0.0
        %2205 = vmatmul.mubr.f32.gmra.mrb[0].mxu0 %v2115
        %v2206 = vpop.f32.mrb[0].mxu0
        %v2207 = vadd.f32 %v2084, %v2206
        %v2208 = vpop.f32.mrb[0].mxu0
        %2209 = vmatprep.mubr.f32.mxu0 0.0
        %2210 = vmatmul.mubr.f32.gmra.mrb[0].mxu0 %v2117
        %v2211 = vpop.f32.mrb[0].mxu0
        %v2212 = vadd.f32 %v2089, %v2211
        %v2213 = vpop.f32.mrb[0].mxu0
        %2214 = vmatprep.mubr.f32.mxu0 0.0
        %2215 = vmatmul.mubr.f32.gmra.mrb[0].mxu0 %v2119
        %v2216 = vpop.f32.mrb[0].mxu0
        %v2217 = vadd.f32 %v2094, %v2216
        %v2218 = vpop.f32.mrb[0].mxu0
        %2219 = vmatprep.mubr.f32.mxu0 0.0
        %2220 = vmatmul.mubr.f32.gmra.mrb[0].mxu0 %v2121
        %v2221 = vpop.f32.mrb[0].mxu0
        %v2222 = vadd.f32 %v2099, %v2221
        %v2223 = vpop.f32.mrb[0].mxu0
        %2224 = vmatprep.mubr.f32.mxu0 0.0
        %2225 = vmatmul.mubr.f32.gmra.mrb[0].mxu0 %v2123
        %v2226 = vpop.f32.mrb[0].mxu0
        %v2227 = vadd.f32 %v2104, %v2226
        %v2228 = vpop.f32.mrb[0].mxu0
        %2229 = vmatprep.mubr.f32.mxu0 0.0
        %2230 = vmatmul.mubr.f32.gmra.mrb[0].mxu0 %v2125
        %v2231 = vpop.f32.mrb[0].mxu0
        %v2232 = vadd.f32 %v2109, %v2231
        %v2233 = vpop.f32.mrb[0].mxu0
        %2234 = vdwg.mxu0
        %v2235 = vtanh.pop %v2197
        %v2236 = vtanh.pop %v2202
        %v2237 = vtanh.pop %v2207
        %v2238 = vtanh.pop %v2212
        %v2239 = vtanh.pop %v2217
        %v2240 = vtanh.pop %v2222
        %v2241 = vtanh.pop %v2227
        %v2242 = vtanh.pop %v2232
        %v2243 = vld [vmem:[%s2062 + $0x40] sm:$0xff]
        %v2244 = vld [vmem:[%s2062 + $0x48] sm:$0xff]
        %2246 = vset.pattern.permute.xlu0 64
        %2247 = vperm.xlu0 %2246, %v2243
        %v2248 = vpop.permute.xlu0 %2247
        %2251 = vset.pattern.permute.xlu0 64
        %2252 = vperm.xlu0 %2251, %v2244
        %v2253 = vpop.permute.xlu0 %2252
        %v2255 = vsel %vm546, %v2243, 0
        %v2257 = vsel %vm546, %v2244, 0
        %2259 = vmatprep.subr.mxu0 0.0
        %2260 = vmatpush1.msra.mxu0 %v2235
        %2261 = vmatprep.subr.mxu0 0.0
        %2262 = vmatpush1.msra.mxu0 %v2236
        %2263 = vmatprep.subr.mxu0 0.0
        %2264 = vmatpush1.msra.mxu0 %v2237
        %2265 = vmatprep.subr.mxu0 0.0
        %2266 = vmatpush1.msra.mxu0 %v2238
        %2267 = vmatprep.subr.mxu0 0.0
        %2268 = vmatpush1.msra.mxu0 %v2239
        %2269 = vmatprep.subr.mxu0 0.0
        %2270 = vmatpush1.msra.mxu0 %v2240
        %2271 = vmatprep.subr.mxu0 0.0
        %2272 = vmatpush1.msra.mxu0 %v2241
        %2273 = vmatprep.subr.mxu0 0.0
        %2274 = vmatpush1.msra.mxu0 %v2242
        %2275 = vmatprep.subr.mxu0 0.0
        %2276 = vmatpush1.msra.mxu0 0.0
        %2277 = vmatprep.subr.mxu0 0.0
        %2278 = vmatpush1.msra.mxu0 0.0
        %2279 = vmatprep.subr.mxu0 0.0
        %2280 = vmatpush1.msra.mxu0 0.0
        %2281 = vmatprep.subr.mxu0 0.0
        %2282 = vmatpush1.msra.mxu0 0.0
        %2283 = vmatprep.subr.mxu0 0.0
        %2284 = vmatpush1.msra.mxu0 0.0
        %2285 = vmatprep.subr.mxu0 0.0
        %2286 = vmatpush1.msra.mxu0 0.0
        %2287 = vmatprep.subr.mxu0 0.0
        %2288 = vmatpush1.msra.mxu0 0.0
        %2289 = vmatprep.subr.mxu0 0.0
        %2290 = vmatpush1.msra.mxu0 0.0
        %2291 = vmatprep.subr.mxu0 0.0
        %2292 = vmatpush1.msra.mxu0 0.0
        %2293 = vmatprep.subr.mxu0 0.0
        %2294 = vmatpush1.msra.mxu0 0.0
        %2295 = vmatprep.subr.mxu0 0.0
        %2296 = vmatpush1.msra.mxu0 0.0
        %2297 = vmatprep.subr.mxu0 0.0
        %2298 = vmatpush1.msra.mxu0 0.0
        %2299 = vmatprep.subr.mxu0 0.0
        %2300 = vmatpush1.msra.mxu0 0.0
        %2301 = vmatprep.subr.mxu0 0.0
        %2302 = vmatpush1.msra.mxu0 0.0
        %2303 = vmatprep.subr.mxu0 0.0
        %2304 = vmatpush1.msra.mxu0 0.0
        %2305 = vmatprep.subr.mxu0 0.0
        %2306 = vmatpush1.msra.mxu0 0.0
        %2307 = vmatprep.subr.mxu0 0.0
        %2308 = vmatpush1.msra.mxu0 0.0
        %2309 = vmatprep.subr.mxu0 0.0
        %2310 = vmatpush1.msra.mxu0 0.0
        %2311 = vmatprep.subr.mxu0 0.0
        %2312 = vmatpush1.msra.mxu0 0.0
        %2313 = vmatprep.subr.mxu0 0.0
        %2314 = vmatpush1.msra.mxu0 0.0
        %2315 = vmatprep.subr.mxu0 0.0
        %2316 = vmatpush1.msra.mxu0 0.0
        %2317 = vmatprep.subr.mxu0 0.0
        %2318 = vmatpush1.msra.mxu0 0.0
        %2319 = vmatprep.subr.mxu0 0.0
        %2320 = vmatpush1.msra.mxu0 0.0
        %2321 = vmatprep.subr.mxu0 0.0
        %2322 = vmatpush1.msra.mxu0 0.0
        %2323 = vmatprep.mubr.f32.mxu0 0.0
        %2324 = vmatmul.mubr.f32.gmra.mrb[0].mxu0 %v2255
        %v2325 = vpop.f32.mrb[0].mxu0
        %v2326 = vadd.f32 %v2248, %v2325
        %v2327 = vpop.f32.mrb[0].mxu0
        %2328 = vmatprep.mubr.f32.mxu0 0.0
        %2329 = vmatmul.mubr.f32.gmra.mrb[0].mxu0 %v2257
        %v2330 = vpop.f32.mrb[0].mxu0
        %v2331 = vadd.f32 %v2253, %v2330
        %v2332 = vpop.f32.mrb[0].mxu0
        %2333 = vdwg.mxu0
        %v2334 = vtanh.pop %v2326
        %v2335 = vmul.f32 %v2334, 1.442695
        %v2336 = vpow.pop %v2335
        %v2338 = vrot.slane %v2336, 3
        %v2340 = vmul.f32 %v1773, %v2338
        %v2341 = vmul.f32 %v1774, %v2338
        %v2342 = vadd.f32 %v2340, %v2326
        %v2343 = vadd.f32 %v2341, %v2331
        %s2344 = scalar_lea.vmem %s3, 560
        %v2345 = vld [vmem:[%s2344] sm:$0xff]
        %v2346 = vld [vmem:[%s2344 + $0x8] sm:$0xff]
        %v2347 = vld [vmem:[%s2344 + $0x10] sm:$0xff]
        %v2348 = vld [vmem:[%s2344 + $0x18] sm:$0xff]
        %v2349 = vld [vmem:[%s2344 + $0x20] sm:$0xff]
        %v2350 = vld [vmem:[%s2344 + $0x28] sm:$0xff]
        %v2351 = vld [vmem:[%s2344 + $0x30] sm:$0xff]
        %v2352 = vld [vmem:[%s2344 + $0x38] sm:$0xff]
        %2354 = vset.pattern.permute.xlu0 5
        %2355 = vperm.xlu0 %2354, %v2345
        %v2356 = vpop.permute.xlu0 %2355
        %2359 = vset.pattern.permute.xlu0 5
        %2360 = vperm.xlu0 %2359, %v2346
        %v2361 = vpop.permute.xlu0 %2360
        %2364 = vset.pattern.permute.xlu0 5
        %2365 = vperm.xlu0 %2364, %v2347
        %v2366 = vpop.permute.xlu0 %2365
        %2369 = vset.pattern.permute.xlu0 5
        %2370 = vperm.xlu0 %2369, %v2348
        %v2371 = vpop.permute.xlu0 %2370
        %2374 = vset.pattern.permute.xlu0 5
        %2375 = vperm.xlu0 %2374, %v2349
        %v2376 = vpop.permute.xlu0 %2375
        %2379 = vset.pattern.permute.xlu0 5
        %2380 = vperm.xlu0 %2379, %v2350
        %v2381 = vpop.permute.xlu0 %2380
        %2384 = vset.pattern.permute.xlu0 5
        %2385 = vperm.xlu0 %2384, %v2351
        %v2386 = vpop.permute.xlu0 %2385
        %2389 = vset.pattern.permute.xlu0 5
        %2390 = vperm.xlu0 %2389, %v2352
        %v2391 = vpop.permute.xlu0 %2390
        %v2395 = vrot.slane %v2342, 5
        %v2396 = vrot.slane %v2343, 5
        %v2397 = vsel %vm687, %v2395, %v2396
        %v2398 = vsel %vm400, %v2345, 0
        %v2400 = vsel %vm400, %v2346, 0
        %v2402 = vsel %vm400, %v2347, 0
        %v2404 = vsel %vm400, %v2348, 0
        %v2406 = vsel %vm400, %v2349, 0
        %v2408 = vsel %vm400, %v2350, 0
        %v2410 = vsel %vm400, %v2351, 0
        %v2412 = vsel %vm400, %v2352, 0
        %v2414 = vsel %vm417, %v2397, 0
        %2416 = vmatprep.subr.mxu0 0.0
        %2417 = vmatpush1.msra.mxu0 %v2414
        %2418 = vmatprep.subr.mxu0 0.0
        %2419 = vmatpush1.msra.mxu0 0.0
        %2420 = vmatprep.subr.mxu0 0.0
        %2421 = vmatpush1.msra.mxu0 0.0
        %2422 = vmatprep.subr.mxu0 0.0
        %2423 = vmatpush1.msra.mxu0 0.0
        %2424 = vmatprep.subr.mxu0 0.0
        %2425 = vmatpush1.msra.mxu0 0.0
        %2426 = vmatprep.subr.mxu0 0.0
        %2427 = vmatpush1.msra.mxu0 0.0
        %2428 = vmatprep.subr.mxu0 0.0
        %2429 = vmatpush1.msra.mxu0 0.0
        %2430 = vmatprep.subr.mxu0 0.0
        %2431 = vmatpush1.msra.mxu0 0.0
        %2432 = vmatprep.subr.mxu0 0.0
        %2433 = vmatpush1.msra.mxu0 0.0
        %2434 = vmatprep.subr.mxu0 0.0
        %2435 = vmatpush1.msra.mxu0 0.0
        %2436 = vmatprep.subr.mxu0 0.0
        %2437 = vmatpush1.msra.mxu0 0.0
        %2438 = vmatprep.subr.mxu0 0.0
        %2439 = vmatpush1.msra.mxu0 0.0
        %2440 = vmatprep.subr.mxu0 0.0
        %2441 = vmatpush1.msra.mxu0 0.0
        %2442 = vmatprep.subr.mxu0 0.0
        %2443 = vmatpush1.msra.mxu0 0.0
        %2444 = vmatprep.subr.mxu0 0.0
        %2445 = vmatpush1.msra.mxu0 0.0
        %2446 = vmatprep.subr.mxu0 0.0
        %2447 = vmatpush1.msra.mxu0 0.0
        %2448 = vmatprep.subr.mxu0 0.0
        %2449 = vmatpush1.msra.mxu0 0.0
        %2450 = vmatprep.subr.mxu0 0.0
        %2451 = vmatpush1.msra.mxu0 0.0
        %2452 = vmatprep.subr.mxu0 0.0
        %2453 = vmatpush1.msra.mxu0 0.0
        %2454 = vmatprep.subr.mxu0 0.0
        %2455 = vmatpush1.msra.mxu0 0.0
        %2456 = vmatprep.subr.mxu0 0.0
        %2457 = vmatpush1.msra.mxu0 0.0
        %2458 = vmatprep.subr.mxu0 0.0
        %2459 = vmatpush1.msra.mxu0 0.0
        %2460 = vmatprep.subr.mxu0 0.0
        %2461 = vmatpush1.msra.mxu0 0.0
        %2462 = vmatprep.subr.mxu0 0.0
        %2463 = vmatpush1.msra.mxu0 0.0
        %2464 = vmatprep.subr.mxu0 0.0
        %2465 = vmatpush1.msra.mxu0 0.0
        %2466 = vmatprep.subr.mxu0 0.0
        %2467 = vmatpush1.msra.mxu0 0.0
        %2468 = vmatprep.subr.mxu0 0.0
        %2469 = vmatpush1.msra.mxu0 0.0
        %2470 = vmatprep.subr.mxu0 0.0
        %2471 = vmatpush1.msra.mxu0 0.0
        %2472 = vmatprep.subr.mxu0 0.0
        %2473 = vmatpush1.msra.mxu0 0.0
        %2474 = vmatprep.subr.mxu0 0.0
        %2475 = vmatpush1.msra.mxu0 0.0
        %2476 = vmatprep.subr.mxu0 0.0
        %2477 = vmatpush1.msra.mxu0 0.0
        %2478 = vmatprep.subr.mxu0 0.0
        %2479 = vmatpush1.msra.mxu0 0.0
        %2480 = vmatprep.mubr.f32.mxu0 0.0
        %2481 = vmatmul.mubr.f32.gmra.mrb[0].mxu0 %v2398
        %v2482 = vpop.f32.mrb[0].mxu0
        %v2483 = vadd.f32 %v2356, %v2482
        %v2484 = vpop.f32.mrb[0].mxu0
        %2485 = vmatprep.mubr.f32.mxu0 0.0
        %2486 = vmatmul.mubr.f32.gmra.mrb[0].mxu0 %v2400
        %v2487 = vpop.f32.mrb[0].mxu0
        %v2488 = vadd.f32 %v2361, %v2487
        %v2489 = vpop.f32.mrb[0].mxu0
        %2490 = vmatprep.mubr.f32.mxu0 0.0
        %2491 = vmatmul.mubr.f32.gmra.mrb[0].mxu0 %v2402
        %v2492 = vpop.f32.mrb[0].mxu0
        %v2493 = vadd.f32 %v2366, %v2492
        %v2494 = vpop.f32.mrb[0].mxu0
        %2495 = vmatprep.mubr.f32.mxu0 0.0
        %2496 = vmatmul.mubr.f32.gmra.mrb[0].mxu0 %v2404
        %v2497 = vpop.f32.mrb[0].mxu0
        %v2498 = vadd.f32 %v2371, %v2497
        %v2499 = vpop.f32.mrb[0].mxu0
        %2500 = vmatprep.mubr.f32.mxu0 0.0
        %2501 = vmatmul.mubr.f32.gmra.mrb[0].mxu0 %v2406
        %v2502 = vpop.f32.mrb[0].mxu0
        %v2503 = vadd.f32 %v2376, %v2502
        %v2504 = vpop.f32.mrb[0].mxu0
        %2505 = vmatprep.mubr.f32.mxu0 0.0
        %2506 = vmatmul.mubr.f32.gmra.mrb[0].mxu0 %v2408
        %v2507 = vpop.f32.mrb[0].mxu0
        %v2508 = vadd.f32 %v2381, %v2507
        %v2509 = vpop.f32.mrb[0].mxu0
        %2510 = vmatprep.mubr.f32.mxu0 0.0
        %2511 = vmatmul.mubr.f32.gmra.mrb[0].mxu0 %v2410
        %v2512 = vpop.f32.mrb[0].mxu0
        %v2513 = vadd.f32 %v2386, %v2512
        %v2514 = vpop.f32.mrb[0].mxu0
        %2515 = vmatprep.mubr.f32.mxu0 0.0
        %2516 = vmatmul.mubr.f32.gmra.mrb[0].mxu0 %v2412
        %v2517 = vpop.f32.mrb[0].mxu0
        %v2518 = vadd.f32 %v2391, %v2517
        %v2519 = vpop.f32.mrb[0].mxu0
        %2520 = vdwg.mxu0
        %v2521 = vtanh.pop %v2483
        %v2522 = vtanh.pop %v2488
        %v2523 = vtanh.pop %v2493
        %v2524 = vtanh.pop %v2498
        %v2525 = vtanh.pop %v2503
        %v2526 = vtanh.pop %v2508
        %v2527 = vtanh.pop %v2513
        %v2528 = vtanh.pop %v2518
        %v2529 = vld [vmem:[%s2344 + $0x40] sm:$0xff]
        %v2530 = vld [vmem:[%s2344 + $0x48] sm:$0xff]
        %2532 = vset.pattern.permute.xlu0 64
        %2533 = vperm.xlu0 %2532, %v2529
        %v2534 = vpop.permute.xlu0 %2533
        %2537 = vset.pattern.permute.xlu0 64
        %2538 = vperm.xlu0 %2537, %v2530
        %v2539 = vpop.permute.xlu0 %2538
        %v2541 = vsel %vm546, %v2529, 0
        %v2543 = vsel %vm546, %v2530, 0
        %2545 = vmatprep.subr.mxu0 0.0
        %2546 = vmatpush1.msra.mxu0 %v2521
        %2547 = vmatprep.subr.mxu0 0.0
        %2548 = vmatpush1.msra.mxu0 %v2522
        %2549 = vmatprep.subr.mxu0 0.0
        %2550 = vmatpush1.msra.mxu0 %v2523
        %2551 = vmatprep.subr.mxu0 0.0
        %2552 = vmatpush1.msra.mxu0 %v2524
        %2553 = vmatprep.subr.mxu0 0.0
        %2554 = vmatpush1.msra.mxu0 %v2525
        %2555 = vmatprep.subr.mxu0 0.0
        %2556 = vmatpush1.msra.mxu0 %v2526
        %2557 = vmatprep.subr.mxu0 0.0
        %2558 = vmatpush1.msra.mxu0 %v2527
        %2559 = vmatprep.subr.mxu0 0.0
        %2560 = vmatpush1.msra.mxu0 %v2528
        %2561 = vmatprep.subr.mxu0 0.0
        %2562 = vmatpush1.msra.mxu0 0.0
        %2563 = vmatprep.subr.mxu0 0.0
        %2564 = vmatpush1.msra.mxu0 0.0
        %2565 = vmatprep.subr.mxu0 0.0
        %2566 = vmatpush1.msra.mxu0 0.0
        %2567 = vmatprep.subr.mxu0 0.0
        %2568 = vmatpush1.msra.mxu0 0.0
        %2569 = vmatprep.subr.mxu0 0.0
        %2570 = vmatpush1.msra.mxu0 0.0
        %2571 = vmatprep.subr.mxu0 0.0
        %2572 = vmatpush1.msra.mxu0 0.0
        %2573 = vmatprep.subr.mxu0 0.0
        %2574 = vmatpush1.msra.mxu0 0.0
        %2575 = vmatprep.subr.mxu0 0.0
        %2576 = vmatpush1.msra.mxu0 0.0
        %2577 = vmatprep.subr.mxu0 0.0
        %2578 = vmatpush1.msra.mxu0 0.0
        %2579 = vmatprep.subr.mxu0 0.0
        %2580 = vmatpush1.msra.mxu0 0.0
        %2581 = vmatprep.subr.mxu0 0.0
        %2582 = vmatpush1.msra.mxu0 0.0
        %2583 = vmatprep.subr.mxu0 0.0
        %2584 = vmatpush1.msra.mxu0 0.0
        %2585 = vmatprep.subr.mxu0 0.0
        %2586 = vmatpush1.msra.mxu0 0.0
        %2587 = vmatprep.subr.mxu0 0.0
        %2588 = vmatpush1.msra.mxu0 0.0
        %2589 = vmatprep.subr.mxu0 0.0
        %2590 = vmatpush1.msra.mxu0 0.0
        %2591 = vmatprep.subr.mxu0 0.0
        %2592 = vmatpush1.msra.mxu0 0.0
        %2593 = vmatprep.subr.mxu0 0.0
        %2594 = vmatpush1.msra.mxu0 0.0
        %2595 = vmatprep.subr.mxu0 0.0
        %2596 = vmatpush1.msra.mxu0 0.0
        %2597 = vmatprep.subr.mxu0 0.0
        %2598 = vmatpush1.msra.mxu0 0.0
        %2599 = vmatprep.subr.mxu0 0.0
        %2600 = vmatpush1.msra.mxu0 0.0
        %2601 = vmatprep.subr.mxu0 0.0
        %2602 = vmatpush1.msra.mxu0 0.0
        %2603 = vmatprep.subr.mxu0 0.0
        %2604 = vmatpush1.msra.mxu0 0.0
        %2605 = vmatprep.subr.mxu0 0.0
        %2606 = vmatpush1.msra.mxu0 0.0
        %2607 = vmatprep.subr.mxu0 0.0
        %2608 = vmatpush1.msra.mxu0 0.0
        %2609 = vmatprep.mubr.f32.mxu0 0.0
        %2610 = vmatmul.mubr.f32.gmra.mrb[0].mxu0 %v2541
        %v2611 = vpop.f32.mrb[0].mxu0
        %v2612 = vadd.f32 %v2534, %v2611
        %v2613 = vpop.f32.mrb[0].mxu0
        %2614 = vmatprep.mubr.f32.mxu0 0.0
        %2615 = vmatmul.mubr.f32.gmra.mrb[0].mxu0 %v2543
        %v2616 = vpop.f32.mrb[0].mxu0
        %v2617 = vadd.f32 %v2539, %v2616
        %v2618 = vpop.f32.mrb[0].mxu0
        %2619 = vdwg.mxu0
        %v2620 = vtanh.pop %v2612
        %v2621 = vmul.f32 %v2620, 1.442695
        %v2622 = vpow.pop %v2621
        %v2623 = vmul.f32 %v2061, %v2622
        %v2626 = vrot.slane %v2612, 5
        %v2627 = vrot.slane %v2617, 5
        %v2628 = vsel %vm687, %v2626, %v2627
        %v2630 = vadd.f32 %v2623, %v2628
        %v2631 = vadd.f32 %v305, %v2630
        %v2633 = vrot.slane %v2630, 2
        %v2635 = vadd.f32 %v2631, %v2633
        %v2636 = vld [vmem:[%s4] sm:$0xff]
        %v2637 = vld [vmem:[%s4 + $0x8] sm:$0xff]
        %v2638 = vld [vmem:[%s4 + $0x10] sm:$0xff]
        %v2639 = vld [vmem:[%s4 + $0x18] sm:$0xff]
        %2641 = vset.pattern.permute.xlu0 0
        %2642 = vperm.xlu0 %2641, %v2636
        %v2643 = vpop.permute.xlu0 %2642
        %2646 = vset.pattern.permute.xlu0 0
        %2647 = vperm.xlu0 %2646, %v2637
        %v2648 = vpop.permute.xlu0 %2647
        %2651 = vset.pattern.permute.xlu0 0
        %2652 = vperm.xlu0 %2651, %v2638
        %v2653 = vpop.permute.xlu0 %2652
        %2656 = vset.pattern.permute.xlu0 0
        %2657 = vperm.xlu0 %2656, %v2639
        %v2658 = vpop.permute.xlu0 %2657
        %v2660 = vlaneseq
        %v2661 = vshrl.u32 %v2660, 7
        %v2662 = vsub.s32 0, %v2661
        %v2663 = vrot.slane %v2631, %v2662
        %v2664 = vmul.f32 %v2643, %v2663
        %v2665 = vmul.f32 %v2648, %v2663
        %v2666 = vmul.f32 %v2653, %v2663
        %v2667 = vmul.f32 %v2658, %v2663
        %2668 = vset.pattern.permute.xlu0 1
        %2669 = vperm.xlu0 %2668, %v2636
        %v2670 = vpop.permute.xlu0 %2669
        %2672 = vset.pattern.permute.xlu0 1
        %2673 = vperm.xlu0 %2672, %v2637
        %v2674 = vpop.permute.xlu0 %2673
        %2676 = vset.pattern.permute.xlu0 1
        %2677 = vperm.xlu0 %2676, %v2638
        %v2678 = vpop.permute.xlu0 %2677
        %2680 = vset.pattern.permute.xlu0 1
        %2681 = vperm.xlu0 %2680, %v2639
        %v2682 = vpop.permute.xlu0 %2681
        %v2684 = vadd.f32 %v2664, %v2670
        %v2685 = vadd.f32 %v2665, %v2674
        %v2686 = vadd.f32 %v2666, %v2678
        %v2687 = vadd.f32 %v2667, %v2682
        %v2688 = vtanh.pop %v2684
        %v2689 = vtanh.pop %v2685
        %v2690 = vtanh.pop %v2686
        %v2691 = vtanh.pop %v2687
        %v2692 = vld [vmem:[%s4 + $0x20] sm:$0xff]
        %2694 = vset.pattern.permute.xlu0 32
        %2695 = vperm.xlu0 %2694, %v2692
        %v2696 = vpop.permute.xlu0 %2695
        %vm2698 = vcmask 261120
        %v2699 = vsel %vm2698, %v2692, 0
        %2701 = vmatprep.subr.mxu0 0.0
        %2702 = vmatpush1.msra.mxu0 %v2688
        %2703 = vmatprep.subr.mxu0 0.0
        %2704 = vmatpush1.msra.mxu0 %v2689
        %2705 = vmatprep.subr.mxu0 0.0
        %2706 = vmatpush1.msra.mxu0 %v2690
        %2707 = vmatprep.subr.mxu0 0.0
        %2708 = vmatpush1.msra.mxu0 %v2691
        %2709 = vmatprep.subr.mxu0 0.0
        %2710 = vmatpush1.msra.mxu0 0.0
        %2711 = vmatprep.subr.mxu0 0.0
        %2712 = vmatpush1.msra.mxu0 0.0
        %2713 = vmatprep.subr.mxu0 0.0
        %2714 = vmatpush1.msra.mxu0 0.0
        %2715 = vmatprep.subr.mxu0 0.0
        %2716 = vmatpush1.msra.mxu0 0.0
        %2717 = vmatprep.subr.mxu0 0.0
        %2718 = vmatpush1.msra.mxu0 0.0
        %2719 = vmatprep.subr.mxu0 0.0
        %2720 = vmatpush1.msra.mxu0 0.0
        %2721 = vmatprep.subr.mxu0 0.0
        %2722 = vmatpush1.msra.mxu0 0.0
        %2723 = vmatprep.subr.mxu0 0.0
        %2724 = vmatpush1.msra.mxu0 0.0
        %2725 = vmatprep.subr.mxu0 0.0
        %2726 = vmatpush1.msra.mxu0 0.0
        %2727 = vmatprep.subr.mxu0 0.0
        %2728 = vmatpush1.msra.mxu0 0.0
        %2729 = vmatprep.subr.mxu0 0.0
        %2730 = vmatpush1.msra.mxu0 0.0
        %2731 = vmatprep.subr.mxu0 0.0
        %2732 = vmatpush1.msra.mxu0 0.0
        %2733 = vmatprep.subr.mxu0 0.0
        %2734 = vmatpush1.msra.mxu0 0.0
        %2735 = vmatprep.subr.mxu0 0.0
        %2736 = vmatpush1.msra.mxu0 0.0
        %2737 = vmatprep.subr.mxu0 0.0
        %2738 = vmatpush1.msra.mxu0 0.0
        %2739 = vmatprep.subr.mxu0 0.0
        %2740 = vmatpush1.msra.mxu0 0.0
        %2741 = vmatprep.subr.mxu0 0.0
        %2742 = vmatpush1.msra.mxu0 0.0
        %2743 = vmatprep.subr.mxu0 0.0
        %2744 = vmatpush1.msra.mxu0 0.0
        %2745 = vmatprep.subr.mxu0 0.0
        %2746 = vmatpush1.msra.mxu0 0.0
        %2747 = vmatprep.subr.mxu0 0.0
        %2748 = vmatpush1.msra.mxu0 0.0
        %2749 = vmatprep.subr.mxu0 0.0
        %2750 = vmatpush1.msra.mxu0 0.0
        %2751 = vmatprep.subr.mxu0 0.0
        %2752 = vmatpush1.msra.mxu0 0.0
        %2753 = vmatprep.subr.mxu0 0.0
        %2754 = vmatpush1.msra.mxu0 0.0
        %2755 = vmatprep.subr.mxu0 0.0
        %2756 = vmatpush1.msra.mxu0 0.0
        %2757 = vmatprep.subr.mxu0 0.0
        %2758 = vmatpush1.msra.mxu0 0.0
        %2759 = vmatprep.subr.mxu0 0.0
        %2760 = vmatpush1.msra.mxu0 0.0
        %2761 = vmatprep.subr.mxu0 0.0
        %2762 = vmatpush1.msra.mxu0 0.0
        %2763 = vmatprep.subr.mxu0 0.0
        %2764 = vmatpush1.msra.mxu0 0.0
        %2765 = vmatprep.mubr.f32.mxu0 0.0
        %2766 = vmatmul.mubr.f32.gmra.mrb[0].mxu0 %v2699
        %v2767 = vpop.f32.mrb[0].mxu0
        %v2768 = vadd.f32 %v2696, %v2767
        %v2769 = vpop.f32.mrb[0].mxu0
        %2770 = vdwg.mxu0
        %v2771 = vtanh.pop %v2768
        %v2772 = vmul.f32 %v2771, 1.442695
        %v2773 = vpow.pop %v2772
        %v2775 = vrot.slane %v2773, 7
        %v2777 = vmul.f32 %v2631, %v2775
        %v2778 = vadd.f32 %v2777, %v2768
        %s2779 = scalar_lea.vmem %s4, 40
        %v2780 = vld [vmem:[%s2779] sm:$0xff]
        %v2781 = vld [vmem:[%s2779 + $0x8] sm:$0xff]
        %v2782 = vld [vmem:[%s2779 + $0x10] sm:$0xff]
        %v2783 = vld [vmem:[%s2779 + $0x18] sm:$0xff]
        %2785 = vset.pattern.permute.xlu0 0
        %2786 = vperm.xlu0 %2785, %v2780
        %v2787 = vpop.permute.xlu0 %2786
        %2790 = vset.pattern.permute.xlu0 0
        %2791 = vperm.xlu0 %2790, %v2781
        %v2792 = vpop.permute.xlu0 %2791
        %2795 = vset.pattern.permute.xlu0 0
        %2796 = vperm.xlu0 %2795, %v2782
        %v2797 = vpop.permute.xlu0 %2796
        %2800 = vset.pattern.permute.xlu0 0
        %2801 = vperm.xlu0 %2800, %v2783
        %v2802 = vpop.permute.xlu0 %2801
        %v2804 = vlaneseq
        %v2805 = vshrl.u32 %v2804, 7
        %v2806 = vsub.s32 1, %v2805
        %v2807 = vrot.slane %v2778, %v2806
        %v2808 = vmul.f32 %v2787, %v2807
        %v2809 = vmul.f32 %v2792, %v2807
        %v2810 = vmul.f32 %v2797, %v2807
        %v2811 = vmul.f32 %v2802, %v2807
        %2812 = vset.pattern.permute.xlu0 1
        %2813 = vperm.xlu0 %2812, %v2780
        %v2814 = vpop.permute.xlu0 %2813
        %2816 = vset.pattern.permute.xlu0 1
        %2817 = vperm.xlu0 %2816, %v2781
        %v2818 = vpop.permute.xlu0 %2817
        %2820 = vset.pattern.permute.xlu0 1
        %2821 = vperm.xlu0 %2820, %v2782
        %v2822 = vpop.permute.xlu0 %2821
        %2824 = vset.pattern.permute.xlu0 1
        %2825 = vperm.xlu0 %2824, %v2783
        %v2826 = vpop.permute.xlu0 %2825
        %v2828 = vadd.f32 %v2808, %v2814
        %v2829 = vadd.f32 %v2809, %v2818
        %v2830 = vadd.f32 %v2810, %v2822
        %v2831 = vadd.f32 %v2811, %v2826
        %v2832 = vtanh.pop %v2828
        %v2833 = vtanh.pop %v2829
        %v2834 = vtanh.pop %v2830
        %v2835 = vtanh.pop %v2831
        %v2836 = vld [vmem:[%s2779 + $0x20] sm:$0xff]
        %2838 = vset.pattern.permute.xlu0 32
        %2839 = vperm.xlu0 %2838, %v2836
        %v2840 = vpop.permute.xlu0 %2839
        %v2842 = vsel %vm2698, %v2836, 0
        %2844 = vmatprep.subr.mxu0 0.0
        %2845 = vmatpush1.msra.mxu0 %v2832
        %2846 = vmatprep.subr.mxu0 0.0
        %2847 = vmatpush1.msra.mxu0 %v2833
        %2848 = vmatprep.subr.mxu0 0.0
        %2849 = vmatpush1.msra.mxu0 %v2834
        %2850 = vmatprep.subr.mxu0 0.0
        %2851 = vmatpush1.msra.mxu0 %v2835
        %2852 = vmatprep.subr.mxu0 0.0
        %2853 = vmatpush1.msra.mxu0 0.0
        %2854 = vmatprep.subr.mxu0 0.0
        %2855 = vmatpush1.msra.mxu0 0.0
        %2856 = vmatprep.subr.mxu0 0.0
        %2857 = vmatpush1.msra.mxu0 0.0
        %2858 = vmatprep.subr.mxu0 0.0
        %2859 = vmatpush1.msra.mxu0 0.0
        %2860 = vmatprep.subr.mxu0 0.0
        %2861 = vmatpush1.msra.mxu0 0.0
        %2862 = vmatprep.subr.mxu0 0.0
        %2863 = vmatpush1.msra.mxu0 0.0
        %2864 = vmatprep.subr.mxu0 0.0
        %2865 = vmatpush1.msra.mxu0 0.0
        %2866 = vmatprep.subr.mxu0 0.0
        %2867 = vmatpush1.msra.mxu0 0.0
        %2868 = vmatprep.subr.mxu0 0.0
        %2869 = vmatpush1.msra.mxu0 0.0
        %2870 = vmatprep.subr.mxu0 0.0
        %2871 = vmatpush1.msra.mxu0 0.0
        %2872 = vmatprep.subr.mxu0 0.0
        %2873 = vmatpush1.msra.mxu0 0.0
        %2874 = vmatprep.subr.mxu0 0.0
        %2875 = vmatpush1.msra.mxu0 0.0
        %2876 = vmatprep.subr.mxu0 0.0
        %2877 = vmatpush1.msra.mxu0 0.0
        %2878 = vmatprep.subr.mxu0 0.0
        %2879 = vmatpush1.msra.mxu0 0.0
        %2880 = vmatprep.subr.mxu0 0.0
        %2881 = vmatpush1.msra.mxu0 0.0
        %2882 = vmatprep.subr.mxu0 0.0
        %2883 = vmatpush1.msra.mxu0 0.0
        %2884 = vmatprep.subr.mxu0 0.0
        %2885 = vmatpush1.msra.mxu0 0.0
        %2886 = vmatprep.subr.mxu0 0.0
        %2887 = vmatpush1.msra.mxu0 0.0
        %2888 = vmatprep.subr.mxu0 0.0
        %2889 = vmatpush1.msra.mxu0 0.0
        %2890 = vmatprep.subr.mxu0 0.0
        %2891 = vmatpush1.msra.mxu0 0.0
        %2892 = vmatprep.subr.mxu0 0.0
        %2893 = vmatpush1.msra.mxu0 0.0
        %2894 = vmatprep.subr.mxu0 0.0
        %2895 = vmatpush1.msra.mxu0 0.0
        %2896 = vmatprep.subr.mxu0 0.0
        %2897 = vmatpush1.msra.mxu0 0.0
        %2898 = vmatprep.subr.mxu0 0.0
        %2899 = vmatpush1.msra.mxu0 0.0
        %2900 = vmatprep.subr.mxu0 0.0
        %2901 = vmatpush1.msra.mxu0 0.0
        %2902 = vmatprep.subr.mxu0 0.0
        %2903 = vmatpush1.msra.mxu0 0.0
        %2904 = vmatprep.subr.mxu0 0.0
        %2905 = vmatpush1.msra.mxu0 0.0
        %2906 = vmatprep.subr.mxu0 0.0
        %2907 = vmatpush1.msra.mxu0 0.0
        %2908 = vmatprep.mubr.f32.mxu0 0.0
        %2909 = vmatmul.mubr.f32.gmra.mrb[0].mxu0 %v2842
        %v2910 = vpop.f32.mrb[0].mxu0
        %v2911 = vadd.f32 %v2840, %v2910
        %v2912 = vpop.f32.mrb[0].mxu0
        %2913 = vdwg.mxu0
        %v2914 = vtanh.pop %v2911
        %v2915 = vmul.f32 %v2914, 1.442695
        %v2916 = vpow.pop %v2915
        %v2917 = vmul.f32 %v2631, %v2916
        %v2919 = vrot.slane %v2911, 1
        %v2921 = vadd.f32 %v2917, %v2919
        %v2923 = vrot.slane %v2921, 6
        %v2925 = vadd.f32 %v305, %v2923
        %v2927 = vrot.slane %v2778, 6
        %v2929 = vadd.f32 %v305, %v2927
        %v2930 = vrot.slane %v2630, 4
        %v2932 = vadd.f32 %v2635, %v2930
        %v2933 = vrot.slane %v2342, 4
        %v2935 = vadd.f32 %v2635, %v2933
        %s2936 = scalar_lea.vmem %s4, 80
        %v2937 = vld [vmem:[%s2936] sm:$0xff]
        %v2938 = vld [vmem:[%s2936 + $0x8] sm:$0xff]
        %v2939 = vld [vmem:[%s2936 + $0x10] sm:$0xff]
        %v2940 = vld [vmem:[%s2936 + $0x18] sm:$0xff]
        %2942 = vset.pattern.permute.xlu0 0
        %2943 = vperm.xlu0 %2942, %v2937
        %v2944 = vpop.permute.xlu0 %2943
        %2947 = vset.pattern.permute.xlu0 0
        %2948 = vperm.xlu0 %2947, %v2938
        %v2949 = vpop.permute.xlu0 %2948
        %2952 = vset.pattern.permute.xlu0 0
        %2953 = vperm.xlu0 %2952, %v2939
        %v2954 = vpop.permute.xlu0 %2953
        %2957 = vset.pattern.permute.xlu0 0
        %2958 = vperm.xlu0 %2957, %v2940
        %v2959 = vpop.permute.xlu0 %2958
        %v2961 = vlaneseq
        %v2962 = vshrl.u32 %v2961, 7
        %v2963 = vsub.s32 0, %v2962
        %v2964 = vrot.slane %v2635, %v2963
        %v2965 = vmul.f32 %v2944, %v2964
        %v2966 = vmul.f32 %v2949, %v2964
        %v2967 = vmul.f32 %v2954, %v2964
        %v2968 = vmul.f32 %v2959, %v2964
        %2969 = vset.pattern.permute.xlu0 1
        %2970 = vperm.xlu0 %2969, %v2937
        %v2971 = vpop.permute.xlu0 %2970
        %2973 = vset.pattern.permute.xlu0 1
        %2974 = vperm.xlu0 %2973, %v2938
        %v2975 = vpop.permute.xlu0 %2974
        %2977 = vset.pattern.permute.xlu0 1
        %2978 = vperm.xlu0 %2977, %v2939
        %v2979 = vpop.permute.xlu0 %2978
        %2981 = vset.pattern.permute.xlu0 1
        %2982 = vperm.xlu0 %2981, %v2940
        %v2983 = vpop.permute.xlu0 %2982
        %v2985 = vadd.f32 %v2965, %v2971
        %v2986 = vadd.f32 %v2966, %v2975
        %v2987 = vadd.f32 %v2967, %v2979
        %v2988 = vadd.f32 %v2968, %v2983
        %v2989 = vtanh.pop %v2985
        %v2990 = vtanh.pop %v2986
        %v2991 = vtanh.pop %v2987
        %v2992 = vtanh.pop %v2988
        %v2993 = vld [vmem:[%s2936 + $0x20] sm:$0xff]
        %2995 = vset.pattern.permute.xlu0 32
        %2996 = vperm.xlu0 %2995, %v2993
        %v2997 = vpop.permute.xlu0 %2996
        %v2999 = vsel %vm2698, %v2993, 0
        %3001 = vmatprep.subr.mxu0 0.0
        %3002 = vmatpush1.msra.mxu0 %v2989
        %3003 = vmatprep.subr.mxu0 0.0
        %3004 = vmatpush1.msra.mxu0 %v2990
        %3005 = vmatprep.subr.mxu0 0.0
        %3006 = vmatpush1.msra.mxu0 %v2991
        %3007 = vmatprep.subr.mxu0 0.0
        %3008 = vmatpush1.msra.mxu0 %v2992
        %3009 = vmatprep.subr.mxu0 0.0
        %3010 = vmatpush1.msra.mxu0 0.0
        %3011 = vmatprep.subr.mxu0 0.0
        %3012 = vmatpush1.msra.mxu0 0.0
        %3013 = vmatprep.subr.mxu0 0.0
        %3014 = vmatpush1.msra.mxu0 0.0
        %3015 = vmatprep.subr.mxu0 0.0
        %3016 = vmatpush1.msra.mxu0 0.0
        %3017 = vmatprep.subr.mxu0 0.0
        %3018 = vmatpush1.msra.mxu0 0.0
        %3019 = vmatprep.subr.mxu0 0.0
        %3020 = vmatpush1.msra.mxu0 0.0
        %3021 = vmatprep.subr.mxu0 0.0
        %3022 = vmatpush1.msra.mxu0 0.0
        %3023 = vmatprep.subr.mxu0 0.0
        %3024 = vmatpush1.msra.mxu0 0.0
        %3025 = vmatprep.subr.mxu0 0.0
        %3026 = vmatpush1.msra.mxu0 0.0
        %3027 = vmatprep.subr.mxu0 0.0
        %3028 = vmatpush1.msra.mxu0 0.0
        %3029 = vmatprep.subr.mxu0 0.0
        %3030 = vmatpush1.msra.mxu0 0.0
        %3031 = vmatprep.subr.mxu0 0.0
        %3032 = vmatpush1.msra.mxu0 0.0
        %3033 = vmatprep.subr.mxu0 0.0
        %3034 = vmatpush1.msra.mxu0 0.0
        %3035 = vmatprep.subr.mxu0 0.0
        %3036 = vmatpush1.msra.mxu0 0.0
        %3037 = vmatprep.subr.mxu0 0.0
        %3038 = vmatpush1.msra.mxu0 0.0
        %3039 = vmatprep.subr.mxu0 0.0
        %3040 = vmatpush1.msra.mxu0 0.0
        %3041 = vmatprep.subr.mxu0 0.0
        %3042 = vmatpush1.msra.mxu0 0.0
        %3043 = vmatprep.subr.mxu0 0.0
        %3044 = vmatpush1.msra.mxu0 0.0
        %3045 = vmatprep.subr.mxu0 0.0
        %3046 = vmatpush1.msra.mxu0 0.0
        %3047 = vmatprep.subr.mxu0 0.0
        %3048 = vmatpush1.msra.mxu0 0.0
        %3049 = vmatprep.subr.mxu0 0.0
        %3050 = vmatpush1.msra.mxu0 0.0
        %3051 = vmatprep.subr.mxu0 0.0
        %3052 = vmatpush1.msra.mxu0 0.0
        %3053 = vmatprep.subr.mxu0 0.0
        %3054 = vmatpush1.msra.mxu0 0.0
        %3055 = vmatprep.subr.mxu0 0.0
        %3056 = vmatpush1.msra.mxu0 0.0
        %3057 = vmatprep.subr.mxu0 0.0
        %3058 = vmatpush1.msra.mxu0 0.0
        %3059 = vmatprep.subr.mxu0 0.0
        %3060 = vmatpush1.msra.mxu0 0.0
        %3061 = vmatprep.subr.mxu0 0.0
        %3062 = vmatpush1.msra.mxu0 0.0
        %3063 = vmatprep.subr.mxu0 0.0
        %3064 = vmatpush1.msra.mxu0 0.0
        %3065 = vmatprep.mubr.f32.mxu0 0.0
        %3066 = vmatmul.mubr.f32.gmra.mrb[0].mxu0 %v2999
        %v3067 = vpop.f32.mrb[0].mxu0
        %v3068 = vadd.f32 %v2997, %v3067
        %v3069 = vpop.f32.mrb[0].mxu0
        %3070 = vdwg.mxu0
        %v3071 = vtanh.pop %v3068
        %v3072 = vmul.f32 %v3071, 1.442695
        %v3073 = vpow.pop %v3072
        %v3075 = vrot.slane %v3073, 7
        %v3077 = vmul.f32 %v2635, %v3075
        %v3078 = vadd.f32 %v3077, %v3068
        %s3079 = scalar_lea.vmem %s4, 120
        %v3080 = vld [vmem:[%s3079] sm:$0xff]
        %v3081 = vld [vmem:[%s3079 + $0x8] sm:$0xff]
        %v3082 = vld [vmem:[%s3079 + $0x10] sm:$0xff]
        %v3083 = vld [vmem:[%s3079 + $0x18] sm:$0xff]
        %3085 = vset.pattern.permute.xlu0 0
        %3086 = vperm.xlu0 %3085, %v3080
        %v3087 = vpop.permute.xlu0 %3086
        %3090 = vset.pattern.permute.xlu0 0
        %3091 = vperm.xlu0 %3090, %v3081
        %v3092 = vpop.permute.xlu0 %3091
        %3095 = vset.pattern.permute.xlu0 0
        %3096 = vperm.xlu0 %3095, %v3082
        %v3097 = vpop.permute.xlu0 %3096
        %3100 = vset.pattern.permute.xlu0 0
        %3101 = vperm.xlu0 %3100, %v3083
        %v3102 = vpop.permute.xlu0 %3101
        %v3104 = vlaneseq
        %v3105 = vshrl.u32 %v3104, 7
        %v3106 = vsub.s32 1, %v3105
        %v3107 = vrot.slane %v3078, %v3106
        %v3108 = vmul.f32 %v3087, %v3107
        %v3109 = vmul.f32 %v3092, %v3107
        %v3110 = vmul.f32 %v3097, %v3107
        %v3111 = vmul.f32 %v3102, %v3107
        %3112 = vset.pattern.permute.xlu0 1
        %3113 = vperm.xlu0 %3112, %v3080
        %v3114 = vpop.permute.xlu0 %3113
        %3116 = vset.pattern.permute.xlu0 1
        %3117 = vperm.xlu0 %3116, %v3081
        %v3118 = vpop.permute.xlu0 %3117
        %3120 = vset.pattern.permute.xlu0 1
        %3121 = vperm.xlu0 %3120, %v3082
        %v3122 = vpop.permute.xlu0 %3121
        %3124 = vset.pattern.permute.xlu0 1
        %3125 = vperm.xlu0 %3124, %v3083
        %v3126 = vpop.permute.xlu0 %3125
        %v3128 = vadd.f32 %v3108, %v3114
        %v3129 = vadd.f32 %v3109, %v3118
        %v3130 = vadd.f32 %v3110, %v3122
        %v3131 = vadd.f32 %v3111, %v3126
        %v3132 = vtanh.pop %v3128
        %v3133 = vtanh.pop %v3129
        %v3134 = vtanh.pop %v3130
        %v3135 = vtanh.pop %v3131
        %v3136 = vld [vmem:[%s3079 + $0x20] sm:$0xff]
        %3138 = vset.pattern.permute.xlu0 32
        %3139 = vperm.xlu0 %3138, %v3136
        %v3140 = vpop.permute.xlu0 %3139
        %v3142 = vsel %vm2698, %v3136, 0
        %3144 = vmatprep.subr.mxu0 0.0
        %3145 = vmatpush1.msra.mxu0 %v3132
        %3146 = vmatprep.subr.mxu0 0.0
        %3147 = vmatpush1.msra.mxu0 %v3133
        %3148 = vmatprep.subr.mxu0 0.0
        %3149 = vmatpush1.msra.mxu0 %v3134
        %3150 = vmatprep.subr.mxu0 0.0
        %3151 = vmatpush1.msra.mxu0 %v3135
        %3152 = vmatprep.subr.mxu0 0.0
        %3153 = vmatpush1.msra.mxu0 0.0
        %3154 = vmatprep.subr.mxu0 0.0
        %3155 = vmatpush1.msra.mxu0 0.0
        %3156 = vmatprep.subr.mxu0 0.0
        %3157 = vmatpush1.msra.mxu0 0.0
        %3158 = vmatprep.subr.mxu0 0.0
        %3159 = vmatpush1.msra.mxu0 0.0
        %3160 = vmatprep.subr.mxu0 0.0
        %3161 = vmatpush1.msra.mxu0 0.0
        %3162 = vmatprep.subr.mxu0 0.0
        %3163 = vmatpush1.msra.mxu0 0.0
        %3164 = vmatprep.subr.mxu0 0.0
        %3165 = vmatpush1.msra.mxu0 0.0
        %3166 = vmatprep.subr.mxu0 0.0
        %3167 = vmatpush1.msra.mxu0 0.0
        %3168 = vmatprep.subr.mxu0 0.0
        %3169 = vmatpush1.msra.mxu0 0.0
        %3170 = vmatprep.subr.mxu0 0.0
        %3171 = vmatpush1.msra.mxu0 0.0
        %3172 = vmatprep.subr.mxu0 0.0
        %3173 = vmatpush1.msra.mxu0 0.0
        %3174 = vmatprep.subr.mxu0 0.0
        %3175 = vmatpush1.msra.mxu0 0.0
        %3176 = vmatprep.subr.mxu0 0.0
        %3177 = vmatpush1.msra.mxu0 0.0
        %3178 = vmatprep.subr.mxu0 0.0
        %3179 = vmatpush1.msra.mxu0 0.0
        %3180 = vmatprep.subr.mxu0 0.0
        %3181 = vmatpush1.msra.mxu0 0.0
        %3182 = vmatprep.subr.mxu0 0.0
        %3183 = vmatpush1.msra.mxu0 0.0
        %3184 = vmatprep.subr.mxu0 0.0
        %3185 = vmatpush1.msra.mxu0 0.0
        %3186 = vmatprep.subr.mxu0 0.0
        %3187 = vmatpush1.msra.mxu0 0.0
        %3188 = vmatprep.subr.mxu0 0.0
        %3189 = vmatpush1.msra.mxu0 0.0
        %3190 = vmatprep.subr.mxu0 0.0
        %3191 = vmatpush1.msra.mxu0 0.0
        %3192 = vmatprep.subr.mxu0 0.0
        %3193 = vmatpush1.msra.mxu0 0.0
        %3194 = vmatprep.subr.mxu0 0.0
        %3195 = vmatpush1.msra.mxu0 0.0
        %3196 = vmatprep.subr.mxu0 0.0
        %3197 = vmatpush1.msra.mxu0 0.0
        %3198 = vmatprep.subr.mxu0 0.0
        %3199 = vmatpush1.msra.mxu0 0.0
        %3200 = vmatprep.subr.mxu0 0.0
        %3201 = vmatpush1.msra.mxu0 0.0
        %3202 = vmatprep.subr.mxu0 0.0
        %3203 = vmatpush1.msra.mxu0 0.0
        %3204 = vmatprep.subr.mxu0 0.0
        %3205 = vmatpush1.msra.mxu0 0.0
        %3206 = vmatprep.subr.mxu0 0.0
        %3207 = vmatpush1.msra.mxu0 0.0
        %3208 = vmatprep.mubr.f32.mxu0 0.0
        %3209 = vmatmul.mubr.f32.gmra.mrb[0].mxu0 %v3142
        %v3210 = vpop.f32.mrb[0].mxu0
        %v3211 = vadd.f32 %v3140, %v3210
        %v3212 = vpop.f32.mrb[0].mxu0
        %3213 = vdwg.mxu0
        %v3214 = vtanh.pop %v3211
        %v3215 = vmul.f32 %v3214, 1.442695
        %v3216 = vpow.pop %v3215
        %v3217 = vmul.f32 %v2635, %v3216
        %v3219 = vrot.slane %v3211, 1
        %v3221 = vadd.f32 %v3217, %v3219
        %v3223 = vrot.slane %v3221, 6
        %v3225 = vadd.f32 %v2925, %v3223
        %v3227 = vrot.slane %v3078, 6
        %v3229 = vadd.f32 %v2929, %v3227
        %s3230 = scalar_lea.vmem %s4, 160
        %v3231 = vld [vmem:[%s3230] sm:$0xff]
        %v3232 = vld [vmem:[%s3230 + $0x8] sm:$0xff]
        %v3233 = vld [vmem:[%s3230 + $0x10] sm:$0xff]
        %v3234 = vld [vmem:[%s3230 + $0x18] sm:$0xff]
        %3236 = vset.pattern.permute.xlu0 0
        %3237 = vperm.xlu0 %3236, %v3231
        %v3238 = vpop.permute.xlu0 %3237
        %3241 = vset.pattern.permute.xlu0 0
        %3242 = vperm.xlu0 %3241, %v3232
        %v3243 = vpop.permute.xlu0 %3242
        %3246 = vset.pattern.permute.xlu0 0
        %3247 = vperm.xlu0 %3246, %v3233
        %v3248 = vpop.permute.xlu0 %3247
        %3251 = vset.pattern.permute.xlu0 0
        %3252 = vperm.xlu0 %3251, %v3234
        %v3253 = vpop.permute.xlu0 %3252
        %v3255 = vlaneseq
        %v3256 = vshrl.u32 %v3255, 7
        %v3257 = vsub.s32 2, %v3256
        %v3258 = vrot.slane %v2925, %v3257
        %v3259 = vmul.f32 %v3238, %v3258
        %v3260 = vmul.f32 %v3243, %v3258
        %v3261 = vmul.f32 %v3248, %v3258
        %v3262 = vmul.f32 %v3253, %v3258
        %3263 = vset.pattern.permute.xlu0 1
        %3264 = vperm.xlu0 %3263, %v3231
        %v3265 = vpop.permute.xlu0 %3264
        %3267 = vset.pattern.permute.xlu0 1
        %3268 = vperm.xlu0 %3267, %v3232
        %v3269 = vpop.permute.xlu0 %3268
        %3271 = vset.pattern.permute.xlu0 1
        %3272 = vperm.xlu0 %3271, %v3233
        %v3273 = vpop.permute.xlu0 %3272
        %3275 = vset.pattern.permute.xlu0 1
        %3276 = vperm.xlu0 %3275, %v3234
        %v3277 = vpop.permute.xlu0 %3276
        %v3279 = vadd.f32 %v3259, %v3265
        %v3280 = vadd.f32 %v3260, %v3269
        %v3281 = vadd.f32 %v3261, %v3273
        %v3282 = vadd.f32 %v3262, %v3277
        %v3283 = vtanh.pop %v3279
        %v3284 = vtanh.pop %v3280
        %v3285 = vtanh.pop %v3281
        %v3286 = vtanh.pop %v3282
        %v3287 = vld [vmem:[%s3230 + $0x20] sm:$0xff]
        %3289 = vset.pattern.permute.xlu0 32
        %3290 = vperm.xlu0 %3289, %v3287
        %v3291 = vpop.permute.xlu0 %3290
        %v3293 = vsel %vm2698, %v3287, 0
        %3295 = vmatprep.subr.mxu0 0.0
        %3296 = vmatpush1.msra.mxu0 %v3283
        %3297 = vmatprep.subr.mxu0 0.0
        %3298 = vmatpush1.msra.mxu0 %v3284
        %3299 = vmatprep.subr.mxu0 0.0
        %3300 = vmatpush1.msra.mxu0 %v3285
        %3301 = vmatprep.subr.mxu0 0.0
        %3302 = vmatpush1.msra.mxu0 %v3286
        %3303 = vmatprep.subr.mxu0 0.0
        %3304 = vmatpush1.msra.mxu0 0.0
        %3305 = vmatprep.subr.mxu0 0.0
        %3306 = vmatpush1.msra.mxu0 0.0
        %3307 = vmatprep.subr.mxu0 0.0
        %3308 = vmatpush1.msra.mxu0 0.0
        %3309 = vmatprep.subr.mxu0 0.0
        %3310 = vmatpush1.msra.mxu0 0.0
        %3311 = vmatprep.subr.mxu0 0.0
        %3312 = vmatpush1.msra.mxu0 0.0
        %3313 = vmatprep.subr.mxu0 0.0
        %3314 = vmatpush1.msra.mxu0 0.0
        %3315 = vmatprep.subr.mxu0 0.0
        %3316 = vmatpush1.msra.mxu0 0.0
        %3317 = vmatprep.subr.mxu0 0.0
        %3318 = vmatpush1.msra.mxu0 0.0
        %3319 = vmatprep.subr.mxu0 0.0
        %3320 = vmatpush1.msra.mxu0 0.0
        %3321 = vmatprep.subr.mxu0 0.0
        %3322 = vmatpush1.msra.mxu0 0.0
        %3323 = vmatprep.subr.mxu0 0.0
        %3324 = vmatpush1.msra.mxu0 0.0
        %3325 = vmatprep.subr.mxu0 0.0
        %3326 = vmatpush1.msra.mxu0 0.0
        %3327 = vmatprep.subr.mxu0 0.0
        %3328 = vmatpush1.msra.mxu0 0.0
        %3329 = vmatprep.subr.mxu0 0.0
        %3330 = vmatpush1.msra.mxu0 0.0
        %3331 = vmatprep.subr.mxu0 0.0
        %3332 = vmatpush1.msra.mxu0 0.0
        %3333 = vmatprep.subr.mxu0 0.0
        %3334 = vmatpush1.msra.mxu0 0.0
        %3335 = vmatprep.subr.mxu0 0.0
        %3336 = vmatpush1.msra.mxu0 0.0
        %3337 = vmatprep.subr.mxu0 0.0
        %3338 = vmatpush1.msra.mxu0 0.0
        %3339 = vmatprep.subr.mxu0 0.0
        %3340 = vmatpush1.msra.mxu0 0.0
        %3341 = vmatprep.subr.mxu0 0.0
        %3342 = vmatpush1.msra.mxu0 0.0
        %3343 = vmatprep.subr.mxu0 0.0
        %3344 = vmatpush1.msra.mxu0 0.0
        %3345 = vmatprep.subr.mxu0 0.0
        %3346 = vmatpush1.msra.mxu0 0.0
        %3347 = vmatprep.subr.mxu0 0.0
        %3348 = vmatpush1.msra.mxu0 0.0
        %3349 = vmatprep.subr.mxu0 0.0
        %3350 = vmatpush1.msra.mxu0 0.0
        %3351 = vmatprep.subr.mxu0 0.0
        %3352 = vmatpush1.msra.mxu0 0.0
        %3353 = vmatprep.subr.mxu0 0.0
        %3354 = vmatpush1.msra.mxu0 0.0
        %3355 = vmatprep.subr.mxu0 0.0
        %3356 = vmatpush1.msra.mxu0 0.0
        %3357 = vmatprep.subr.mxu0 0.0
        %3358 = vmatpush1.msra.mxu0 0.0
        %3359 = vmatprep.mubr.f32.mxu0 0.0
        %3360 = vmatmul.mubr.f32.gmra.mrb[0].mxu0 %v3293
        %v3361 = vpop.f32.mrb[0].mxu0
        %v3362 = vadd.f32 %v3291, %v3361
        %v3363 = vpop.f32.mrb[0].mxu0
        %3364 = vdwg.mxu0
        %v3365 = vtanh.pop %v3362
        %v3366 = vmul.f32 %v3365, 1.442695
        %v3367 = vpow.pop %v3366
        %v3369 = vrot.slane %v3367, 5
        %v3371 = vmul.f32 %v2929, %v3369
        %v3373 = vrot.slane %v3362, 6
        %v3375 = vadd.f32 %v3371, %v3373
        %s3376 = scalar_lea.vmem %s4, 200
        %v3377 = vld [vmem:[%s3376] sm:$0xff]
        %v3378 = vld [vmem:[%s3376 + $0x8] sm:$0xff]
        %v3379 = vld [vmem:[%s3376 + $0x10] sm:$0xff]
        %v3380 = vld [vmem:[%s3376 + $0x18] sm:$0xff]
        %3382 = vset.pattern.permute.xlu0 0
        %3383 = vperm.xlu0 %3382, %v3377
        %v3384 = vpop.permute.xlu0 %3383
        %3387 = vset.pattern.permute.xlu0 0
        %3388 = vperm.xlu0 %3387, %v3378
        %v3389 = vpop.permute.xlu0 %3388
        %3392 = vset.pattern.permute.xlu0 0
        %3393 = vperm.xlu0 %3392, %v3379
        %v3394 = vpop.permute.xlu0 %3393
        %3397 = vset.pattern.permute.xlu0 0
        %3398 = vperm.xlu0 %3397, %v3380
        %v3399 = vpop.permute.xlu0 %3398
        %v3401 = vlaneseq
        %v3402 = vshrl.u32 %v3401, 7
        %v3403 = vsub.s32 3, %v3402
        %v3404 = vrot.slane %v3375, %v3403
        %v3405 = vmul.f32 %v3384, %v3404
        %v3406 = vmul.f32 %v3389, %v3404
        %v3407 = vmul.f32 %v3394, %v3404
        %v3408 = vmul.f32 %v3399, %v3404
        %3409 = vset.pattern.permute.xlu0 1
        %3410 = vperm.xlu0 %3409, %v3377
        %v3411 = vpop.permute.xlu0 %3410
        %3413 = vset.pattern.permute.xlu0 1
        %3414 = vperm.xlu0 %3413, %v3378
        %v3415 = vpop.permute.xlu0 %3414
        %3417 = vset.pattern.permute.xlu0 1
        %3418 = vperm.xlu0 %3417, %v3379
        %v3419 = vpop.permute.xlu0 %3418
        %3421 = vset.pattern.permute.xlu0 1
        %3422 = vperm.xlu0 %3421, %v3380
        %v3423 = vpop.permute.xlu0 %3422
        %v3425 = vadd.f32 %v3405, %v3411
        %v3426 = vadd.f32 %v3406, %v3415
        %v3427 = vadd.f32 %v3407, %v3419
        %v3428 = vadd.f32 %v3408, %v3423
        %v3429 = vtanh.pop %v3425
        %v3430 = vtanh.pop %v3426
        %v3431 = vtanh.pop %v3427
        %v3432 = vtanh.pop %v3428
        %v3433 = vld [vmem:[%s3376 + $0x20] sm:$0xff]
        %3435 = vset.pattern.permute.xlu0 32
        %3436 = vperm.xlu0 %3435, %v3433
        %v3437 = vpop.permute.xlu0 %3436
        %v3439 = vsel %vm2698, %v3433, 0
        %3441 = vmatprep.subr.mxu0 0.0
        %3442 = vmatpush1.msra.mxu0 %v3429
        %3443 = vmatprep.subr.mxu0 0.0
        %3444 = vmatpush1.msra.mxu0 %v3430
        %3445 = vmatprep.subr.mxu0 0.0
        %3446 = vmatpush1.msra.mxu0 %v3431
        %3447 = vmatprep.subr.mxu0 0.0
        %3448 = vmatpush1.msra.mxu0 %v3432
        %3449 = vmatprep.subr.mxu0 0.0
        %3450 = vmatpush1.msra.mxu0 0.0
        %3451 = vmatprep.subr.mxu0 0.0
        %3452 = vmatpush1.msra.mxu0 0.0
        %3453 = vmatprep.subr.mxu0 0.0
        %3454 = vmatpush1.msra.mxu0 0.0
        %3455 = vmatprep.subr.mxu0 0.0
        %3456 = vmatpush1.msra.mxu0 0.0
        %3457 = vmatprep.subr.mxu0 0.0
        %3458 = vmatpush1.msra.mxu0 0.0
        %3459 = vmatprep.subr.mxu0 0.0
        %3460 = vmatpush1.msra.mxu0 0.0
        %3461 = vmatprep.subr.mxu0 0.0
        %3462 = vmatpush1.msra.mxu0 0.0
        %3463 = vmatprep.subr.mxu0 0.0
        %3464 = vmatpush1.msra.mxu0 0.0
        %3465 = vmatprep.subr.mxu0 0.0
        %3466 = vmatpush1.msra.mxu0 0.0
        %3467 = vmatprep.subr.mxu0 0.0
        %3468 = vmatpush1.msra.mxu0 0.0
        %3469 = vmatprep.subr.mxu0 0.0
        %3470 = vmatpush1.msra.mxu0 0.0
        %3471 = vmatprep.subr.mxu0 0.0
        %3472 = vmatpush1.msra.mxu0 0.0
        %3473 = vmatprep.subr.mxu0 0.0
        %3474 = vmatpush1.msra.mxu0 0.0
        %3475 = vmatprep.subr.mxu0 0.0
        %3476 = vmatpush1.msra.mxu0 0.0
        %3477 = vmatprep.subr.mxu0 0.0
        %3478 = vmatpush1.msra.mxu0 0.0
        %3479 = vmatprep.subr.mxu0 0.0
        %3480 = vmatpush1.msra.mxu0 0.0
        %3481 = vmatprep.subr.mxu0 0.0
        %3482 = vmatpush1.msra.mxu0 0.0
        %3483 = vmatprep.subr.mxu0 0.0
        %3484 = vmatpush1.msra.mxu0 0.0
        %3485 = vmatprep.subr.mxu0 0.0
        %3486 = vmatpush1.msra.mxu0 0.0
        %3487 = vmatprep.subr.mxu0 0.0
        %3488 = vmatpush1.msra.mxu0 0.0
        %3489 = vmatprep.subr.mxu0 0.0
        %3490 = vmatpush1.msra.mxu0 0.0
        %3491 = vmatprep.subr.mxu0 0.0
        %3492 = vmatpush1.msra.mxu0 0.0
        %3493 = vmatprep.subr.mxu0 0.0
        %3494 = vmatpush1.msra.mxu0 0.0
        %3495 = vmatprep.subr.mxu0 0.0
        %3496 = vmatpush1.msra.mxu0 0.0
        %3497 = vmatprep.subr.mxu0 0.0
        %3498 = vmatpush1.msra.mxu0 0.0
        %3499 = vmatprep.subr.mxu0 0.0
        %3500 = vmatpush1.msra.mxu0 0.0
        %3501 = vmatprep.subr.mxu0 0.0
        %3502 = vmatpush1.msra.mxu0 0.0
        %3503 = vmatprep.subr.mxu0 0.0
        %3504 = vmatpush1.msra.mxu0 0.0
        %3505 = vmatprep.mubr.f32.mxu0 0.0
        %3506 = vmatmul.mubr.f32.gmra.mrb[0].mxu0 %v3439
        %v3507 = vpop.f32.mrb[0].mxu0
        %v3508 = vadd.f32 %v3437, %v3507
        %v3509 = vpop.f32.mrb[0].mxu0
        %3510 = vdwg.mxu0
        %v3511 = vtanh.pop %v3508
        %v3512 = vmul.f32 %v3511, 1.442695
        %v3513 = vpow.pop %v3512
        %v3515 = vrot.slane %v3513, 6
        %v3517 = vmul.f32 %v2925, %v3515
        %v3519 = vrot.slane %v3508, 7
        %v3521 = vadd.f32 %v3517, %v3519
        %v3523 = vrot.slane %v3521, 6
        %v3525 = vadd.f32 %v305, %v3523
        %v3527 = vrot.slane %v3375, 6
        %v3529 = vadd.f32 %v305, %v3527
        %v3530 = vrot.slane %v2342, 6
        %v3532 = vadd.f32 %v2932, %v3530
        %v3533 = vadd.f32 %v2935, %v3530
        %s3534 = scalar_lea.vmem %s4, 240
        %v3535 = vld [vmem:[%s3534] sm:$0xff]
        %v3536 = vld [vmem:[%s3534 + $0x8] sm:$0xff]
        %v3537 = vld [vmem:[%s3534 + $0x10] sm:$0xff]
        %v3538 = vld [vmem:[%s3534 + $0x18] sm:$0xff]
        %3540 = vset.pattern.permute.xlu0 0
        %3541 = vperm.xlu0 %3540, %v3535
        %v3542 = vpop.permute.xlu0 %3541
        %3545 = vset.pattern.permute.xlu0 0
        %3546 = vperm.xlu0 %3545, %v3536
        %v3547 = vpop.permute.xlu0 %3546
        %3550 = vset.pattern.permute.xlu0 0
        %3551 = vperm.xlu0 %3550, %v3537
        %v3552 = vpop.permute.xlu0 %3551
        %3555 = vset.pattern.permute.xlu0 0
        %3556 = vperm.xlu0 %3555, %v3538
        %v3557 = vpop.permute.xlu0 %3556
        %v3559 = vlaneseq
        %v3560 = vshrl.u32 %v3559, 7
        %v3561 = vsub.s32 0, %v3560
        %v3562 = vrot.slane %v2932, %v3561
        %v3563 = vmul.f32 %v3542, %v3562
        %v3564 = vmul.f32 %v3547, %v3562
        %v3565 = vmul.f32 %v3552, %v3562
        %v3566 = vmul.f32 %v3557, %v3562
        %3567 = vset.pattern.permute.xlu0 1
        %3568 = vperm.xlu0 %3567, %v3535
        %v3569 = vpop.permute.xlu0 %3568
        %3571 = vset.pattern.permute.xlu0 1
        %3572 = vperm.xlu0 %3571, %v3536
        %v3573 = vpop.permute.xlu0 %3572
        %3575 = vset.pattern.permute.xlu0 1
        %3576 = vperm.xlu0 %3575, %v3537
        %v3577 = vpop.permute.xlu0 %3576
        %3579 = vset.pattern.permute.xlu0 1
        %3580 = vperm.xlu0 %3579, %v3538
        %v3581 = vpop.permute.xlu0 %3580
        %v3583 = vadd.f32 %v3563, %v3569
        %v3584 = vadd.f32 %v3564, %v3573
        %v3585 = vadd.f32 %v3565, %v3577
        %v3586 = vadd.f32 %v3566, %v3581
        %v3587 = vtanh.pop %v3583
        %v3588 = vtanh.pop %v3584
        %v3589 = vtanh.pop %v3585
        %v3590 = vtanh.pop %v3586
        %v3591 = vld [vmem:[%s3534 + $0x20] sm:$0xff]
        %3593 = vset.pattern.permute.xlu0 32
        %3594 = vperm.xlu0 %3593, %v3591
        %v3595 = vpop.permute.xlu0 %3594
        %v3597 = vsel %vm2698, %v3591, 0
        %3599 = vmatprep.subr.mxu0 0.0
        %3600 = vmatpush1.msra.mxu0 %v3587
        %3601 = vmatprep.subr.mxu0 0.0
        %3602 = vmatpush1.msra.mxu0 %v3588
        %3603 = vmatprep.subr.mxu0 0.0
        %3604 = vmatpush1.msra.mxu0 %v3589
        %3605 = vmatprep.subr.mxu0 0.0
        %3606 = vmatpush1.msra.mxu0 %v3590
        %3607 = vmatprep.subr.mxu0 0.0
        %3608 = vmatpush1.msra.mxu0 0.0
        %3609 = vmatprep.subr.mxu0 0.0
        %3610 = vmatpush1.msra.mxu0 0.0
        %3611 = vmatprep.subr.mxu0 0.0
        %3612 = vmatpush1.msra.mxu0 0.0
        %3613 = vmatprep.subr.mxu0 0.0
        %3614 = vmatpush1.msra.mxu0 0.0
        %3615 = vmatprep.subr.mxu0 0.0
        %3616 = vmatpush1.msra.mxu0 0.0
        %3617 = vmatprep.subr.mxu0 0.0
        %3618 = vmatpush1.msra.mxu0 0.0
        %3619 = vmatprep.subr.mxu0 0.0
        %3620 = vmatpush1.msra.mxu0 0.0
        %3621 = vmatprep.subr.mxu0 0.0
        %3622 = vmatpush1.msra.mxu0 0.0
        %3623 = vmatprep.subr.mxu0 0.0
        %3624 = vmatpush1.msra.mxu0 0.0
        %3625 = vmatprep.subr.mxu0 0.0
        %3626 = vmatpush1.msra.mxu0 0.0
        %3627 = vmatprep.subr.mxu0 0.0
        %3628 = vmatpush1.msra.mxu0 0.0
        %3629 = vmatprep.subr.mxu0 0.0
        %3630 = vmatpush1.msra.mxu0 0.0
        %3631 = vmatprep.subr.mxu0 0.0
        %3632 = vmatpush1.msra.mxu0 0.0
        %3633 = vmatprep.subr.mxu0 0.0
        %3634 = vmatpush1.msra.mxu0 0.0
        %3635 = vmatprep.subr.mxu0 0.0
        %3636 = vmatpush1.msra.mxu0 0.0
        %3637 = vmatprep.subr.mxu0 0.0
        %3638 = vmatpush1.msra.mxu0 0.0
        %3639 = vmatprep.subr.mxu0 0.0
        %3640 = vmatpush1.msra.mxu0 0.0
        %3641 = vmatprep.subr.mxu0 0.0
        %3642 = vmatpush1.msra.mxu0 0.0
        %3643 = vmatprep.subr.mxu0 0.0
        %3644 = vmatpush1.msra.mxu0 0.0
        %3645 = vmatprep.subr.mxu0 0.0
        %3646 = vmatpush1.msra.mxu0 0.0
        %3647 = vmatprep.subr.mxu0 0.0
        %3648 = vmatpush1.msra.mxu0 0.0
        %3649 = vmatprep.subr.mxu0 0.0
        %3650 = vmatpush1.msra.mxu0 0.0
        %3651 = vmatprep.subr.mxu0 0.0
        %3652 = vmatpush1.msra.mxu0 0.0
        %3653 = vmatprep.subr.mxu0 0.0
        %3654 = vmatpush1.msra.mxu0 0.0
        %3655 = vmatprep.subr.mxu0 0.0
        %3656 = vmatpush1.msra.mxu0 0.0
        %3657 = vmatprep.subr.mxu0 0.0
        %3658 = vmatpush1.msra.mxu0 0.0
        %3659 = vmatprep.subr.mxu0 0.0
        %3660 = vmatpush1.msra.mxu0 0.0
        %3661 = vmatprep.subr.mxu0 0.0
        %3662 = vmatpush1.msra.mxu0 0.0
        %3663 = vmatprep.mubr.f32.mxu0 0.0
        %3664 = vmatmul.mubr.f32.gmra.mrb[0].mxu0 %v3597
        %v3665 = vpop.f32.mrb[0].mxu0
        %v3666 = vadd.f32 %v3595, %v3665
        %v3667 = vpop.f32.mrb[0].mxu0
        %3668 = vdwg.mxu0
        %v3669 = vtanh.pop %v3666
        %v3670 = vmul.f32 %v3669, 1.442695
        %v3671 = vpow.pop %v3670
        %v3673 = vrot.slane %v3671, 7
        %v3675 = vmul.f32 %v2935, %v3673
        %v3676 = vadd.f32 %v3675, %v3666
        %s3677 = scalar_lea.vmem %s4, 280
        %v3678 = vld [vmem:[%s3677] sm:$0xff]
        %v3679 = vld [vmem:[%s3677 + $0x8] sm:$0xff]
        %v3680 = vld [vmem:[%s3677 + $0x10] sm:$0xff]
        %v3681 = vld [vmem:[%s3677 + $0x18] sm:$0xff]
        %3683 = vset.pattern.permute.xlu0 0
        %3684 = vperm.xlu0 %3683, %v3678
        %v3685 = vpop.permute.xlu0 %3684
        %3688 = vset.pattern.permute.xlu0 0
        %3689 = vperm.xlu0 %3688, %v3679
        %v3690 = vpop.permute.xlu0 %3689
        %3693 = vset.pattern.permute.xlu0 0
        %3694 = vperm.xlu0 %3693, %v3680
        %v3695 = vpop.permute.xlu0 %3694
        %3698 = vset.pattern.permute.xlu0 0
        %3699 = vperm.xlu0 %3698, %v3681
        %v3700 = vpop.permute.xlu0 %3699
        %v3702 = vlaneseq
        %v3703 = vshrl.u32 %v3702, 7
        %v3704 = vsub.s32 1, %v3703
        %v3705 = vrot.slane %v3676, %v3704
        %v3706 = vmul.f32 %v3685, %v3705
        %v3707 = vmul.f32 %v3690, %v3705
        %v3708 = vmul.f32 %v3695, %v3705
        %v3709 = vmul.f32 %v3700, %v3705
        %3710 = vset.pattern.permute.xlu0 1
        %3711 = vperm.xlu0 %3710, %v3678
        %v3712 = vpop.permute.xlu0 %3711
        %3714 = vset.pattern.permute.xlu0 1
        %3715 = vperm.xlu0 %3714, %v3679
        %v3716 = vpop.permute.xlu0 %3715
        %3718 = vset.pattern.permute.xlu0 1
        %3719 = vperm.xlu0 %3718, %v3680
        %v3720 = vpop.permute.xlu0 %3719
        %3722 = vset.pattern.permute.xlu0 1
        %3723 = vperm.xlu0 %3722, %v3681
        %v3724 = vpop.permute.xlu0 %3723
        %v3726 = vadd.f32 %v3706, %v3712
        %v3727 = vadd.f32 %v3707, %v3716
        %v3728 = vadd.f32 %v3708, %v3720
        %v3729 = vadd.f32 %v3709, %v3724
        %v3730 = vtanh.pop %v3726
        %v3731 = vtanh.pop %v3727
        %v3732 = vtanh.pop %v3728
        %v3733 = vtanh.pop %v3729
        %v3734 = vld [vmem:[%s3677 + $0x20] sm:$0xff]
        %3736 = vset.pattern.permute.xlu0 32
        %3737 = vperm.xlu0 %3736, %v3734
        %v3738 = vpop.permute.xlu0 %3737
        %v3740 = vsel %vm2698, %v3734, 0
        %3742 = vmatprep.subr.mxu0 0.0
        %3743 = vmatpush1.msra.mxu0 %v3730
        %3744 = vmatprep.subr.mxu0 0.0
        %3745 = vmatpush1.msra.mxu0 %v3731
        %3746 = vmatprep.subr.mxu0 0.0
        %3747 = vmatpush1.msra.mxu0 %v3732
        %3748 = vmatprep.subr.mxu0 0.0
        %3749 = vmatpush1.msra.mxu0 %v3733
        %3750 = vmatprep.subr.mxu0 0.0
        %3751 = vmatpush1.msra.mxu0 0.0
        %3752 = vmatprep.subr.mxu0 0.0
        %3753 = vmatpush1.msra.mxu0 0.0
        %3754 = vmatprep.subr.mxu0 0.0
        %3755 = vmatpush1.msra.mxu0 0.0
        %3756 = vmatprep.subr.mxu0 0.0
        %3757 = vmatpush1.msra.mxu0 0.0
        %3758 = vmatprep.subr.mxu0 0.0
        %3759 = vmatpush1.msra.mxu0 0.0
        %3760 = vmatprep.subr.mxu0 0.0
        %3761 = vmatpush1.msra.mxu0 0.0
        %3762 = vmatprep.subr.mxu0 0.0
        %3763 = vmatpush1.msra.mxu0 0.0
        %3764 = vmatprep.subr.mxu0 0.0
        %3765 = vmatpush1.msra.mxu0 0.0
        %3766 = vmatprep.subr.mxu0 0.0
        %3767 = vmatpush1.msra.mxu0 0.0
        %3768 = vmatprep.subr.mxu0 0.0
        %3769 = vmatpush1.msra.mxu0 0.0
        %3770 = vmatprep.subr.mxu0 0.0
        %3771 = vmatpush1.msra.mxu0 0.0
        %3772 = vmatprep.subr.mxu0 0.0
        %3773 = vmatpush1.msra.mxu0 0.0
        %3774 = vmatprep.subr.mxu0 0.0
        %3775 = vmatpush1.msra.mxu0 0.0
        %3776 = vmatprep.subr.mxu0 0.0
        %3777 = vmatpush1.msra.mxu0 0.0
        %3778 = vmatprep.subr.mxu0 0.0
        %3779 = vmatpush1.msra.mxu0 0.0
        %3780 = vmatprep.subr.mxu0 0.0
        %3781 = vmatpush1.msra.mxu0 0.0
        %3782 = vmatprep.subr.mxu0 0.0
        %3783 = vmatpush1.msra.mxu0 0.0
        %3784 = vmatprep.subr.mxu0 0.0
        %3785 = vmatpush1.msra.mxu0 0.0
        %3786 = vmatprep.subr.mxu0 0.0
        %3787 = vmatpush1.msra.mxu0 0.0
        %3788 = vmatprep.subr.mxu0 0.0
        %3789 = vmatpush1.msra.mxu0 0.0
        %3790 = vmatprep.subr.mxu0 0.0
        %3791 = vmatpush1.msra.mxu0 0.0
        %3792 = vmatprep.subr.mxu0 0.0
        %3793 = vmatpush1.msra.mxu0 0.0
        %3794 = vmatprep.subr.mxu0 0.0
        %3795 = vmatpush1.msra.mxu0 0.0
        %3796 = vmatprep.subr.mxu0 0.0
        %3797 = vmatpush1.msra.mxu0 0.0
        %3798 = vmatprep.subr.mxu0 0.0
        %3799 = vmatpush1.msra.mxu0 0.0
        %3800 = vmatprep.subr.mxu0 0.0
        %3801 = vmatpush1.msra.mxu0 0.0
        %3802 = vmatprep.subr.mxu0 0.0
        %3803 = vmatpush1.msra.mxu0 0.0
        %3804 = vmatprep.subr.mxu0 0.0
        %3805 = vmatpush1.msra.mxu0 0.0
        %3806 = vmatprep.mubr.f32.mxu0 0.0
        %3807 = vmatmul.mubr.f32.gmra.mrb[0].mxu0 %v3740
        %v3808 = vpop.f32.mrb[0].mxu0
        %v3809 = vadd.f32 %v3738, %v3808
        %v3810 = vpop.f32.mrb[0].mxu0
        %3811 = vdwg.mxu0
        %v3812 = vtanh.pop %v3809
        %v3813 = vmul.f32 %v3812, 1.442695
        %v3814 = vpow.pop %v3813
        %v3815 = vmul.f32 %v2932, %v3814
        %v3817 = vrot.slane %v3809, 1
        %v3819 = vadd.f32 %v3815, %v3817
        %v3821 = vrot.slane %v3819, 6
        %v3823 = vadd.f32 %v3225, %v3821
        %v3825 = vrot.slane %v3676, 6
        %v3827 = vadd.f32 %v3229, %v3825
        %s3828 = scalar_lea.vmem %s4, 400
        %v3829 = vld [vmem:[%s3828] sm:$0xff]
        %v3830 = vld [vmem:[%s3828 + $0x8] sm:$0xff]
        %v3831 = vld [vmem:[%s3828 + $0x10] sm:$0xff]
        %v3832 = vld [vmem:[%s3828 + $0x18] sm:$0xff]
        %3834 = vset.pattern.permute.xlu0 0
        %3835 = vperm.xlu0 %3834, %v3829
        %v3836 = vpop.permute.xlu0 %3835
        %3839 = vset.pattern.permute.xlu0 0
        %3840 = vperm.xlu0 %3839, %v3830
        %v3841 = vpop.permute.xlu0 %3840
        %3844 = vset.pattern.permute.xlu0 0
        %3845 = vperm.xlu0 %3844, %v3831
        %v3846 = vpop.permute.xlu0 %3845
        %3849 = vset.pattern.permute.xlu0 0
        %3850 = vperm.xlu0 %3849, %v3832
        %v3851 = vpop.permute.xlu0 %3850
        %v3853 = vlaneseq
        %v3854 = vshrl.u32 %v3853, 7
        %v3855 = vsub.s32 0, %v3854
        %v3856 = vrot.slane %v3532, %v3855
        %v3857 = vmul.f32 %v3836, %v3856
        %v3858 = vmul.f32 %v3841, %v3856
        %v3859 = vmul.f32 %v3846, %v3856
        %v3860 = vmul.f32 %v3851, %v3856
        %3861 = vset.pattern.permute.xlu0 1
        %3862 = vperm.xlu0 %3861, %v3829
        %v3863 = vpop.permute.xlu0 %3862
        %3865 = vset.pattern.permute.xlu0 1
        %3866 = vperm.xlu0 %3865, %v3830
        %v3867 = vpop.permute.xlu0 %3866
        %3869 = vset.pattern.permute.xlu0 1
        %3870 = vperm.xlu0 %3869, %v3831
        %v3871 = vpop.permute.xlu0 %3870
        %3873 = vset.pattern.permute.xlu0 1
        %3874 = vperm.xlu0 %3873, %v3832
        %v3875 = vpop.permute.xlu0 %3874
        %v3877 = vadd.f32 %v3857, %v3863
        %v3878 = vadd.f32 %v3858, %v3867
        %v3879 = vadd.f32 %v3859, %v3871
        %v3880 = vadd.f32 %v3860, %v3875
        %v3881 = vtanh.pop %v3877
        %v3882 = vtanh.pop %v3878
        %v3883 = vtanh.pop %v3879
        %v3884 = vtanh.pop %v3880
        %v3885 = vld [vmem:[%s3828 + $0x20] sm:$0xff]
        %3887 = vset.pattern.permute.xlu0 32
        %3888 = vperm.xlu0 %3887, %v3885
        %v3889 = vpop.permute.xlu0 %3888
        %v3891 = vsel %vm2698, %v3885, 0
        %3893 = vmatprep.subr.mxu0 0.0
        %3894 = vmatpush1.msra.mxu0 %v3881
        %3895 = vmatprep.subr.mxu0 0.0
        %3896 = vmatpush1.msra.mxu0 %v3882
        %3897 = vmatprep.subr.mxu0 0.0
        %3898 = vmatpush1.msra.mxu0 %v3883
        %3899 = vmatprep.subr.mxu0 0.0
        %3900 = vmatpush1.msra.mxu0 %v3884
        %3901 = vmatprep.subr.mxu0 0.0
        %3902 = vmatpush1.msra.mxu0 0.0
        %3903 = vmatprep.subr.mxu0 0.0
        %3904 = vmatpush1.msra.mxu0 0.0
        %3905 = vmatprep.subr.mxu0 0.0
        %3906 = vmatpush1.msra.mxu0 0.0
        %3907 = vmatprep.subr.mxu0 0.0
        %3908 = vmatpush1.msra.mxu0 0.0
        %3909 = vmatprep.subr.mxu0 0.0
        %3910 = vmatpush1.msra.mxu0 0.0
        %3911 = vmatprep.subr.mxu0 0.0
        %3912 = vmatpush1.msra.mxu0 0.0
        %3913 = vmatprep.subr.mxu0 0.0
        %3914 = vmatpush1.msra.mxu0 0.0
        %3915 = vmatprep.subr.mxu0 0.0
        %3916 = vmatpush1.msra.mxu0 0.0
        %3917 = vmatprep.subr.mxu0 0.0
        %3918 = vmatpush1.msra.mxu0 0.0
        %3919 = vmatprep.subr.mxu0 0.0
        %3920 = vmatpush1.msra.mxu0 0.0
        %3921 = vmatprep.subr.mxu0 0.0
        %3922 = vmatpush1.msra.mxu0 0.0
        %3923 = vmatprep.subr.mxu0 0.0
        %3924 = vmatpush1.msra.mxu0 0.0
        %3925 = vmatprep.subr.mxu0 0.0
        %3926 = vmatpush1.msra.mxu0 0.0
        %3927 = vmatprep.subr.mxu0 0.0
        %3928 = vmatpush1.msra.mxu0 0.0
        %3929 = vmatprep.subr.mxu0 0.0
        %3930 = vmatpush1.msra.mxu0 0.0
        %3931 = vmatprep.subr.mxu0 0.0
        %3932 = vmatpush1.msra.mxu0 0.0
        %3933 = vmatprep.subr.mxu0 0.0
        %3934 = vmatpush1.msra.mxu0 0.0
        %3935 = vmatprep.subr.mxu0 0.0
        %3936 = vmatpush1.msra.mxu0 0.0
        %3937 = vmatprep.subr.mxu0 0.0
        %3938 = vmatpush1.msra.mxu0 0.0
        %3939 = vmatprep.subr.mxu0 0.0
        %3940 = vmatpush1.msra.mxu0 0.0
        %3941 = vmatprep.subr.mxu0 0.0
        %3942 = vmatpush1.msra.mxu0 0.0
        %3943 = vmatprep.subr.mxu0 0.0
        %3944 = vmatpush1.msra.mxu0 0.0
        %3945 = vmatprep.subr.mxu0 0.0
        %3946 = vmatpush1.msra.mxu0 0.0
        %3947 = vmatprep.subr.mxu0 0.0
        %3948 = vmatpush1.msra.mxu0 0.0
        %3949 = vmatprep.subr.mxu0 0.0
        %3950 = vmatpush1.msra.mxu0 0.0
        %3951 = vmatprep.subr.mxu0 0.0
        %3952 = vmatpush1.msra.mxu0 0.0
        %3953 = vmatprep.subr.mxu0 0.0
        %3954 = vmatpush1.msra.mxu0 0.0
        %3955 = vmatprep.subr.mxu0 0.0
        %3956 = vmatpush1.msra.mxu0 0.0
        %3957 = vmatprep.mubr.f32.mxu0 0.0
        %3958 = vmatmul.mubr.f32.gmra.mrb[0].mxu0 %v3891
        %v3959 = vpop.f32.mrb[0].mxu0
        %v3960 = vadd.f32 %v3889, %v3959
        %v3961 = vpop.f32.mrb[0].mxu0
        %3962 = vdwg.mxu0
        %v3963 = vtanh.pop %v3960
        %v3964 = vmul.f32 %v3963, 1.442695
        %v3965 = vpow.pop %v3964
        %v3967 = vrot.slane %v3965, 7
        %v3969 = vmul.f32 %v3533, %v3967
        %v3970 = vadd.f32 %v3969, %v3960
        %s3971 = scalar_lea.vmem %s4, 440
        %v3972 = vld [vmem:[%s3971] sm:$0xff]
        %v3973 = vld [vmem:[%s3971 + $0x8] sm:$0xff]
        %v3974 = vld [vmem:[%s3971 + $0x10] sm:$0xff]
        %v3975 = vld [vmem:[%s3971 + $0x18] sm:$0xff]
        %3977 = vset.pattern.permute.xlu0 0
        %3978 = vperm.xlu0 %3977, %v3972
        %v3979 = vpop.permute.xlu0 %3978
        %3982 = vset.pattern.permute.xlu0 0
        %3983 = vperm.xlu0 %3982, %v3973
        %v3984 = vpop.permute.xlu0 %3983
        %3987 = vset.pattern.permute.xlu0 0
        %3988 = vperm.xlu0 %3987, %v3974
        %v3989 = vpop.permute.xlu0 %3988
        %3992 = vset.pattern.permute.xlu0 0
        %3993 = vperm.xlu0 %3992, %v3975
        %v3994 = vpop.permute.xlu0 %3993
        %v3996 = vlaneseq
        %v3997 = vshrl.u32 %v3996, 7
        %v3998 = vsub.s32 1, %v3997
        %v3999 = vrot.slane %v3970, %v3998
        %v4000 = vmul.f32 %v3979, %v3999
        %v4001 = vmul.f32 %v3984, %v3999
        %v4002 = vmul.f32 %v3989, %v3999
        %v4003 = vmul.f32 %v3994, %v3999
        %4004 = vset.pattern.permute.xlu0 1
        %4005 = vperm.xlu0 %4004, %v3972
        %v4006 = vpop.permute.xlu0 %4005
        %4008 = vset.pattern.permute.xlu0 1
        %4009 = vperm.xlu0 %4008, %v3973
        %v4010 = vpop.permute.xlu0 %4009
        %4012 = vset.pattern.permute.xlu0 1
        %4013 = vperm.xlu0 %4012, %v3974
        %v4014 = vpop.permute.xlu0 %4013
        %4016 = vset.pattern.permute.xlu0 1
        %4017 = vperm.xlu0 %4016, %v3975
        %v4018 = vpop.permute.xlu0 %4017
        %v4020 = vadd.f32 %v4000, %v4006
        %v4021 = vadd.f32 %v4001, %v4010
        %v4022 = vadd.f32 %v4002, %v4014
        %v4023 = vadd.f32 %v4003, %v4018
        %v4024 = vtanh.pop %v4020
        %v4025 = vtanh.pop %v4021
        %v4026 = vtanh.pop %v4022
        %v4027 = vtanh.pop %v4023
        %v4028 = vld [vmem:[%s3971 + $0x20] sm:$0xff]
        %4030 = vset.pattern.permute.xlu0 32
        %4031 = vperm.xlu0 %4030, %v4028
        %v4032 = vpop.permute.xlu0 %4031
        %v4034 = vsel %vm2698, %v4028, 0
        %4036 = vmatprep.subr.mxu0 0.0
        %4037 = vmatpush1.msra.mxu0 %v4024
        %4038 = vmatprep.subr.mxu0 0.0
        %4039 = vmatpush1.msra.mxu0 %v4025
        %4040 = vmatprep.subr.mxu0 0.0
        %4041 = vmatpush1.msra.mxu0 %v4026
        %4042 = vmatprep.subr.mxu0 0.0
        %4043 = vmatpush1.msra.mxu0 %v4027
        %4044 = vmatprep.subr.mxu0 0.0
        %4045 = vmatpush1.msra.mxu0 0.0
        %4046 = vmatprep.subr.mxu0 0.0
        %4047 = vmatpush1.msra.mxu0 0.0
        %4048 = vmatprep.subr.mxu0 0.0
        %4049 = vmatpush1.msra.mxu0 0.0
        %4050 = vmatprep.subr.mxu0 0.0
        %4051 = vmatpush1.msra.mxu0 0.0
        %4052 = vmatprep.subr.mxu0 0.0
        %4053 = vmatpush1.msra.mxu0 0.0
        %4054 = vmatprep.subr.mxu0 0.0
        %4055 = vmatpush1.msra.mxu0 0.0
        %4056 = vmatprep.subr.mxu0 0.0
        %4057 = vmatpush1.msra.mxu0 0.0
        %4058 = vmatprep.subr.mxu0 0.0
        %4059 = vmatpush1.msra.mxu0 0.0
        %4060 = vmatprep.subr.mxu0 0.0
        %4061 = vmatpush1.msra.mxu0 0.0
        %4062 = vmatprep.subr.mxu0 0.0
        %4063 = vmatpush1.msra.mxu0 0.0
        %4064 = vmatprep.subr.mxu0 0.0
        %4065 = vmatpush1.msra.mxu0 0.0
        %4066 = vmatprep.subr.mxu0 0.0
        %4067 = vmatpush1.msra.mxu0 0.0
        %4068 = vmatprep.subr.mxu0 0.0
        %4069 = vmatpush1.msra.mxu0 0.0
        %4070 = vmatprep.subr.mxu0 0.0
        %4071 = vmatpush1.msra.mxu0 0.0
        %4072 = vmatprep.subr.mxu0 0.0
        %4073 = vmatpush1.msra.mxu0 0.0
        %4074 = vmatprep.subr.mxu0 0.0
        %4075 = vmatpush1.msra.mxu0 0.0
        %4076 = vmatprep.subr.mxu0 0.0
        %4077 = vmatpush1.msra.mxu0 0.0
        %4078 = vmatprep.subr.mxu0 0.0
        %4079 = vmatpush1.msra.mxu0 0.0
        %4080 = vmatprep.subr.mxu0 0.0
        %4081 = vmatpush1.msra.mxu0 0.0
        %4082 = vmatprep.subr.mxu0 0.0
        %4083 = vmatpush1.msra.mxu0 0.0
        %4084 = vmatprep.subr.mxu0 0.0
        %4085 = vmatpush1.msra.mxu0 0.0
        %4086 = vmatprep.subr.mxu0 0.0
        %4087 = vmatpush1.msra.mxu0 0.0
        %4088 = vmatprep.subr.mxu0 0.0
        %4089 = vmatpush1.msra.mxu0 0.0
        %4090 = vmatprep.subr.mxu0 0.0
        %4091 = vmatpush1.msra.mxu0 0.0
        %4092 = vmatprep.subr.mxu0 0.0
        %4093 = vmatpush1.msra.mxu0 0.0
        %4094 = vmatprep.subr.mxu0 0.0
        %4095 = vmatpush1.msra.mxu0 0.0
        %4096 = vmatprep.subr.mxu0 0.0
        %4097 = vmatpush1.msra.mxu0 0.0
        %4098 = vmatprep.subr.mxu0 0.0
        %4099 = vmatpush1.msra.mxu0 0.0
        %4100 = vmatprep.mubr.f32.mxu0 0.0
        %4101 = vmatmul.mubr.f32.gmra.mrb[0].mxu0 %v4034
        %v4102 = vpop.f32.mrb[0].mxu0
        %v4103 = vadd.f32 %v4032, %v4102
        %v4104 = vpop.f32.mrb[0].mxu0
        %4105 = vdwg.mxu0
        %v4106 = vtanh.pop %v4103
        %v4107 = vmul.f32 %v4106, 1.442695
        %v4108 = vpow.pop %v4107
        %v4109 = vmul.f32 %v3532, %v4108
        %v4111 = vrot.slane %v4103, 1
        %v4113 = vadd.f32 %v4109, %v4111
        %s4114 = scalar_lea.vmem %s4, 320
        %v4115 = vld [vmem:[%s4114] sm:$0xff]
        %v4116 = vld [vmem:[%s4114 + $0x8] sm:$0xff]
        %v4117 = vld [vmem:[%s4114 + $0x10] sm:$0xff]
        %v4118 = vld [vmem:[%s4114 + $0x18] sm:$0xff]
        %4120 = vset.pattern.permute.xlu0 0
        %4121 = vperm.xlu0 %4120, %v4115
        %v4122 = vpop.permute.xlu0 %4121
        %4125 = vset.pattern.permute.xlu0 0
        %4126 = vperm.xlu0 %4125, %v4116
        %v4127 = vpop.permute.xlu0 %4126
        %4130 = vset.pattern.permute.xlu0 0
        %4131 = vperm.xlu0 %4130, %v4117
        %v4132 = vpop.permute.xlu0 %4131
        %4135 = vset.pattern.permute.xlu0 0
        %4136 = vperm.xlu0 %4135, %v4118
        %v4137 = vpop.permute.xlu0 %4136
        %v4139 = vlaneseq
        %v4140 = vshrl.u32 %v4139, 7
        %v4141 = vsub.s32 2, %v4140
        %v4142 = vrot.slane %v3823, %v4141
        %v4143 = vmul.f32 %v4122, %v4142
        %v4144 = vmul.f32 %v4127, %v4142
        %v4145 = vmul.f32 %v4132, %v4142
        %v4146 = vmul.f32 %v4137, %v4142
        %4147 = vset.pattern.permute.xlu0 1
        %4148 = vperm.xlu0 %4147, %v4115
        %v4149 = vpop.permute.xlu0 %4148
        %4151 = vset.pattern.permute.xlu0 1
        %4152 = vperm.xlu0 %4151, %v4116
        %v4153 = vpop.permute.xlu0 %4152
        %4155 = vset.pattern.permute.xlu0 1
        %4156 = vperm.xlu0 %4155, %v4117
        %v4157 = vpop.permute.xlu0 %4156
        %4159 = vset.pattern.permute.xlu0 1
        %4160 = vperm.xlu0 %4159, %v4118
        %v4161 = vpop.permute.xlu0 %4160
        %v4163 = vadd.f32 %v4143, %v4149
        %v4164 = vadd.f32 %v4144, %v4153
        %v4165 = vadd.f32 %v4145, %v4157
        %v4166 = vadd.f32 %v4146, %v4161
        %v4167 = vtanh.pop %v4163
        %v4168 = vtanh.pop %v4164
        %v4169 = vtanh.pop %v4165
        %v4170 = vtanh.pop %v4166
        %v4171 = vld [vmem:[%s4114 + $0x20] sm:$0xff]
        %4173 = vset.pattern.permute.xlu0 32
        %4174 = vperm.xlu0 %4173, %v4171
        %v4175 = vpop.permute.xlu0 %4174
        %v4177 = vsel %vm2698, %v4171, 0
        %4179 = vmatprep.subr.mxu0 0.0
        %4180 = vmatpush1.msra.mxu0 %v4167
        %4181 = vmatprep.subr.mxu0 0.0
        %4182 = vmatpush1.msra.mxu0 %v4168
        %4183 = vmatprep.subr.mxu0 0.0
        %4184 = vmatpush1.msra.mxu0 %v4169
        %4185 = vmatprep.subr.mxu0 0.0
        %4186 = vmatpush1.msra.mxu0 %v4170
        %4187 = vmatprep.subr.mxu0 0.0
        %4188 = vmatpush1.msra.mxu0 0.0
        %4189 = vmatprep.subr.mxu0 0.0
        %4190 = vmatpush1.msra.mxu0 0.0
        %4191 = vmatprep.subr.mxu0 0.0
        %4192 = vmatpush1.msra.mxu0 0.0
        %4193 = vmatprep.subr.mxu0 0.0
        %4194 = vmatpush1.msra.mxu0 0.0
        %4195 = vmatprep.subr.mxu0 0.0
        %4196 = vmatpush1.msra.mxu0 0.0
        %4197 = vmatprep.subr.mxu0 0.0
        %4198 = vmatpush1.msra.mxu0 0.0
        %4199 = vmatprep.subr.mxu0 0.0
        %4200 = vmatpush1.msra.mxu0 0.0
        %4201 = vmatprep.subr.mxu0 0.0
        %4202 = vmatpush1.msra.mxu0 0.0
        %4203 = vmatprep.subr.mxu0 0.0
        %4204 = vmatpush1.msra.mxu0 0.0
        %4205 = vmatprep.subr.mxu0 0.0
        %4206 = vmatpush1.msra.mxu0 0.0
        %4207 = vmatprep.subr.mxu0 0.0
        %4208 = vmatpush1.msra.mxu0 0.0
        %4209 = vmatprep.subr.mxu0 0.0
        %4210 = vmatpush1.msra.mxu0 0.0
        %4211 = vmatprep.subr.mxu0 0.0
        %4212 = vmatpush1.msra.mxu0 0.0
        %4213 = vmatprep.subr.mxu0 0.0
        %4214 = vmatpush1.msra.mxu0 0.0
        %4215 = vmatprep.subr.mxu0 0.0
        %4216 = vmatpush1.msra.mxu0 0.0
        %4217 = vmatprep.subr.mxu0 0.0
        %4218 = vmatpush1.msra.mxu0 0.0
        %4219 = vmatprep.subr.mxu0 0.0
        %4220 = vmatpush1.msra.mxu0 0.0
        %4221 = vmatprep.subr.mxu0 0.0
        %4222 = vmatpush1.msra.mxu0 0.0
        %4223 = vmatprep.subr.mxu0 0.0
        %4224 = vmatpush1.msra.mxu0 0.0
        %4225 = vmatprep.subr.mxu0 0.0
        %4226 = vmatpush1.msra.mxu0 0.0
        %4227 = vmatprep.subr.mxu0 0.0
        %4228 = vmatpush1.msra.mxu0 0.0
        %4229 = vmatprep.subr.mxu0 0.0
        %4230 = vmatpush1.msra.mxu0 0.0
        %4231 = vmatprep.subr.mxu0 0.0
        %4232 = vmatpush1.msra.mxu0 0.0
        %4233 = vmatprep.subr.mxu0 0.0
        %4234 = vmatpush1.msra.mxu0 0.0
        %4235 = vmatprep.subr.mxu0 0.0
        %4236 = vmatpush1.msra.mxu0 0.0
        %4237 = vmatprep.subr.mxu0 0.0
        %4238 = vmatpush1.msra.mxu0 0.0
        %4239 = vmatprep.subr.mxu0 0.0
        %4240 = vmatpush1.msra.mxu0 0.0
        %4241 = vmatprep.subr.mxu0 0.0
        %4242 = vmatpush1.msra.mxu0 0.0
        %4243 = vmatprep.mubr.f32.mxu0 0.0
        %4244 = vmatmul.mubr.f32.gmra.mrb[0].mxu0 %v4177
        %v4245 = vpop.f32.mrb[0].mxu0
        %v4246 = vadd.f32 %v4175, %v4245
        %v4247 = vpop.f32.mrb[0].mxu0
        %4248 = vdwg.mxu0
        %v4249 = vtanh.pop %v4246
        %v4250 = vmul.f32 %v4249, 1.442695
        %v4251 = vpow.pop %v4250
        %v4253 = vrot.slane %v4251, 5
        %v4255 = vmul.f32 %v3827, %v4253
        %v4257 = vrot.slane %v4246, 6
        %v4259 = vadd.f32 %v4255, %v4257
        %s4260 = scalar_lea.vmem %s4, 360
        %v4261 = vld [vmem:[%s4260] sm:$0xff]
        %v4262 = vld [vmem:[%s4260 + $0x8] sm:$0xff]
        %v4263 = vld [vmem:[%s4260 + $0x10] sm:$0xff]
        %v4264 = vld [vmem:[%s4260 + $0x18] sm:$0xff]
        %4266 = vset.pattern.permute.xlu0 0
        %4267 = vperm.xlu0 %4266, %v4261
        %v4268 = vpop.permute.xlu0 %4267
        %4271 = vset.pattern.permute.xlu0 0
        %4272 = vperm.xlu0 %4271, %v4262
        %v4273 = vpop.permute.xlu0 %4272
        %4276 = vset.pattern.permute.xlu0 0
        %4277 = vperm.xlu0 %4276, %v4263
        %v4278 = vpop.permute.xlu0 %4277
        %4281 = vset.pattern.permute.xlu0 0
        %4282 = vperm.xlu0 %4281, %v4264
        %v4283 = vpop.permute.xlu0 %4282
        %v4285 = vlaneseq
        %v4286 = vshrl.u32 %v4285, 7
        %v4287 = vsub.s32 3, %v4286
        %v4288 = vrot.slane %v4259, %v4287
        %v4289 = vmul.f32 %v4268, %v4288
        %v4290 = vmul.f32 %v4273, %v4288
        %v4291 = vmul.f32 %v4278, %v4288
        %v4292 = vmul.f32 %v4283, %v4288
        %4293 = vset.pattern.permute.xlu0 1
        %4294 = vperm.xlu0 %4293, %v4261
        %v4295 = vpop.permute.xlu0 %4294
        %4297 = vset.pattern.permute.xlu0 1
        %4298 = vperm.xlu0 %4297, %v4262
        %v4299 = vpop.permute.xlu0 %4298
        %4301 = vset.pattern.permute.xlu0 1
        %4302 = vperm.xlu0 %4301, %v4263
        %v4303 = vpop.permute.xlu0 %4302
        %4305 = vset.pattern.permute.xlu0 1
        %4306 = vperm.xlu0 %4305, %v4264
        %v4307 = vpop.permute.xlu0 %4306
        %v4309 = vadd.f32 %v4289, %v4295
        %v4310 = vadd.f32 %v4290, %v4299
        %v4311 = vadd.f32 %v4291, %v4303
        %v4312 = vadd.f32 %v4292, %v4307
        %v4313 = vtanh.pop %v4309
        %v4314 = vtanh.pop %v4310
        %v4315 = vtanh.pop %v4311
        %v4316 = vtanh.pop %v4312
        %v4317 = vld [vmem:[%s4260 + $0x20] sm:$0xff]
        %4319 = vset.pattern.permute.xlu0 32
        %4320 = vperm.xlu0 %4319, %v4317
        %v4321 = vpop.permute.xlu0 %4320
        %v4323 = vsel %vm2698, %v4317, 0
        %4325 = vmatprep.subr.mxu0 0.0
        %4326 = vmatpush1.msra.mxu0 %v4313
        %4327 = vmatprep.subr.mxu0 0.0
        %4328 = vmatpush1.msra.mxu0 %v4314
        %4329 = vmatprep.subr.mxu0 0.0
        %4330 = vmatpush1.msra.mxu0 %v4315
        %4331 = vmatprep.subr.mxu0 0.0
        %4332 = vmatpush1.msra.mxu0 %v4316
        %4333 = vmatprep.subr.mxu0 0.0
        %4334 = vmatpush1.msra.mxu0 0.0
        %4335 = vmatprep.subr.mxu0 0.0
        %4336 = vmatpush1.msra.mxu0 0.0
        %4337 = vmatprep.subr.mxu0 0.0
        %4338 = vmatpush1.msra.mxu0 0.0
        %4339 = vmatprep.subr.mxu0 0.0
        %4340 = vmatpush1.msra.mxu0 0.0
        %4341 = vmatprep.subr.mxu0 0.0
        %4342 = vmatpush1.msra.mxu0 0.0
        %4343 = vmatprep.subr.mxu0 0.0
        %4344 = vmatpush1.msra.mxu0 0.0
        %4345 = vmatprep.subr.mxu0 0.0
        %4346 = vmatpush1.msra.mxu0 0.0
        %4347 = vmatprep.subr.mxu0 0.0
        %4348 = vmatpush1.msra.mxu0 0.0
        %4349 = vmatprep.subr.mxu0 0.0
        %4350 = vmatpush1.msra.mxu0 0.0
        %4351 = vmatprep.subr.mxu0 0.0
        %4352 = vmatpush1.msra.mxu0 0.0
        %4353 = vmatprep.subr.mxu0 0.0
        %4354 = vmatpush1.msra.mxu0 0.0
        %4355 = vmatprep.subr.mxu0 0.0
        %4356 = vmatpush1.msra.mxu0 0.0
        %4357 = vmatprep.subr.mxu0 0.0
        %4358 = vmatpush1.msra.mxu0 0.0
        %4359 = vmatprep.subr.mxu0 0.0
        %4360 = vmatpush1.msra.mxu0 0.0
        %4361 = vmatprep.subr.mxu0 0.0
        %4362 = vmatpush1.msra.mxu0 0.0
        %4363 = vmatprep.subr.mxu0 0.0
        %4364 = vmatpush1.msra.mxu0 0.0
        %4365 = vmatprep.subr.mxu0 0.0
        %4366 = vmatpush1.msra.mxu0 0.0
        %4367 = vmatprep.subr.mxu0 0.0
        %4368 = vmatpush1.msra.mxu0 0.0
        %4369 = vmatprep.subr.mxu0 0.0
        %4370 = vmatpush1.msra.mxu0 0.0
        %4371 = vmatprep.subr.mxu0 0.0
        %4372 = vmatpush1.msra.mxu0 0.0
        %4373 = vmatprep.subr.mxu0 0.0
        %4374 = vmatpush1.msra.mxu0 0.0
        %4375 = vmatprep.subr.mxu0 0.0
        %4376 = vmatpush1.msra.mxu0 0.0
        %4377 = vmatprep.subr.mxu0 0.0
        %4378 = vmatpush1.msra.mxu0 0.0
        %4379 = vmatprep.subr.mxu0 0.0
        %4380 = vmatpush1.msra.mxu0 0.0
        %4381 = vmatprep.subr.mxu0 0.0
        %4382 = vmatpush1.msra.mxu0 0.0
        %4383 = vmatprep.subr.mxu0 0.0
        %4384 = vmatpush1.msra.mxu0 0.0
        %4385 = vmatprep.subr.mxu0 0.0
        %4386 = vmatpush1.msra.mxu0 0.0
        %4387 = vmatprep.subr.mxu0 0.0
        %4388 = vmatpush1.msra.mxu0 0.0
        %4389 = vmatprep.mubr.f32.mxu0 0.0
        %4390 = vmatmul.mubr.f32.gmra.mrb[0].mxu0 %v4323
        %v4391 = vpop.f32.mrb[0].mxu0
        %v4392 = vadd.f32 %v4321, %v4391
        %v4393 = vpop.f32.mrb[0].mxu0
        %4394 = vdwg.mxu0
        %v4395 = vtanh.pop %v4392
        %v4396 = vmul.f32 %v4395, 1.442695
        %v4397 = vpow.pop %v4396
        %v4399 = vrot.slane %v4397, 6
        %v4401 = vmul.f32 %v3823, %v4399
        %v4403 = vrot.slane %v4392, 7
        %v4405 = vadd.f32 %v4401, %v4403
        %v4407 = vrot.slane %v3225, 2
        %v4410 = vrot.slane %v3229, 2
        %vm4412 = vcmask 1040384
        %v4413 = vsel %vm4412, %v4407, %v4410
        %v4415 = vrot.slane %v3525, 4
        %v4418 = vrot.slane %v3529, 4
        %v4420 = vsel %vm4412, %v4415, %v4418
        %v4421 = vld [vmem:[%s5] sm:$0xff]
        %v4422 = vld [vmem:[%s5 + $0x8] sm:$0xff]
        %v4423 = vld [vmem:[%s5 + $0x10] sm:$0xff]
        %v4424 = vld [vmem:[%s5 + $0x18] sm:$0xff]
        %4426 = vset.pattern.permute.xlu0 2
        %4427 = vperm.xlu0 %4426, %v4421
        %v4428 = vpop.permute.xlu0 %4427
        %4431 = vset.pattern.permute.xlu0 2
        %4432 = vperm.xlu0 %4431, %v4422
        %v4433 = vpop.permute.xlu0 %4432
        %4436 = vset.pattern.permute.xlu0 2
        %4437 = vperm.xlu0 %4436, %v4423
        %v4438 = vpop.permute.xlu0 %4437
        %4441 = vset.pattern.permute.xlu0 2
        %4442 = vperm.xlu0 %4441, %v4424
        %v4443 = vpop.permute.xlu0 %4442
        %vm4445 = vcmask 15360
        %v4446 = vsel %vm4445, %v4421, 0
        %v4448 = vsel %vm4445, %v4422, 0
        %v4450 = vsel %vm4445, %v4423, 0
        %v4452 = vsel %vm4445, %v4424, 0
        %vm4454 = vcmask 1041408
        %v4456 = vsel %vm4454, %v4413, 0
        %4458 = vmatprep.subr.mxu0 0.0
        %4459 = vmatpush1.msra.mxu0 %v4456
        %4460 = vmatprep.subr.mxu0 0.0
        %4461 = vmatpush1.msra.mxu0 0.0
        %4462 = vmatprep.subr.mxu0 0.0
        %4463 = vmatpush1.msra.mxu0 0.0
        %4464 = vmatprep.subr.mxu0 0.0
        %4465 = vmatpush1.msra.mxu0 0.0
        %4466 = vmatprep.subr.mxu0 0.0
        %4467 = vmatpush1.msra.mxu0 0.0
        %4468 = vmatprep.subr.mxu0 0.0
        %4469 = vmatpush1.msra.mxu0 0.0
        %4470 = vmatprep.subr.mxu0 0.0
        %4471 = vmatpush1.msra.mxu0 0.0
        %4472 = vmatprep.subr.mxu0 0.0
        %4473 = vmatpush1.msra.mxu0 0.0
        %4474 = vmatprep.subr.mxu0 0.0
        %4475 = vmatpush1.msra.mxu0 0.0
        %4476 = vmatprep.subr.mxu0 0.0
        %4477 = vmatpush1.msra.mxu0 0.0
        %4478 = vmatprep.subr.mxu0 0.0
        %4479 = vmatpush1.msra.mxu0 0.0
        %4480 = vmatprep.subr.mxu0 0.0
        %4481 = vmatpush1.msra.mxu0 0.0
        %4482 = vmatprep.subr.mxu0 0.0
        %4483 = vmatpush1.msra.mxu0 0.0
        %4484 = vmatprep.subr.mxu0 0.0
        %4485 = vmatpush1.msra.mxu0 0.0
        %4486 = vmatprep.subr.mxu0 0.0
        %4487 = vmatpush1.msra.mxu0 0.0
        %4488 = vmatprep.subr.mxu0 0.0
        %4489 = vmatpush1.msra.mxu0 0.0
        %4490 = vmatprep.subr.mxu0 0.0
        %4491 = vmatpush1.msra.mxu0 0.0
        %4492 = vmatprep.subr.mxu0 0.0
        %4493 = vmatpush1.msra.mxu0 0.0
        %4494 = vmatprep.subr.mxu0 0.0
        %4495 = vmatpush1.msra.mxu0 0.0
        %4496 = vmatprep.subr.mxu0 0.0
        %4497 = vmatpush1.msra.mxu0 0.0
        %4498 = vmatprep.subr.mxu0 0.0
        %4499 = vmatpush1.msra.mxu0 0.0
        %4500 = vmatprep.subr.mxu0 0.0
        %4501 = vmatpush1.msra.mxu0 0.0
        %4502 = vmatprep.subr.mxu0 0.0
        %4503 = vmatpush1.msra.mxu0 0.0
        %4504 = vmatprep.subr.mxu0 0.0
        %4505 = vmatpush1.msra.mxu0 0.0
        %4506 = vmatprep.subr.mxu0 0.0
        %4507 = vmatpush1.msra.mxu0 0.0
        %4508 = vmatprep.subr.mxu0 0.0
        %4509 = vmatpush1.msra.mxu0 0.0
        %4510 = vmatprep.subr.mxu0 0.0
        %4511 = vmatpush1.msra.mxu0 0.0
        %4512 = vmatprep.subr.mxu0 0.0
        %4513 = vmatpush1.msra.mxu0 0.0
        %4514 = vmatprep.subr.mxu0 0.0
        %4515 = vmatpush1.msra.mxu0 0.0
        %4516 = vmatprep.subr.mxu0 0.0
        %4517 = vmatpush1.msra.mxu0 0.0
        %4518 = vmatprep.subr.mxu0 0.0
        %4519 = vmatpush1.msra.mxu0 0.0
        %4520 = vmatprep.subr.mxu0 0.0
        %4521 = vmatpush1.msra.mxu0 0.0
        %4522 = vmatprep.mubr.f32.mxu0 0.0
        %4523 = vmatmul.mubr.f32.gmra.mrb[0].mxu0 %v4446
        %v4524 = vpop.f32.mrb[0].mxu0
        %v4525 = vadd.f32 %v4428, %v4524
        %v4526 = vpop.f32.mrb[0].mxu0
        %4527 = vmatprep.mubr.f32.mxu0 0.0
        %4528 = vmatmul.mubr.f32.gmra.mrb[0].mxu0 %v4448
        %v4529 = vpop.f32.mrb[0].mxu0
        %v4530 = vadd.f32 %v4433, %v4529
        %v4531 = vpop.f32.mrb[0].mxu0
        %4532 = vmatprep.mubr.f32.mxu0 0.0
        %4533 = vmatmul.mubr.f32.gmra.mrb[0].mxu0 %v4450
        %v4534 = vpop.f32.mrb[0].mxu0
        %v4535 = vadd.f32 %v4438, %v4534
        %v4536 = vpop.f32.mrb[0].mxu0
        %4537 = vmatprep.mubr.f32.mxu0 0.0
        %4538 = vmatmul.mubr.f32.gmra.mrb[0].mxu0 %v4452
        %v4539 = vpop.f32.mrb[0].mxu0
        %v4540 = vadd.f32 %v4443, %v4539
        %v4541 = vpop.f32.mrb[0].mxu0
        %4542 = vdwg.mxu0
        %v4543 = vtanh.pop %v4525
        %v4544 = vtanh.pop %v4530
        %v4545 = vtanh.pop %v4535
        %v4546 = vtanh.pop %v4540
        %v4547 = vld [vmem:[%s5 + $0x20] sm:$0xff]
        %4549 = vset.pattern.permute.xlu0 32
        %4550 = vperm.xlu0 %4549, %v4547
        %v4551 = vpop.permute.xlu0 %4550
        %v4553 = vsel %vm2698, %v4547, 0
        %4555 = vmatprep.subr.mxu0 0.0
        %4556 = vmatpush1.msra.mxu0 %v4543
        %4557 = vmatprep.subr.mxu0 0.0
        %4558 = vmatpush1.msra.mxu0 %v4544
        %4559 = vmatprep.subr.mxu0 0.0
        %4560 = vmatpush1.msra.mxu0 %v4545
        %4561 = vmatprep.subr.mxu0 0.0
        %4562 = vmatpush1.msra.mxu0 %v4546
        %4563 = vmatprep.subr.mxu0 0.0
        %4564 = vmatpush1.msra.mxu0 0.0
        %4565 = vmatprep.subr.mxu0 0.0
        %4566 = vmatpush1.msra.mxu0 0.0
        %4567 = vmatprep.subr.mxu0 0.0
        %4568 = vmatpush1.msra.mxu0 0.0
        %4569 = vmatprep.subr.mxu0 0.0
        %4570 = vmatpush1.msra.mxu0 0.0
        %4571 = vmatprep.subr.mxu0 0.0
        %4572 = vmatpush1.msra.mxu0 0.0
        %4573 = vmatprep.subr.mxu0 0.0
        %4574 = vmatpush1.msra.mxu0 0.0
        %4575 = vmatprep.subr.mxu0 0.0
        %4576 = vmatpush1.msra.mxu0 0.0
        %4577 = vmatprep.subr.mxu0 0.0
        %4578 = vmatpush1.msra.mxu0 0.0
        %4579 = vmatprep.subr.mxu0 0.0
        %4580 = vmatpush1.msra.mxu0 0.0
        %4581 = vmatprep.subr.mxu0 0.0
        %4582 = vmatpush1.msra.mxu0 0.0
        %4583 = vmatprep.subr.mxu0 0.0
        %4584 = vmatpush1.msra.mxu0 0.0
        %4585 = vmatprep.subr.mxu0 0.0
        %4586 = vmatpush1.msra.mxu0 0.0
        %4587 = vmatprep.subr.mxu0 0.0
        %4588 = vmatpush1.msra.mxu0 0.0
        %4589 = vmatprep.subr.mxu0 0.0
        %4590 = vmatpush1.msra.mxu0 0.0
        %4591 = vmatprep.subr.mxu0 0.0
        %4592 = vmatpush1.msra.mxu0 0.0
        %4593 = vmatprep.subr.mxu0 0.0
        %4594 = vmatpush1.msra.mxu0 0.0
        %4595 = vmatprep.subr.mxu0 0.0
        %4596 = vmatpush1.msra.mxu0 0.0
        %4597 = vmatprep.subr.mxu0 0.0
        %4598 = vmatpush1.msra.mxu0 0.0
        %4599 = vmatprep.subr.mxu0 0.0
        %4600 = vmatpush1.msra.mxu0 0.0
        %4601 = vmatprep.subr.mxu0 0.0
        %4602 = vmatpush1.msra.mxu0 0.0
        %4603 = vmatprep.subr.mxu0 0.0
        %4604 = vmatpush1.msra.mxu0 0.0
        %4605 = vmatprep.subr.mxu0 0.0
        %4606 = vmatpush1.msra.mxu0 0.0
        %4607 = vmatprep.subr.mxu0 0.0
        %4608 = vmatpush1.msra.mxu0 0.0
        %4609 = vmatprep.subr.mxu0 0.0
        %4610 = vmatpush1.msra.mxu0 0.0
        %4611 = vmatprep.subr.mxu0 0.0
        %4612 = vmatpush1.msra.mxu0 0.0
        %4613 = vmatprep.subr.mxu0 0.0
        %4614 = vmatpush1.msra.mxu0 0.0
        %4615 = vmatprep.subr.mxu0 0.0
        %4616 = vmatpush1.msra.mxu0 0.0
        %4617 = vmatprep.subr.mxu0 0.0
        %4618 = vmatpush1.msra.mxu0 0.0
        %4619 = vmatprep.mubr.f32.mxu0 0.0
        %4620 = vmatmul.mubr.f32.gmra.mrb[0].mxu0 %v4553
        %v4621 = vpop.f32.mrb[0].mxu0
        %v4622 = vadd.f32 %v4551, %v4621
        %v4623 = vpop.f32.mrb[0].mxu0
        %4624 = vdwg.mxu0
        %v4625 = vtanh.pop %v4622
        %v4626 = vmul.f32 %v4625, 1.442695
        %v4627 = vpow.pop %v4626
        %v4628 = vmul.f32 %v4420, %v4627
        %v4630 = vrot.slane %v4622, 2
        %v4632 = vadd.f32 %v4628, %v4630
        %s4633 = scalar_lea.vmem %s5, 40
        %v4634 = vld [vmem:[%s4633] sm:$0xff]
        %v4635 = vld [vmem:[%s4633 + $0x8] sm:$0xff]
        %v4636 = vld [vmem:[%s4633 + $0x10] sm:$0xff]
        %v4637 = vld [vmem:[%s4633 + $0x18] sm:$0xff]
        %4639 = vset.pattern.permute.xlu0 2
        %4640 = vperm.xlu0 %4639, %v4634
        %v4641 = vpop.permute.xlu0 %4640
        %4644 = vset.pattern.permute.xlu0 2
        %4645 = vperm.xlu0 %4644, %v4635
        %v4646 = vpop.permute.xlu0 %4645
        %4649 = vset.pattern.permute.xlu0 2
        %4650 = vperm.xlu0 %4649, %v4636
        %v4651 = vpop.permute.xlu0 %4650
        %4654 = vset.pattern.permute.xlu0 2
        %4655 = vperm.xlu0 %4654, %v4637
        %v4656 = vpop.permute.xlu0 %4655
        %v4658 = vsel %vm4445, %v4634, 0
        %v4660 = vsel %vm4445, %v4635, 0
        %v4662 = vsel %vm4445, %v4636, 0
        %v4664 = vsel %vm4445, %v4637, 0
        %v4667 = vsel %vm4454, %v4632, 0
        %4669 = vmatprep.subr.mxu0 0.0
        %4670 = vmatpush1.msra.mxu0 %v4667
        %4671 = vmatprep.subr.mxu0 0.0
        %4672 = vmatpush1.msra.mxu0 0.0
        %4673 = vmatprep.subr.mxu0 0.0
        %4674 = vmatpush1.msra.mxu0 0.0
        %4675 = vmatprep.subr.mxu0 0.0
        %4676 = vmatpush1.msra.mxu0 0.0
        %4677 = vmatprep.subr.mxu0 0.0
        %4678 = vmatpush1.msra.mxu0 0.0
        %4679 = vmatprep.subr.mxu0 0.0
        %4680 = vmatpush1.msra.mxu0 0.0
        %4681 = vmatprep.subr.mxu0 0.0
        %4682 = vmatpush1.msra.mxu0 0.0
        %4683 = vmatprep.subr.mxu0 0.0
        %4684 = vmatpush1.msra.mxu0 0.0
        %4685 = vmatprep.subr.mxu0 0.0
        %4686 = vmatpush1.msra.mxu0 0.0
        %4687 = vmatprep.subr.mxu0 0.0
        %4688 = vmatpush1.msra.mxu0 0.0
        %4689 = vmatprep.subr.mxu0 0.0
        %4690 = vmatpush1.msra.mxu0 0.0
        %4691 = vmatprep.subr.mxu0 0.0
        %4692 = vmatpush1.msra.mxu0 0.0
        %4693 = vmatprep.subr.mxu0 0.0
        %4694 = vmatpush1.msra.mxu0 0.0
        %4695 = vmatprep.subr.mxu0 0.0
        %4696 = vmatpush1.msra.mxu0 0.0
        %4697 = vmatprep.subr.mxu0 0.0
        %4698 = vmatpush1.msra.mxu0 0.0
        %4699 = vmatprep.subr.mxu0 0.0
        %4700 = vmatpush1.msra.mxu0 0.0
        %4701 = vmatprep.subr.mxu0 0.0
        %4702 = vmatpush1.msra.mxu0 0.0
        %4703 = vmatprep.subr.mxu0 0.0
        %4704 = vmatpush1.msra.mxu0 0.0
        %4705 = vmatprep.subr.mxu0 0.0
        %4706 = vmatpush1.msra.mxu0 0.0
        %4707 = vmatprep.subr.mxu0 0.0
        %4708 = vmatpush1.msra.mxu0 0.0
        %4709 = vmatprep.subr.mxu0 0.0
        %4710 = vmatpush1.msra.mxu0 0.0
        %4711 = vmatprep.subr.mxu0 0.0
        %4712 = vmatpush1.msra.mxu0 0.0
        %4713 = vmatprep.subr.mxu0 0.0
        %4714 = vmatpush1.msra.mxu0 0.0
        %4715 = vmatprep.subr.mxu0 0.0
        %4716 = vmatpush1.msra.mxu0 0.0
        %4717 = vmatprep.subr.mxu0 0.0
        %4718 = vmatpush1.msra.mxu0 0.0
        %4719 = vmatprep.subr.mxu0 0.0
        %4720 = vmatpush1.msra.mxu0 0.0
        %4721 = vmatprep.subr.mxu0 0.0
        %4722 = vmatpush1.msra.mxu0 0.0
        %4723 = vmatprep.subr.mxu0 0.0
        %4724 = vmatpush1.msra.mxu0 0.0
        %4725 = vmatprep.subr.mxu0 0.0
        %4726 = vmatpush1.msra.mxu0 0.0
        %4727 = vmatprep.subr.mxu0 0.0
        %4728 = vmatpush1.msra.mxu0 0.0
        %4729 = vmatprep.subr.mxu0 0.0
        %4730 = vmatpush1.msra.mxu0 0.0
        %4731 = vmatprep.subr.mxu0 0.0
        %4732 = vmatpush1.msra.mxu0 0.0
        %4733 = vmatprep.mubr.f32.mxu0 0.0
        %4734 = vmatmul.mubr.f32.gmra.mrb[0].mxu0 %v4658
        %v4735 = vpop.f32.mrb[0].mxu0
        %v4736 = vadd.f32 %v4641, %v4735
        %v4737 = vpop.f32.mrb[0].mxu0
        %4738 = vmatprep.mubr.f32.mxu0 0.0
        %4739 = vmatmul.mubr.f32.gmra.mrb[0].mxu0 %v4660
        %v4740 = vpop.f32.mrb[0].mxu0
        %v4741 = vadd.f32 %v4646, %v4740
        %v4742 = vpop.f32.mrb[0].mxu0
        %4743 = vmatprep.mubr.f32.mxu0 0.0
        %4744 = vmatmul.mubr.f32.gmra.mrb[0].mxu0 %v4662
        %v4745 = vpop.f32.mrb[0].mxu0
        %v4746 = vadd.f32 %v4651, %v4745
        %v4747 = vpop.f32.mrb[0].mxu0
        %4748 = vmatprep.mubr.f32.mxu0 0.0
        %4749 = vmatmul.mubr.f32.gmra.mrb[0].mxu0 %v4664
        %v4750 = vpop.f32.mrb[0].mxu0
        %v4751 = vadd.f32 %v4656, %v4750
        %v4752 = vpop.f32.mrb[0].mxu0
        %4753 = vdwg.mxu0
        %v4754 = vtanh.pop %v4736
        %v4755 = vtanh.pop %v4741
        %v4756 = vtanh.pop %v4746
        %v4757 = vtanh.pop %v4751
        %v4758 = vld [vmem:[%s4633 + $0x20] sm:$0xff]
        %4760 = vset.pattern.permute.xlu0 32
        %4761 = vperm.xlu0 %4760, %v4758
        %v4762 = vpop.permute.xlu0 %4761
        %v4764 = vsel %vm2698, %v4758, 0
        %4766 = vmatprep.subr.mxu0 0.0
        %4767 = vmatpush1.msra.mxu0 %v4754
        %4768 = vmatprep.subr.mxu0 0.0
        %4769 = vmatpush1.msra.mxu0 %v4755
        %4770 = vmatprep.subr.mxu0 0.0
        %4771 = vmatpush1.msra.mxu0 %v4756
        %4772 = vmatprep.subr.mxu0 0.0
        %4773 = vmatpush1.msra.mxu0 %v4757
        %4774 = vmatprep.subr.mxu0 0.0
        %4775 = vmatpush1.msra.mxu0 0.0
        %4776 = vmatprep.subr.mxu0 0.0
        %4777 = vmatpush1.msra.mxu0 0.0
        %4778 = vmatprep.subr.mxu0 0.0
        %4779 = vmatpush1.msra.mxu0 0.0
        %4780 = vmatprep.subr.mxu0 0.0
        %4781 = vmatpush1.msra.mxu0 0.0
        %4782 = vmatprep.subr.mxu0 0.0
        %4783 = vmatpush1.msra.mxu0 0.0
        %4784 = vmatprep.subr.mxu0 0.0
        %4785 = vmatpush1.msra.mxu0 0.0
        %4786 = vmatprep.subr.mxu0 0.0
        %4787 = vmatpush1.msra.mxu0 0.0
        %4788 = vmatprep.subr.mxu0 0.0
        %4789 = vmatpush1.msra.mxu0 0.0
        %4790 = vmatprep.subr.mxu0 0.0
        %4791 = vmatpush1.msra.mxu0 0.0
        %4792 = vmatprep.subr.mxu0 0.0
        %4793 = vmatpush1.msra.mxu0 0.0
        %4794 = vmatprep.subr.mxu0 0.0
        %4795 = vmatpush1.msra.mxu0 0.0
        %4796 = vmatprep.subr.mxu0 0.0
        %4797 = vmatpush1.msra.mxu0 0.0
        %4798 = vmatprep.subr.mxu0 0.0
        %4799 = vmatpush1.msra.mxu0 0.0
        %4800 = vmatprep.subr.mxu0 0.0
        %4801 = vmatpush1.msra.mxu0 0.0
        %4802 = vmatprep.subr.mxu0 0.0
        %4803 = vmatpush1.msra.mxu0 0.0
        %4804 = vmatprep.subr.mxu0 0.0
        %4805 = vmatpush1.msra.mxu0 0.0
        %4806 = vmatprep.subr.mxu0 0.0
        %4807 = vmatpush1.msra.mxu0 0.0
        %4808 = vmatprep.subr.mxu0 0.0
        %4809 = vmatpush1.msra.mxu0 0.0
        %4810 = vmatprep.subr.mxu0 0.0
        %4811 = vmatpush1.msra.mxu0 0.0
        %4812 = vmatprep.subr.mxu0 0.0
        %4813 = vmatpush1.msra.mxu0 0.0
        %4814 = vmatprep.subr.mxu0 0.0
        %4815 = vmatpush1.msra.mxu0 0.0
        %4816 = vmatprep.subr.mxu0 0.0
        %4817 = vmatpush1.msra.mxu0 0.0
        %4818 = vmatprep.subr.mxu0 0.0
        %4819 = vmatpush1.msra.mxu0 0.0
        %4820 = vmatprep.subr.mxu0 0.0
        %4821 = vmatpush1.msra.mxu0 0.0
        %4822 = vmatprep.subr.mxu0 0.0
        %4823 = vmatpush1.msra.mxu0 0.0
        %4824 = vmatprep.subr.mxu0 0.0
        %4825 = vmatpush1.msra.mxu0 0.0
        %4826 = vmatprep.subr.mxu0 0.0
        %4827 = vmatpush1.msra.mxu0 0.0
        %4828 = vmatprep.subr.mxu0 0.0
        %4829 = vmatpush1.msra.mxu0 0.0
        %4830 = vmatprep.mubr.f32.mxu0 0.0
        %4831 = vmatmul.mubr.f32.gmra.mrb[0].mxu0 %v4764
        %v4832 = vpop.f32.mrb[0].mxu0
        %v4833 = vadd.f32 %v4762, %v4832
        %v4834 = vpop.f32.mrb[0].mxu0
        %4835 = vdwg.mxu0
        %v4836 = vtanh.pop %v4833
        %v4837 = vmul.f32 %v4836, 1.442695
        %v4838 = vpow.pop %v4837
        %v4839 = vmul.f32 %v4413, %v4838
        %v4841 = vrot.slane %v4833, 2
        %v4843 = vadd.f32 %v4839, %v4841
        %v4844 = vadd.f32 %v3532, %v2343
        %4845 = vst [vmem:[%s300] sm:$0x1] %v4844
        %v4846 = vadd.f32 %v3533, %v2343
        %4847 = vst [vmem:[%s300] sm:$0x2] %v4846
        %v4849 = vrot.slane %v4113, 6
        %v4851 = vadd.f32 %v3823, %v4849
        %4852 = vst [vmem:[%s300] sm:$0x4] %v4851
        %v4854 = vrot.slane %v3970, 6
        %v4856 = vadd.f32 %v3827, %v4854
        %4857 = vst [vmem:[%s300] sm:$0x8] %v4856
        %v4859 = vrot.slane %v4405, 6
        %v4861 = vadd.f32 %v3525, %v4859
        %4862 = vst [vmem:[%s300] sm:$0x10] %v4861
        %v4864 = vrot.slane %v4259, 6
        %v4866 = vadd.f32 %v3529, %v4864
        %4867 = vst [vmem:[%s300] sm:$0x20] %v4866
        %v4869 = vrot.slane %v4843, 2
        %v4871 = vadd.f32 %v305, %v4869
        %4872 = vst [vmem:[%s300] sm:$0xc0] %v4871
        %v4873 = vadd.f32 %v306, %v4632
        %4874 = vst [vmem:[%s300 + $0x8] sm:$0x3] %v4873
        %s4875 = sand.u32 %s164, 1
        %s4876 = scalar_lea.sflag [#allocation4], %s4875
        %s4877 = sand.u32 %s164, 1
        %s4878 = smul.addr %s4877, 16
        %s4879 = scalar_lea.vmem [#allocation3], %s4878
        // Predicated region
        $region83: #{insulin_cho_forward.1} parent=77 // pred_check
          %p4880 = pneg %p174
        $region84: #{insulin_cho_forward.1} parent=77 // pred_check_branch
          %4882 = sbr.rel (%p4880) target = $region86
        $region85: #{insulin_cho_forward.1} parent=77 // pred_region
          %s4884 = ssub.s32 256, 256
          %4885 = vsyncadd %s4876, %s4884
          %s4886 = smul.addr %s20, 128
          %s4887 = scalar_lea.hbm %s6, %s4886
          %s4888 = sshll.u32 %s4879, 4
          %s4889 = int_to_ptr.vmem [resolvable:$true] %s4888
          %4894 = dma.vmem_to_hbm [thread:$0]  %s4889, 256, %s4887, %s4876, 128, 256, 8
        $region86: #{insulin_cho_forward.1} parent=77 // pred_fallthru
          _
      $region78: #{insulin_cho_forward.1} parent=5 // pred_fallthru
        _
      %p4895 = scmp.le.s32.totalorder 2, %s15
      // Predicated region
      $region87: #{insulin_cho_forward.1} parent=5 // pred_check
        %p4896 = pneg %p4895
      $region88: #{insulin_cho_forward.1} parent=5 // pred_check_branch
        %4898 = sbr.rel (%p4896) target = $region90
      $region89: #{insulin_cho_forward.1} parent=5 // pred_region
        %s4899 = ssub.s32 %s15, 2
        // Predicated region
        $region91: #{insulin_cho_forward.1} parent=89 // pred_check
          %p4900 = pneg %p180
        $region92: #{insulin_cho_forward.1} parent=89 // pred_check_branch
          %4902 = sbr.rel (%p4900) target = $region94
        $region93: #{insulin_cho_forward.1} parent=89 // pred_region
          %s4903 = sand.u32 %s165, 1
          %s4904 = scalar_lea.sflag [#allocation4], %s4903
          %s4905 = sand.u32 %s165, 1
          %s4906 = smul.addr %s4905, 16
          %s4907 = scalar_lea.vmem [#allocation3], %s4906
          %4908 = dma.done %s4904, 256
        $region94: #{insulin_cho_forward.1} parent=89 // pred_fallthru
          _
      $region90: #{insulin_cho_forward.1} parent=5 // pred_fallthru
        _
    $region6: #{insulin_cho_forward.1} parent=1 // loop_footer
      %s19 = sadd.s32 1, %s15
    $region7: #{insulin_cho_forward.1} parent=1 // loop_footer_branch
      %14 = sbr.rel target = $region3
    $region8: #{insulin_cho_forward.1} parent=1 // loop_exit
      _
    %4909 = vsyncpa [#allocation4], 1
    %s4910 = scalar_lea.sflag [#allocation4], 1
    %4911 = vsyncpa %s4910, 1

</llo_original>
